<compile_context>
chip_gen: v7x
topology: tpu7x:2x2x1
jax: 0.10.0
libtpu: 0.0.40
codegen_flags: <defaults>
</compile_context>

<pallas_src>
import functools

import jax
import jax.numpy as jnp
from jax.experimental import pallas as pl
from jax.experimental.pallas import tpu as pltpu

N_PAD = 16  # token axis padded to one full sublane-pair tile


# ----------------------- fused bi-GRU + h2o kernel ---------------------------
def _diac_kernel(idsf_ref, idsb_ref, tblf_ref, tblb_ref, whh_ref, bhn_ref,
                 wk_ref, bh_ref, o_ref, gi_sc, hs_sc, *, n_tok):
    """Single-invocation kernel (no grid).

    idsf_ref : (T*NP, 1) int32 token ids, time-major (forward order)
    idsb_ref : (T*NP, 1) int32 token ids, time-REVERSED (for the backward chain)
    tblf_ref : (Vi, 3G)  pack-time-folded gi table for the forward direction
    tblb_ref : (Vi, 3G)  same for the backward direction (bwd lanes of each gate tile)
    whh_ref  : (G, 3G)   block-diagonal fused hidden->hidden weights (both directions)
    bhn_ref  : (1, G)    b_hh_n for both directions (kept under the r* multiply)
    wk_ref   : (NP, 2H, Vp) per-token h2o weight blocks (padded tokens are zero)
    bh_ref   : (1, Vp)   h2o bias (lane-padded)
    o_ref    : (T, Vp)   lane-dense logits output
    gi_sc    : (T*NP, 3G) VMEM scratch: hoisted gate pre-activations (both directions)
    hs_sc    : (T*NP, 2H) VMEM scratch: per output time, [fwd state | bwd state]
    """
    T, Vp = o_ref.shape
    TN, _ = idsf_ref.shape
    NP = TN // T
    Vi = tblf_ref.shape[0]
    G = whh_ref.shape[1] // 3          # padded per-gate lane width (128)
    H2 = hs_sc.shape[1]                # 2 * hidden
    H = H2 // 2

    # ---- hoisted input path (off the serial chain) ----
    # one-hot ids -> fused, bias-folded gate pre-activations for BOTH directions;
    # the backward chain consumes time-reversed ids, so the per-step loop below only
    # ever does one aligned load.
    iota = jax.lax.broadcasted_iota(jnp.int32, (TN, Vi), 1)
    oh_f = (iota == idsf_ref[...]).astype(jnp.float32)
    oh_b = (iota == idsb_ref[...]).astype(jnp.float32)
    gi_sc[...] = (jnp.dot(oh_f, tblf_ref[...], preferred_element_type=jnp.float32)
                  + jnp.dot(oh_b, tblb_ref[...], preferred_element_type=jnp.float32))

    whh = whh_ref[...]                 # (G, 3G)
    bhn = bhn_ref[...]                 # (1, G)

    # ---- fused bidirectional recurrence (statically unrolled; h stays in vregs) ----
    # Chain step s advances the forward chain (input time s) and the backward chain
    # (input time T-1-s) with ONE matmul through the block-diagonal whh.
    h = jnp.zeros((NP, G), jnp.float32)
    for s in range(T):
        gi = gi_sc[pl.ds(s * NP, NP), :]                             # (NP, 3G) aligned
        gh = jnp.dot(h, whh, preferred_element_type=jnp.float32)     # (NP, 3G)
        r = jax.nn.sigmoid(gi[:, 0:G] + gh[:, 0:G])
        z = jax.nn.sigmoid(gi[:, G:2 * G] + gh[:, G:2 * G])
        cand = jnp.tanh(gi[:, 2 * G:3 * G] + r * (gh[:, 2 * G:3 * G] + bhn))
        h = (1.0 - z) * cand + z * h                                  # PyTorch GRU update
        hs_sc[pl.ds(s * NP, NP), 0:H] = h[:, 0:H]                     # fwd -> time s
        hs_sc[pl.ds((T - 1 - s) * NP, NP), H:H2] = h[:, H:H2]         # bwd -> time T-1-s

    # ---- fused h2o: out[t] = sum_j hs[t, j, :] @ Wk[j] + b ----
    # Per-token strided row gather (rows j, j+NP, ...) + one small MXU matmul each;
    # padded tokens (j >= n_tok) have zero weights and are skipped.
    acc = jnp.zeros((T, Vp), jnp.float32)
    for j in range(n_tok):
        xj = hs_sc[pl.ds(j, T, stride=NP), :]                         # (T, 2H)
        acc = acc + jnp.dot(xj, wk_ref[j], preferred_element_type=jnp.float32)
    o_ref[...] = acc + bh_ref[...]


# ----------------------------- parameters ------------------------------------
def init_params(key, vocab_size, embed_size, hidden_size, output_vocab_size, n):
    """Raw parameters in PyTorch layout (gate order r, z, n)."""
    E, H, V = embed_size, hidden_size, output_vocab_size
    ks = jax.random.split(key, 12)
    scale = 0.1

    def nrm(k, shape):
        return scale * jax.random.normal(k, shape, dtype=jnp.float32)

    return {
        "embed": nrm(ks[0], (vocab_size, E)),
        "w_ih_f": nrm(ks[1], (3 * H, E)), "w_hh_f": nrm(ks[2], (3 * H, H)),
        "b_ih_f": nrm(ks[3], (3 * H,)),   "b_hh_f": nrm(ks[4], (3 * H,)),
        "w_ih_b": nrm(ks[5], (3 * H, E)), "w_hh_b": nrm(ks[6], (3 * H, H)),
        "b_ih_b": nrm(ks[7], (3 * H,)),   "b_hh_b": nrm(ks[8], (3 * H,)),
        "w_h2o": nrm(ks[9], (V, 2 * H * n)),   # PyTorch Linear(2*H*n, V)
        "b_h2o": nrm(ks[10], (V,)),
    }


def pack_params(raw, n, lanes=128):
    """Kernel-layout parameters: embed@W_ih folded, gates lane-padded, fused directions."""
    H = raw["w_hh_f"].shape[1]
    V = raw["w_h2o"].shape[0]
    Vi = raw["embed"].shape[0]
    G = lanes                                            # per-gate padded lane width
    hp = jax.lax.Precision.HIGHEST

    def gi_table(sfx, off):
        w_ih = raw["w_ih_" + sfx]                        # (3H, E)
        b_ih, b_hh = raw["b_ih_" + sfx], raw["b_hh_" + sfx]
        proj = jnp.dot(raw["embed"], w_ih.T, precision=hp)          # (Vi, 3H)
        bias = jnp.concatenate([b_ih[0:H] + b_hh[0:H],
                                b_ih[H:2 * H] + b_hh[H:2 * H],
                                b_ih[2 * H:3 * H]])
        proj = proj + bias[None, :]
        tbl = jnp.zeros((Vi, 3 * G), jnp.float32)
        for g in range(3):
            tbl = tbl.at[:, g * G + off:g * G + off + H].set(proj[:, g * H:(g + 1) * H])
        return tbl

    def whh_block(sfx, off):
        w_hh = raw["w_hh_" + sfx]                        # (3H, H)
        blk = jnp.zeros((G, 3 * G), jnp.float32)
        for g in range(3):
            blk = blk.at[off:off + H, g * G + off:g * G + off + H].set(
                w_hh[g * H:(g + 1) * H, :].T)
        return blk

    tbl_f = gi_table("f", 0)
    tbl_b = gi_table("b", H)
    whh = whh_block("f", 0) + whh_block("b", H)          # block-diagonal fused W_hh

    bhn = jnp.zeros((1, G), jnp.float32)
    bhn = bhn.at[0, 0:H].set(raw["b_hh_f"][2 * H:3 * H])
    bhn = bhn.at[0, H:2 * H].set(raw["b_hh_b"][2 * H:3 * H])

    # h2o: PyTorch flatten order is (token j, dir, hidden k) -> per-token (2H, V) blocks.
    Vp = ((V + lanes - 1) // lanes) * lanes
    Wk = raw["w_h2o"].T.reshape(n, 2 * H, V)             # (n, 2H, V)
    Wk = jnp.pad(Wk, ((0, N_PAD - n), (0, 0), (0, Vp - V)))
    bk = jnp.pad(raw["b_h2o"], (0, Vp - V))[None, :]

    return {
        "tbl_f": tbl_f,                                  # (Vi, 3G)
        "tbl_b": tbl_b,                                  # (Vi, 3G)
        "whh": whh,                                      # (G, 3G)
        "bhn": bhn,                                      # (1, G)
        "w_h2o": Wk,                                     # (N_PAD, 2H, Vp)
        "b_h2o": bk,                                     # (1, Vp)
    }


# ----------------------------- model forward ---------------------------------
@functools.partial(jax.jit, static_argnames=("out_dim",))
def diac_model_forward(inp, kp, out_dim):
    T, n = inp.shape
    assert n <= N_PAD
    Vi = kp["tbl_f"].shape[0]
    G = kp["whh"].shape[1] // 3
    H = kp["w_h2o"].shape[1] // 2
    Vp = kp["w_h2o"].shape[2]

    # Pad the token axis to 16 with an out-of-range sentinel (-> all-zero one-hot row).
    ids2d = jnp.pad(inp.astype(jnp.int32), ((0, 0), (0, N_PAD - n)),
                    constant_values=Vi)
    ids_f = ids2d.reshape(T * N_PAD, 1)
    ids_b = ids2d[::-1].reshape(T * N_PAD, 1)            # time-reversed for the bwd chain

    kernel = functools.partial(_diac_kernel, n_tok=n)

    out_padded = pl.pallas_call(
        kernel,
        out_shape=jax.ShapeDtypeStruct((T, Vp), jnp.float32),
        in_specs=[pl.BlockSpec(memory_space=pltpu.MemorySpace.VMEM)] * 8,
        out_specs=pl.BlockSpec(memory_space=pltpu.MemorySpace.VMEM),
        scratch_shapes=[
            pltpu.VMEM((T * N_PAD, 3 * G), jnp.float32),  # hoisted gate pre-activations
            pltpu.VMEM((T * N_PAD, 2 * H), jnp.float32),  # per-time [fwd | bwd] states
        ],
    )(ids_f, ids_b, kp["tbl_f"], kp["tbl_b"], kp["whh"], kp["bhn"],
      kp["w_h2o"], kp["b_h2o"])

    return out_padded[:, :out_dim]


# ----------------------------- pure-JAX reference -----------------------------
def _gru_ref(x, w_ih, w_hh, b_ih, b_hh):
    """PyTorch nn.GRU single layer, single direction. x: (T, N, E) -> (T, N, H)."""
    H = w_hh.shape[1]
    hp = jax.lax.Precision.HIGHEST

    def step(h, xt):
        gi = jnp.dot(xt, w_ih.T, precision=hp) + b_ih
        gh = jnp.dot(h, w_hh.T, precision=hp) + b_hh
        r = jax.nn.sigmoid(gi[:, 0:H] + gh[:, 0:H])
        z = jax.nn.sigmoid(gi[:, H:2 * H] + gh[:, H:2 * H])
        cand = jnp.tanh(gi[:, 2 * H:] + r * gh[:, 2 * H:])
        h_new = (1.0 - z) * cand + z * h
        return h_new, h_new

    h0 = jnp.zeros((x.shape[1], H), jnp.float32)
    _, out = jax.lax.scan(step, h0, x)
    return out


def diac_model_reference(inp, raw):
    hp = jax.lax.Precision.HIGHEST
    emb = jnp.take(raw["embed"], inp, axis=0)                     # (T, N, E)
    out_f = _gru_ref(emb, raw["w_ih_f"], raw["w_hh_f"], raw["b_ih_f"], raw["b_hh_f"])
    out_b = jnp.flip(
        _gru_ref(jnp.flip(emb, axis=0),
                 raw["w_ih_b"], raw["w_hh_b"], raw["b_ih_b"], raw["b_hh_b"]),
        axis=0)
    gru_out = jnp.concatenate([out_f, out_b], axis=-1)            # (T, N, 2H)
    flat = gru_out.reshape(gru_out.shape[0], -1)                  # PyTorch .view flatten
    return jnp.dot(flat, raw["w_h2o"].T, precision=hp) + raw["b_h2o"]


# ----------------------------- main -------------------------------------------
if __name__ == "__main__":
    vocab_size = 20
    embed_size = 16
    hidden_size = 32
    output_vocab_size = 10
    n = 11           # window width (second input dim must equal n for finish_type='flatten')
    T = 8            # number of windows

    key = jax.random.PRNGKey(0)
    k_par, k_inp = jax.random.split(key)
    raw_params = init_params(k_par, vocab_size, embed_size, hidden_size,
                             output_vocab_size, n)
    kparams = pack_params(raw_params, n)
    inp = jax.random.randint(k_inp, (T, n), 0, vocab_size, dtype=jnp.int32)

    out = diac_model_forward(inp, kparams, out_dim=output_vocab_size)
    out = jax.block_until_ready(out)
    assert out.shape == (T, output_vocab_size), out.shape

    ref = jax.block_until_ready(diac_model_reference(inp, raw_params))
    assert jnp.allclose(out, ref, atol=5e-3, rtol=1e-2), (
        float(jnp.max(jnp.abs(out - ref))))

    print("KERNEL_OK")
</pallas_src>

<mosaic_0001>
module attributes {stable_mosaic.version = 11 : i64} {
  func.func @_diac_kernel(%arg0: memref<128x1xi32, #tpu.memory_space<vmem>>, %arg1: memref<128x1xi32, #tpu.memory_space<vmem>>, %arg2: memref<20x384xf32, #tpu.memory_space<vmem>>, %arg3: memref<20x384xf32, #tpu.memory_space<vmem>>, %arg4: memref<128x384xf32, #tpu.memory_space<vmem>>, %arg5: memref<1x128xf32, #tpu.memory_space<vmem>>, %arg6: memref<16x64x128xf32, #tpu.memory_space<vmem>>, %arg7: memref<1x128xf32, #tpu.memory_space<vmem>>, %arg8: memref<8x128xf32, #tpu.memory_space<vmem>>, %arg9: memref<128x384xf32, #tpu.memory_space<vmem>>, %arg10: memref<128x64xf32, #tpu.memory_space<vmem>>) attributes {dimension_semantics = [], scalar_prefetch = 0 : i64, scratch_operands = 2 : i64, tpu.core_type = #tpu.core_type<tc>} {
    %0 = tpu.iota {dimensions = array<i32: 1>} : vector<128x20xi32>
    %c0 = arith.constant 0 : index
    %c0_0 = arith.constant 0 : index
    %1 = vector.load %arg0[%c0, %c0_0] : memref<128x1xi32, #tpu.memory_space<vmem>>, vector<128x1xi32>
    %2 = vector.broadcast %1 : vector<128x1xi32> to vector<128x20xi32>
    %3 = arith.cmpi eq, %0, %2 : vector<128x20xi32>
    %4 = arith.extui %3 : vector<128x20xi1> to vector<128x20xi32>
    %5 = arith.sitofp %4 : vector<128x20xi32> to vector<128x20xf32>
    %c0_1 = arith.constant 0 : index
    %c0_2 = arith.constant 0 : index
    %6 = vector.load %arg1[%c0_1, %c0_2] : memref<128x1xi32, #tpu.memory_space<vmem>>, vector<128x1xi32>
    %7 = vector.broadcast %6 : vector<128x1xi32> to vector<128x20xi32>
    %8 = arith.cmpi eq, %0, %7 : vector<128x20xi32>
    %9 = arith.extui %8 : vector<128x20xi1> to vector<128x20xi32>
    %10 = arith.sitofp %9 : vector<128x20xi32> to vector<128x20xf32>
    %c0_3 = arith.constant 0 : index
    %c0_4 = arith.constant 0 : index
    %11 = vector.load %arg2[%c0_3, %c0_4] : memref<20x384xf32, #tpu.memory_space<vmem>>, vector<20x384xf32>
    %cst = arith.constant dense<0.000000e+00> : vector<128x384xf32>
    %12 = tpu.matmul %5, %11, %cst {dimension_numbers = #tpu.dot_dimension_numbers<[1], [0], [0], [1], [0, 0, 1, 1], [], []>} : vector<128x20xf32>, vector<20x384xf32>, vector<128x384xf32> -> vector<128x384xf32>
    %c0_5 = arith.constant 0 : index
    %c0_6 = arith.constant 0 : index
    %13 = vector.load %arg3[%c0_5, %c0_6] : memref<20x384xf32, #tpu.memory_space<vmem>>, vector<20x384xf32>
    %cst_7 = arith.constant dense<0.000000e+00> : vector<128x384xf32>
    %14 = tpu.matmul %10, %13, %cst_7 {dimension_numbers = #tpu.dot_dimension_numbers<[1], [0], [0], [1], [0, 0, 1, 1], [], []>} : vector<128x20xf32>, vector<20x384xf32>, vector<128x384xf32> -> vector<128x384xf32>
    %15 = arith.addf %12, %14 : vector<128x384xf32>
    %c0_8 = arith.constant 0 : index
    %c0_9 = arith.constant 0 : index
    %16 = vector.load %arg9[%c0_8, %c0_9] : memref<128x384xf32, #tpu.memory_space<vmem>>, vector<128x384xf32>
    tpu.vector_store %arg9[%c0_8, %c0_9], %15 {strides = array<i32>} : memref<128x384xf32, #tpu.memory_space<vmem>>, vector<128x384xf32>,
    %c0_10 = arith.constant 0 : index
    %c0_11 = arith.constant 0 : index
    %17 = vector.load %arg4[%c0_10, %c0_11] : memref<128x384xf32, #tpu.memory_space<vmem>>, vector<128x384xf32>
    %c0_12 = arith.constant 0 : index
    %c0_13 = arith.constant 0 : index
    %18 = vector.load %arg5[%c0_12, %c0_13] : memref<1x128xf32, #tpu.memory_space<vmem>>, vector<1x128xf32>
    %cst_14 = arith.constant 0.000000e+00 : f32
    %19 = vector.broadcast %cst_14 : f32 to vector<16x128xf32>
    %c0_15 = arith.constant 0 : index
    %c0_16 = arith.constant 0 : index
    %20 = vector.load %arg9[%c0_15, %c0_16] : memref<128x384xf32, #tpu.memory_space<vmem>>, vector<16x384xf32>
    %cst_17 = arith.constant dense<0.000000e+00> : vector<16x384xf32>
    %21 = tpu.matmul %19, %17, %cst_17 {dimension_numbers = #tpu.dot_dimension_numbers<[1], [0], [0], [1], [0, 0, 1, 1], [], []>} : vector<16x128xf32>, vector<128x384xf32>, vector<16x384xf32> -> vector<16x384xf32>
    %22 = vector.extract_strided_slice %20 {offsets = [0, 0], sizes = [16, 128], strides = [1, 1]} : vector<16x384xf32> to vector<16x128xf32>
    %23 = vector.extract_strided_slice %21 {offsets = [0, 0], sizes = [16, 128], strides = [1, 1]} : vector<16x384xf32> to vector<16x128xf32>
    %24 = arith.addf %22, %23 : vector<16x128xf32>
    %25 = arith.negf %24 : vector<16x128xf32>
    %26 = math.exp %25 : vector<16x128xf32>
    %cst_18 = arith.constant 1.000000e+00 : f32
    %27 = vector.broadcast %cst_18 : f32 to vector<16x128xf32>
    %28 = arith.addf %27, %26 : vector<16x128xf32>
    %29 = arith.divf %27, %28 : vector<16x128xf32>
    %30 = vector.extract_strided_slice %20 {offsets = [0, 128], sizes = [16, 128], strides = [1, 1]} : vector<16x384xf32> to vector<16x128xf32>
    %31 = vector.extract_strided_slice %21 {offsets = [0, 128], sizes = [16, 128], strides = [1, 1]} : vector<16x384xf32> to vector<16x128xf32>
    %32 = arith.addf %30, %31 : vector<16x128xf32>
    %33 = arith.negf %32 : vector<16x128xf32>
    %34 = math.exp %33 : vector<16x128xf32>
    %cst_19 = arith.constant 1.000000e+00 : f32
    %35 = vector.broadcast %cst_19 : f32 to vector<16x128xf32>
    %36 = arith.addf %35, %34 : vector<16x128xf32>
    %37 = arith.divf %35, %36 : vector<16x128xf32>
    %38 = vector.extract_strided_slice %20 {offsets = [0, 256], sizes = [16, 128], strides = [1, 1]} : vector<16x384xf32> to vector<16x128xf32>
    %39 = vector.extract_strided_slice %21 {offsets = [0, 256], sizes = [16, 128], strides = [1, 1]} : vector<16x384xf32> to vector<16x128xf32>
    %40 = vector.broadcast %18 : vector<1x128xf32> to vector<16x128xf32>
    %41 = arith.addf %39, %40 : vector<16x128xf32>
    %42 = arith.mulf %29, %41 : vector<16x128xf32>
    %43 = arith.addf %38, %42 : vector<16x128xf32>
    %44 = math.tanh %43 : vector<16x128xf32>
    %cst_20 = arith.constant 1.000000e+00 : f32
    %45 = vector.broadcast %cst_20 : f32 to vector<16x128xf32>
    %46 = arith.subf %45, %37 : vector<16x128xf32>
    %47 = arith.mulf %46, %44 : vector<16x128xf32>
    %48 = arith.mulf %37, %19 : vector<16x128xf32>
    %49 = arith.addf %47, %48 : vector<16x128xf32>
    %50 = vector.extract_strided_slice %49 {offsets = [0, 0], sizes = [16, 32], strides = [1, 1]} : vector<16x128xf32> to vector<16x32xf32>
    %c0_21 = arith.constant 0 : index
    %c0_22 = arith.constant 0 : index
    %51 = vector.load %arg10[%c0_21, %c0_22] : memref<128x64xf32, #tpu.memory_space<vmem>>, vector<16x32xf32>
    tpu.vector_store %arg10[%c0_21, %c0_22], %50 {strides = array<i32>} : memref<128x64xf32, #tpu.memory_space<vmem>>, vector<16x32xf32>,
    %52 = vector.extract_strided_slice %49 {offsets = [0, 32], sizes = [16, 32], strides = [1, 1]} : vector<16x128xf32> to vector<16x32xf32>
    %c112 = arith.constant 112 : index
    %c32 = arith.constant 32 : index
    %53 = vector.load %arg10[%c112, %c32] : memref<128x64xf32, #tpu.memory_space<vmem>>, vector<16x32xf32>
    tpu.vector_store %arg10[%c112, %c32], %52 {strides = array<i32>} : memref<128x64xf32, #tpu.memory_space<vmem>>, vector<16x32xf32>,
    %c16 = arith.constant 16 : index
    %c0_23 = arith.constant 0 : index
    %54 = vector.load %arg9[%c16, %c0_23] : memref<128x384xf32, #tpu.memory_space<vmem>>, vector<16x384xf32>
    %cst_24 = arith.constant dense<0.000000e+00> : vector<16x384xf32>
    %55 = tpu.matmul %49, %17, %cst_24 {dimension_numbers = #tpu.dot_dimension_numbers<[1], [0], [0], [1], [0, 0, 1, 1], [], []>} : vector<16x128xf32>, vector<128x384xf32>, vector<16x384xf32> -> vector<16x384xf32>
    %56 = vector.extract_strided_slice %54 {offsets = [0, 0], sizes = [16, 128], strides = [1, 1]} : vector<16x384xf32> to vector<16x128xf32>
    %57 = vector.extract_strided_slice %55 {offsets = [0, 0], sizes = [16, 128], strides = [1, 1]} : vector<16x384xf32> to vector<16x128xf32>
    %58 = arith.addf %56, %57 : vector<16x128xf32>
    %59 = arith.negf %58 : vector<16x128xf32>
    %60 = math.exp %59 : vector<16x128xf32>
    %cst_25 = arith.constant 1.000000e+00 : f32
    %61 = vector.broadcast %cst_25 : f32 to vector<16x128xf32>
    %62 = arith.addf %61, %60 : vector<16x128xf32>
    %63 = arith.divf %61, %62 : vector<16x128xf32>
    %64 = vector.extract_strided_slice %54 {offsets = [0, 128], sizes = [16, 128], strides = [1, 1]} : vector<16x384xf32> to vector<16x128xf32>
    %65 = vector.extract_strided_slice %55 {offsets = [0, 128], sizes = [16, 128], strides = [1, 1]} : vector<16x384xf32> to vector<16x128xf32>
    %66 = arith.addf %64, %65 : vector<16x128xf32>
    %67 = arith.negf %66 : vector<16x128xf32>
    %68 = math.exp %67 : vector<16x128xf32>
    %cst_26 = arith.constant 1.000000e+00 : f32
    %69 = vector.broadcast %cst_26 : f32 to vector<16x128xf32>
    %70 = arith.addf %69, %68 : vector<16x128xf32>
    %71 = arith.divf %69, %70 : vector<16x128xf32>
    %72 = vector.extract_strided_slice %54 {offsets = [0, 256], sizes = [16, 128], strides = [1, 1]} : vector<16x384xf32> to vector<16x128xf32>
    %73 = vector.extract_strided_slice %55 {offsets = [0, 256], sizes = [16, 128], strides = [1, 1]} : vector<16x384xf32> to vector<16x128xf32>
    %74 = vector.broadcast %18 : vector<1x128xf32> to vector<16x128xf32>
    %75 = arith.addf %73, %74 : vector<16x128xf32>
    %76 = arith.mulf %63, %75 : vector<16x128xf32>
    %77 = arith.addf %72, %76 : vector<16x128xf32>
    %78 = math.tanh %77 : vector<16x128xf32>
    %cst_27 = arith.constant 1.000000e+00 : f32
    %79 = vector.broadcast %cst_27 : f32 to vector<16x128xf32>
    %80 = arith.subf %79, %71 : vector<16x128xf32>
    %81 = arith.mulf %80, %78 : vector<16x128xf32>
    %82 = arith.mulf %71, %49 : vector<16x128xf32>
    %83 = arith.addf %81, %82 : vector<16x128xf32>
    %84 = vector.extract_strided_slice %83 {offsets = [0, 0], sizes = [16, 32], strides = [1, 1]} : vector<16x128xf32> to vector<16x32xf32>
    %c16_28 = arith.constant 16 : index
    %c0_29 = arith.constant 0 : index
    %85 = vector.load %arg10[%c16_28, %c0_29] : memref<128x64xf32, #tpu.memory_space<vmem>>, vector<16x32xf32>
    tpu.vector_store %arg10[%c16_28, %c0_29], %84 {strides = array<i32>} : memref<128x64xf32, #tpu.memory_space<vmem>>, vector<16x32xf32>,
    %86 = vector.extract_strided_slice %83 {offsets = [0, 32], sizes = [16, 32], strides = [1, 1]} : vector<16x128xf32> to vector<16x32xf32>
    %c96 = arith.constant 96 : index
    %c32_30 = arith.constant 32 : index
    %87 = vector.load %arg10[%c96, %c32_30] : memref<128x64xf32, #tpu.memory_space<vmem>>, vector<16x32xf32>
    tpu.vector_store %arg10[%c96, %c32_30], %86 {strides = array<i32>} : memref<128x64xf32, #tpu.memory_space<vmem>>, vector<16x32xf32>,
    %c32_31 = arith.constant 32 : index
    %c0_32 = arith.constant 0 : index
    %88 = vector.load %arg9[%c32_31, %c0_32] : memref<128x384xf32, #tpu.memory_space<vmem>>, vector<16x384xf32>
    %cst_33 = arith.constant dense<0.000000e+00> : vector<16x384xf32>
    %89 = tpu.matmul %83, %17, %cst_33 {dimension_numbers = #tpu.dot_dimension_numbers<[1], [0], [0], [1], [0, 0, 1, 1], [], []>} : vector<16x128xf32>, vector<128x384xf32>, vector<16x384xf32> -> vector<16x384xf32>
    %90 = vector.extract_strided_slice %88 {offsets = [0, 0], sizes = [16, 128], strides = [1, 1]} : vector<16x384xf32> to vector<16x128xf32>
    %91 = vector.extract_strided_slice %89 {offsets = [0, 0], sizes = [16, 128], strides = [1, 1]} : vector<16x384xf32> to vector<16x128xf32>
    %92 = arith.addf %90, %91 : vector<16x128xf32>
    %93 = arith.negf %92 : vector<16x128xf32>
    %94 = math.exp %93 : vector<16x128xf32>
    %cst_34 = arith.constant 1.000000e+00 : f32
    %95 = vector.broadcast %cst_34 : f32 to vector<16x128xf32>
    %96 = arith.addf %95, %94 : vector<16x128xf32>
    %97 = arith.divf %95, %96 : vector<16x128xf32>
    %98 = vector.extract_strided_slice %88 {offsets = [0, 128], sizes = [16, 128], strides = [1, 1]} : vector<16x384xf32> to vector<16x128xf32>
    %99 = vector.extract_strided_slice %89 {offsets = [0, 128], sizes = [16, 128], strides = [1, 1]} : vector<16x384xf32> to vector<16x128xf32>
    %100 = arith.addf %98, %99 : vector<16x128xf32>
    %101 = arith.negf %100 : vector<16x128xf32>
    %102 = math.exp %101 : vector<16x128xf32>
    %cst_35 = arith.constant 1.000000e+00 : f32
    %103 = vector.broadcast %cst_35 : f32 to vector<16x128xf32>
    %104 = arith.addf %103, %102 : vector<16x128xf32>
    %105 = arith.divf %103, %104 : vector<16x128xf32>
    %106 = vector.extract_strided_slice %88 {offsets = [0, 256], sizes = [16, 128], strides = [1, 1]} : vector<16x384xf32> to vector<16x128xf32>
    %107 = vector.extract_strided_slice %89 {offsets = [0, 256], sizes = [16, 128], strides = [1, 1]} : vector<16x384xf32> to vector<16x128xf32>
    %108 = vector.broadcast %18 : vector<1x128xf32> to vector<16x128xf32>
    %109 = arith.addf %107, %108 : vector<16x128xf32>
    %110 = arith.mulf %97, %109 : vector<16x128xf32>
    %111 = arith.addf %106, %110 : vector<16x128xf32>
    %112 = math.tanh %111 : vector<16x128xf32>
    %cst_36 = arith.constant 1.000000e+00 : f32
    %113 = vector.broadcast %cst_36 : f32 to vector<16x128xf32>
    %114 = arith.subf %113, %105 : vector<16x128xf32>
    %115 = arith.mulf %114, %112 : vector<16x128xf32>
    %116 = arith.mulf %105, %83 : vector<16x128xf32>
    %117 = arith.addf %115, %116 : vector<16x128xf32>
    %118 = vector.extract_strided_slice %117 {offsets = [0, 0], sizes = [16, 32], strides = [1, 1]} : vector<16x128xf32> to vector<16x32xf32>
    %c32_37 = arith.constant 32 : index
    %c0_38 = arith.constant 0 : index
    %119 = vector.load %arg10[%c32_37, %c0_38] : memref<128x64xf32, #tpu.memory_space<vmem>>, vector<16x32xf32>
    tpu.vector_store %arg10[%c32_37, %c0_38], %118 {strides = array<i32>} : memref<128x64xf32, #tpu.memory_space<vmem>>, vector<16x32xf32>,
    %120 = vector.extract_strided_slice %117 {offsets = [0, 32], sizes = [16, 32], strides = [1, 1]} : vector<16x128xf32> to vector<16x32xf32>
    %c80 = arith.constant 80 : index
    %c32_39 = arith.constant 32 : index
    %121 = vector.load %arg10[%c80, %c32_39] : memref<128x64xf32, #tpu.memory_space<vmem>>, vector<16x32xf32>
    tpu.vector_store %arg10[%c80, %c32_39], %120 {strides = array<i32>} : memref<128x64xf32, #tpu.memory_space<vmem>>, vector<16x32xf32>,
    %c48 = arith.constant 48 : index
    %c0_40 = arith.constant 0 : index
    %122 = vector.load %arg9[%c48, %c0_40] : memref<128x384xf32, #tpu.memory_space<vmem>>, vector<16x384xf32>
    %cst_41 = arith.constant dense<0.000000e+00> : vector<16x384xf32>
    %123 = tpu.matmul %117, %17, %cst_41 {dimension_numbers = #tpu.dot_dimension_numbers<[1], [0], [0], [1], [0, 0, 1, 1], [], []>} : vector<16x128xf32>, vector<128x384xf32>, vector<16x384xf32> -> vector<16x384xf32>
    %124 = vector.extract_strided_slice %122 {offsets = [0, 0], sizes = [16, 128], strides = [1, 1]} : vector<16x384xf32> to vector<16x128xf32>
    %125 = vector.extract_strided_slice %123 {offsets = [0, 0], sizes = [16, 128], strides = [1, 1]} : vector<16x384xf32> to vector<16x128xf32>
    %126 = arith.addf %124, %125 : vector<16x128xf32>
    %127 = arith.negf %126 : vector<16x128xf32>
    %128 = math.exp %127 : vector<16x128xf32>
    %cst_42 = arith.constant 1.000000e+00 : f32
    %129 = vector.broadcast %cst_42 : f32 to vector<16x128xf32>
    %130 = arith.addf %129, %128 : vector<16x128xf32>
    %131 = arith.divf %129, %130 : vector<16x128xf32>
    %132 = vector.extract_strided_slice %122 {offsets = [0, 128], sizes = [16, 128], strides = [1, 1]} : vector<16x384xf32> to vector<16x128xf32>
    %133 = vector.extract_strided_slice %123 {offsets = [0, 128], sizes = [16, 128], strides = [1, 1]} : vector<16x384xf32> to vector<16x128xf32>
    %134 = arith.addf %132, %133 : vector<16x128xf32>
    %135 = arith.negf %134 : vector<16x128xf32>
    %136 = math.exp %135 : vector<16x128xf32>
    %cst_43 = arith.constant 1.000000e+00 : f32
    %137 = vector.broadcast %cst_43 : f32 to vector<16x128xf32>
    %138 = arith.addf %137, %136 : vector<16x128xf32>
    %139 = arith.divf %137, %138 : vector<16x128xf32>
    %140 = vector.extract_strided_slice %122 {offsets = [0, 256], sizes = [16, 128], strides = [1, 1]} : vector<16x384xf32> to vector<16x128xf32>
    %141 = vector.extract_strided_slice %123 {offsets = [0, 256], sizes = [16, 128], strides = [1, 1]} : vector<16x384xf32> to vector<16x128xf32>
    %142 = vector.broadcast %18 : vector<1x128xf32> to vector<16x128xf32>
    %143 = arith.addf %141, %142 : vector<16x128xf32>
    %144 = arith.mulf %131, %143 : vector<16x128xf32>
    %145 = arith.addf %140, %144 : vector<16x128xf32>
    %146 = math.tanh %145 : vector<16x128xf32>
    %cst_44 = arith.constant 1.000000e+00 : f32
    %147 = vector.broadcast %cst_44 : f32 to vector<16x128xf32>
    %148 = arith.subf %147, %139 : vector<16x128xf32>
    %149 = arith.mulf %148, %146 : vector<16x128xf32>
    %150 = arith.mulf %139, %117 : vector<16x128xf32>
    %151 = arith.addf %149, %150 : vector<16x128xf32>
    %152 = vector.extract_strided_slice %151 {offsets = [0, 0], sizes = [16, 32], strides = [1, 1]} : vector<16x128xf32> to vector<16x32xf32>
    %c48_45 = arith.constant 48 : index
    %c0_46 = arith.constant 0 : index
    %153 = vector.load %arg10[%c48_45, %c0_46] : memref<128x64xf32, #tpu.memory_space<vmem>>, vector<16x32xf32>
    tpu.vector_store %arg10[%c48_45, %c0_46], %152 {strides = array<i32>} : memref<128x64xf32, #tpu.memory_space<vmem>>, vector<16x32xf32>,
    %154 = vector.extract_strided_slice %151 {offsets = [0, 32], sizes = [16, 32], strides = [1, 1]} : vector<16x128xf32> to vector<16x32xf32>
    %c64 = arith.constant 64 : index
    %c32_47 = arith.constant 32 : index
    %155 = vector.load %arg10[%c64, %c32_47] : memref<128x64xf32, #tpu.memory_space<vmem>>, vector<16x32xf32>
    tpu.vector_store %arg10[%c64, %c32_47], %154 {strides = array<i32>} : memref<128x64xf32, #tpu.memory_space<vmem>>, vector<16x32xf32>,
    %c64_48 = arith.constant 64 : index
    %c0_49 = arith.constant 0 : index
    %156 = vector.load %arg9[%c64_48, %c0_49] : memref<128x384xf32, #tpu.memory_space<vmem>>, vector<16x384xf32>
    %cst_50 = arith.constant dense<0.000000e+00> : vector<16x384xf32>
    %157 = tpu.matmul %151, %17, %cst_50 {dimension_numbers = #tpu.dot_dimension_numbers<[1], [0], [0], [1], [0, 0, 1, 1], [], []>} : vector<16x128xf32>, vector<128x384xf32>, vector<16x384xf32> -> vector<16x384xf32>
    %158 = vector.extract_strided_slice %156 {offsets = [0, 0], sizes = [16, 128], strides = [1, 1]} : vector<16x384xf32> to vector<16x128xf32>
    %159 = vector.extract_strided_slice %157 {offsets = [0, 0], sizes = [16, 128], strides = [1, 1]} : vector<16x384xf32> to vector<16x128xf32>
    %160 = arith.addf %158, %159 : vector<16x128xf32>
    %161 = arith.negf %160 : vector<16x128xf32>
    %162 = math.exp %161 : vector<16x128xf32>
    %cst_51 = arith.constant 1.000000e+00 : f32
    %163 = vector.broadcast %cst_51 : f32 to vector<16x128xf32>
    %164 = arith.addf %163, %162 : vector<16x128xf32>
    %165 = arith.divf %163, %164 : vector<16x128xf32>
    %166 = vector.extract_strided_slice %156 {offsets = [0, 128], sizes = [16, 128], strides = [1, 1]} : vector<16x384xf32> to vector<16x128xf32>
    %167 = vector.extract_strided_slice %157 {offsets = [0, 128], sizes = [16, 128], strides = [1, 1]} : vector<16x384xf32> to vector<16x128xf32>
    %168 = arith.addf %166, %167 : vector<16x128xf32>
    %169 = arith.negf %168 : vector<16x128xf32>
    %170 = math.exp %169 : vector<16x128xf32>
    %cst_52 = arith.constant 1.000000e+00 : f32
    %171 = vector.broadcast %cst_52 : f32 to vector<16x128xf32>
    %172 = arith.addf %171, %170 : vector<16x128xf32>
    %173 = arith.divf %171, %172 : vector<16x128xf32>
    %174 = vector.extract_strided_slice %156 {offsets = [0, 256], sizes = [16, 128], strides = [1, 1]} : vector<16x384xf32> to vector<16x128xf32>
    %175 = vector.extract_strided_slice %157 {offsets = [0, 256], sizes = [16, 128], strides = [1, 1]} : vector<16x384xf32> to vector<16x128xf32>
    %176 = vector.broadcast %18 : vector<1x128xf32> to vector<16x128xf32>
    %177 = arith.addf %175, %176 : vector<16x128xf32>
    %178 = arith.mulf %165, %177 : vector<16x128xf32>
    %179 = arith.addf %174, %178 : vector<16x128xf32>
    %180 = math.tanh %179 : vector<16x128xf32>
    %cst_53 = arith.constant 1.000000e+00 : f32
    %181 = vector.broadcast %cst_53 : f32 to vector<16x128xf32>
    %182 = arith.subf %181, %173 : vector<16x128xf32>
    %183 = arith.mulf %182, %180 : vector<16x128xf32>
    %184 = arith.mulf %173, %151 : vector<16x128xf32>
    %185 = arith.addf %183, %184 : vector<16x128xf32>
    %186 = vector.extract_strided_slice %185 {offsets = [0, 0], sizes = [16, 32], strides = [1, 1]} : vector<16x128xf32> to vector<16x32xf32>
    %c64_54 = arith.constant 64 : index
    %c0_55 = arith.constant 0 : index
    %187 = vector.load %arg10[%c64_54, %c0_55] : memref<128x64xf32, #tpu.memory_space<vmem>>, vector<16x32xf32>
    tpu.vector_store %arg10[%c64_54, %c0_55], %186 {strides = array<i32>} : memref<128x64xf32, #tpu.memory_space<vmem>>, vector<16x32xf32>,
    %188 = vector.extract_strided_slice %185 {offsets = [0, 32], sizes = [16, 32], strides = [1, 1]} : vector<16x128xf32> to vector<16x32xf32>
    %c48_56 = arith.constant 48 : index
    %c32_57 = arith.constant 32 : index
    %189 = vector.load %arg10[%c48_56, %c32_57] : memref<128x64xf32, #tpu.memory_space<vmem>>, vector<16x32xf32>
    tpu.vector_store %arg10[%c48_56, %c32_57], %188 {strides = array<i32>} : memref<128x64xf32, #tpu.memory_space<vmem>>, vector<16x32xf32>,
    %c80_58 = arith.constant 80 : index
    %c0_59 = arith.constant 0 : index
    %190 = vector.load %arg9[%c80_58, %c0_59] : memref<128x384xf32, #tpu.memory_space<vmem>>, vector<16x384xf32>
    %cst_60 = arith.constant dense<0.000000e+00> : vector<16x384xf32>
    %191 = tpu.matmul %185, %17, %cst_60 {dimension_numbers = #tpu.dot_dimension_numbers<[1], [0], [0], [1], [0, 0, 1, 1], [], []>} : vector<16x128xf32>, vector<128x384xf32>, vector<16x384xf32> -> vector<16x384xf32>
    %192 = vector.extract_strided_slice %190 {offsets = [0, 0], sizes = [16, 128], strides = [1, 1]} : vector<16x384xf32> to vector<16x128xf32>
    %193 = vector.extract_strided_slice %191 {offsets = [0, 0], sizes = [16, 128], strides = [1, 1]} : vector<16x384xf32> to vector<16x128xf32>
    %194 = arith.addf %192, %193 : vector<16x128xf32>
    %195 = arith.negf %194 : vector<16x128xf32>
    %196 = math.exp %195 : vector<16x128xf32>
    %cst_61 = arith.constant 1.000000e+00 : f32
    %197 = vector.broadcast %cst_61 : f32 to vector<16x128xf32>
    %198 = arith.addf %197, %196 : vector<16x128xf32>
    %199 = arith.divf %197, %198 : vector<16x128xf32>
    %200 = vector.extract_strided_slice %190 {offsets = [0, 128], sizes = [16, 128], strides = [1, 1]} : vector<16x384xf32> to vector<16x128xf32>
    %201 = vector.extract_strided_slice %191 {offsets = [0, 128], sizes = [16, 128], strides = [1, 1]} : vector<16x384xf32> to vector<16x128xf32>
    %202 = arith.addf %200, %201 : vector<16x128xf32>
    %203 = arith.negf %202 : vector<16x128xf32>
    %204 = math.exp %203 : vector<16x128xf32>
    %cst_62 = arith.constant 1.000000e+00 : f32
    %205 = vector.broadcast %cst_62 : f32 to vector<16x128xf32>
    %206 = arith.addf %205, %204 : vector<16x128xf32>
    %207 = arith.divf %205, %206 : vector<16x128xf32>
    %208 = vector.extract_strided_slice %190 {offsets = [0, 256], sizes = [16, 128], strides = [1, 1]} : vector<16x384xf32> to vector<16x128xf32>
    %209 = vector.extract_strided_slice %191 {offsets = [0, 256], sizes = [16, 128], strides = [1, 1]} : vector<16x384xf32> to vector<16x128xf32>
    %210 = vector.broadcast %18 : vector<1x128xf32> to vector<16x128xf32>
    %211 = arith.addf %209, %210 : vector<16x128xf32>
    %212 = arith.mulf %199, %211 : vector<16x128xf32>
    %213 = arith.addf %208, %212 : vector<16x128xf32>
    %214 = math.tanh %213 : vector<16x128xf32>
    %cst_63 = arith.constant 1.000000e+00 : f32
    %215 = vector.broadcast %cst_63 : f32 to vector<16x128xf32>
    %216 = arith.subf %215, %207 : vector<16x128xf32>
    %217 = arith.mulf %216, %214 : vector<16x128xf32>
    %218 = arith.mulf %207, %185 : vector<16x128xf32>
    %219 = arith.addf %217, %218 : vector<16x128xf32>
    %220 = vector.extract_strided_slice %219 {offsets = [0, 0], sizes = [16, 32], strides = [1, 1]} : vector<16x128xf32> to vector<16x32xf32>
    %c80_64 = arith.constant 80 : index
    %c0_65 = arith.constant 0 : index
    %221 = vector.load %arg10[%c80_64, %c0_65] : memref<128x64xf32, #tpu.memory_space<vmem>>, vector<16x32xf32>
    tpu.vector_store %arg10[%c80_64, %c0_65], %220 {strides = array<i32>} : memref<128x64xf32, #tpu.memory_space<vmem>>, vector<16x32xf32>,
    %222 = vector.extract_strided_slice %219 {offsets = [0, 32], sizes = [16, 32], strides = [1, 1]} : vector<16x128xf32> to vector<16x32xf32>
    %c32_66 = arith.constant 32 : index
    %c32_67 = arith.constant 32 : index
    %223 = vector.load %arg10[%c32_66, %c32_67] : memref<128x64xf32, #tpu.memory_space<vmem>>, vector<16x32xf32>
    tpu.vector_store %arg10[%c32_66, %c32_67], %222 {strides = array<i32>} : memref<128x64xf32, #tpu.memory_space<vmem>>, vector<16x32xf32>,
    %c96_68 = arith.constant 96 : index
    %c0_69 = arith.constant 0 : index
    %224 = vector.load %arg9[%c96_68, %c0_69] : memref<128x384xf32, #tpu.memory_space<vmem>>, vector<16x384xf32>
    %cst_70 = arith.constant dense<0.000000e+00> : vector<16x384xf32>
    %225 = tpu.matmul %219, %17, %cst_70 {dimension_numbers = #tpu.dot_dimension_numbers<[1], [0], [0], [1], [0, 0, 1, 1], [], []>} : vector<16x128xf32>, vector<128x384xf32>, vector<16x384xf32> -> vector<16x384xf32>
    %226 = vector.extract_strided_slice %224 {offsets = [0, 0], sizes = [16, 128], strides = [1, 1]} : vector<16x384xf32> to vector<16x128xf32>
    %227 = vector.extract_strided_slice %225 {offsets = [0, 0], sizes = [16, 128], strides = [1, 1]} : vector<16x384xf32> to vector<16x128xf32>
    %228 = arith.addf %226, %227 : vector<16x128xf32>
    %229 = arith.negf %228 : vector<16x128xf32>
    %230 = math.exp %229 : vector<16x128xf32>
    %cst_71 = arith.constant 1.000000e+00 : f32
    %231 = vector.broadcast %cst_71 : f32 to vector<16x128xf32>
    %232 = arith.addf %231, %230 : vector<16x128xf32>
    %233 = arith.divf %231, %232 : vector<16x128xf32>
    %234 = vector.extract_strided_slice %224 {offsets = [0, 128], sizes = [16, 128], strides = [1, 1]} : vector<16x384xf32> to vector<16x128xf32>
    %235 = vector.extract_strided_slice %225 {offsets = [0, 128], sizes = [16, 128], strides = [1, 1]} : vector<16x384xf32> to vector<16x128xf32>
    %236 = arith.addf %234, %235 : vector<16x128xf32>
    %237 = arith.negf %236 : vector<16x128xf32>
    %238 = math.exp %237 : vector<16x128xf32>
    %cst_72 = arith.constant 1.000000e+00 : f32
    %239 = vector.broadcast %cst_72 : f32 to vector<16x128xf32>
    %240 = arith.addf %239, %238 : vector<16x128xf32>
    %241 = arith.divf %239, %240 : vector<16x128xf32>
    %242 = vector.extract_strided_slice %224 {offsets = [0, 256], sizes = [16, 128], strides = [1, 1]} : vector<16x384xf32> to vector<16x128xf32>
    %243 = vector.extract_strided_slice %225 {offsets = [0, 256], sizes = [16, 128], strides = [1, 1]} : vector<16x384xf32> to vector<16x128xf32>
    %244 = vector.broadcast %18 : vector<1x128xf32> to vector<16x128xf32>
    %245 = arith.addf %243, %244 : vector<16x128xf32>
    %246 = arith.mulf %233, %245 : vector<16x128xf32>
    %247 = arith.addf %242, %246 : vector<16x128xf32>
    %248 = math.tanh %247 : vector<16x128xf32>
    %cst_73 = arith.constant 1.000000e+00 : f32
    %249 = vector.broadcast %cst_73 : f32 to vector<16x128xf32>
    %250 = arith.subf %249, %241 : vector<16x128xf32>
    %251 = arith.mulf %250, %248 : vector<16x128xf32>
    %252 = arith.mulf %241, %219 : vector<16x128xf32>
    %253 = arith.addf %251, %252 : vector<16x128xf32>
    %254 = vector.extract_strided_slice %253 {offsets = [0, 0], sizes = [16, 32], strides = [1, 1]} : vector<16x128xf32> to vector<16x32xf32>
    %c96_74 = arith.constant 96 : index
    %c0_75 = arith.constant 0 : index
    %255 = vector.load %arg10[%c96_74, %c0_75] : memref<128x64xf32, #tpu.memory_space<vmem>>, vector<16x32xf32>
    tpu.vector_store %arg10[%c96_74, %c0_75], %254 {strides = array<i32>} : memref<128x64xf32, #tpu.memory_space<vmem>>, vector<16x32xf32>,
    %256 = vector.extract_strided_slice %253 {offsets = [0, 32], sizes = [16, 32], strides = [1, 1]} : vector<16x128xf32> to vector<16x32xf32>
    %c16_76 = arith.constant 16 : index
    %c32_77 = arith.constant 32 : index
    %257 = vector.load %arg10[%c16_76, %c32_77] : memref<128x64xf32, #tpu.memory_space<vmem>>, vector<16x32xf32>
    tpu.vector_store %arg10[%c16_76, %c32_77], %256 {strides = array<i32>} : memref<128x64xf32, #tpu.memory_space<vmem>>, vector<16x32xf32>,
    %c112_78 = arith.constant 112 : index
    %c0_79 = arith.constant 0 : index
    %258 = vector.load %arg9[%c112_78, %c0_79] : memref<128x384xf32, #tpu.memory_space<vmem>>, vector<16x384xf32>
    %cst_80 = arith.constant dense<0.000000e+00> : vector<16x384xf32>
    %259 = tpu.matmul %253, %17, %cst_80 {dimension_numbers = #tpu.dot_dimension_numbers<[1], [0], [0], [1], [0, 0, 1, 1], [], []>} : vector<16x128xf32>, vector<128x384xf32>, vector<16x384xf32> -> vector<16x384xf32>
    %260 = vector.extract_strided_slice %258 {offsets = [0, 0], sizes = [16, 128], strides = [1, 1]} : vector<16x384xf32> to vector<16x128xf32>
    %261 = vector.extract_strided_slice %259 {offsets = [0, 0], sizes = [16, 128], strides = [1, 1]} : vector<16x384xf32> to vector<16x128xf32>
    %262 = arith.addf %260, %261 : vector<16x128xf32>
    %263 = arith.negf %262 : vector<16x128xf32>
    %264 = math.exp %263 : vector<16x128xf32>
    %cst_81 = arith.constant 1.000000e+00 : f32
    %265 = vector.broadcast %cst_81 : f32 to vector<16x128xf32>
    %266 = arith.addf %265, %264 : vector<16x128xf32>
    %267 = arith.divf %265, %266 : vector<16x128xf32>
    %268 = vector.extract_strided_slice %258 {offsets = [0, 128], sizes = [16, 128], strides = [1, 1]} : vector<16x384xf32> to vector<16x128xf32>
    %269 = vector.extract_strided_slice %259 {offsets = [0, 128], sizes = [16, 128], strides = [1, 1]} : vector<16x384xf32> to vector<16x128xf32>
    %270 = arith.addf %268, %269 : vector<16x128xf32>
    %271 = arith.negf %270 : vector<16x128xf32>
    %272 = math.exp %271 : vector<16x128xf32>
    %cst_82 = arith.constant 1.000000e+00 : f32
    %273 = vector.broadcast %cst_82 : f32 to vector<16x128xf32>
    %274 = arith.addf %273, %272 : vector<16x128xf32>
    %275 = arith.divf %273, %274 : vector<16x128xf32>
    %276 = vector.extract_strided_slice %258 {offsets = [0, 256], sizes = [16, 128], strides = [1, 1]} : vector<16x384xf32> to vector<16x128xf32>
    %277 = vector.extract_strided_slice %259 {offsets = [0, 256], sizes = [16, 128], strides = [1, 1]} : vector<16x384xf32> to vector<16x128xf32>
    %278 = vector.broadcast %18 : vector<1x128xf32> to vector<16x128xf32>
    %279 = arith.addf %277, %278 : vector<16x128xf32>
    %280 = arith.mulf %267, %279 : vector<16x128xf32>
    %281 = arith.addf %276, %280 : vector<16x128xf32>
    %282 = math.tanh %281 : vector<16x128xf32>
    %cst_83 = arith.constant 1.000000e+00 : f32
    %283 = vector.broadcast %cst_83 : f32 to vector<16x128xf32>
    %284 = arith.subf %283, %275 : vector<16x128xf32>
    %285 = arith.mulf %284, %282 : vector<16x128xf32>
    %286 = arith.mulf %275, %253 : vector<16x128xf32>
    %287 = arith.addf %285, %286 : vector<16x128xf32>
    %288 = vector.extract_strided_slice %287 {offsets = [0, 0], sizes = [16, 32], strides = [1, 1]} : vector<16x128xf32> to vector<16x32xf32>
    %c112_84 = arith.constant 112 : index
    %c0_85 = arith.constant 0 : index
    %289 = vector.load %arg10[%c112_84, %c0_85] : memref<128x64xf32, #tpu.memory_space<vmem>>, vector<16x32xf32>
    tpu.vector_store %arg10[%c112_84, %c0_85], %288 {strides = array<i32>} : memref<128x64xf32, #tpu.memory_space<vmem>>, vector<16x32xf32>,
    %290 = vector.extract_strided_slice %287 {offsets = [0, 32], sizes = [16, 32], strides = [1, 1]} : vector<16x128xf32> to vector<16x32xf32>
    %c0_86 = arith.constant 0 : index
    %c32_87 = arith.constant 32 : index
    %291 = vector.load %arg10[%c0_86, %c32_87] : memref<128x64xf32, #tpu.memory_space<vmem>>, vector<16x32xf32>
    tpu.vector_store %arg10[%c0_86, %c32_87], %290 {strides = array<i32>} : memref<128x64xf32, #tpu.memory_space<vmem>>, vector<16x32xf32>,
    %cst_88 = arith.constant 0.000000e+00 : f32
    %292 = vector.broadcast %cst_88 : f32 to vector<8x128xf32>
    %c0_89 = arith.constant 0 : index
    %c0_90 = arith.constant 0 : index
    %293 = tpu.strided_load %arg10[%c0_89, %c0_90] {strides = array<i32: 16, 1>} : memref<128x64xf32, #tpu.memory_space<vmem>>, vector<8x64xf32>
    %c0_91 = arith.constant 0 : index
    %c0_92 = arith.constant 0 : index
    %c0_93 = arith.constant 0 : index
    %294 = vector.load %arg6[%c0_91, %c0_92, %c0_93] : memref<16x64x128xf32, #tpu.memory_space<vmem>>, vector<1x64x128xf32>
    %295 = vector.shape_cast %294 : vector<1x64x128xf32> to vector<64x128xf32>
    %cst_94 = arith.constant dense<0.000000e+00> : vector<8x128xf32>
    %296 = tpu.matmul %293, %295, %cst_94 {dimension_numbers = #tpu.dot_dimension_numbers<[1], [0], [0], [1], [0, 0, 1, 1], [], []>} : vector<8x64xf32>, vector<64x128xf32>, vector<8x128xf32> -> vector<8x128xf32>
    %297 = arith.addf %292, %296 : vector<8x128xf32>
    %c1 = arith.constant 1 : index
    %c0_95 = arith.constant 0 : index
    %298 = tpu.strided_load %arg10[%c1, %c0_95] {strides = array<i32: 16, 1>} : memref<128x64xf32, #tpu.memory_space<vmem>>, vector<8x64xf32>
    %c1_96 = arith.constant 1 : index
    %c0_97 = arith.constant 0 : index
    %c0_98 = arith.constant 0 : index
    %299 = vector.load %arg6[%c1_96, %c0_97, %c0_98] : memref<16x64x128xf32, #tpu.memory_space<vmem>>, vector<1x64x128xf32>
    %300 = vector.shape_cast %299 : vector<1x64x128xf32> to vector<64x128xf32>
    %cst_99 = arith.constant dense<0.000000e+00> : vector<8x128xf32>
    %301 = tpu.matmul %298, %300, %cst_99 {dimension_numbers = #tpu.dot_dimension_numbers<[1], [0], [0], [1], [0, 0, 1, 1], [], []>} : vector<8x64xf32>, vector<64x128xf32>, vector<8x128xf32> -> vector<8x128xf32>
    %302 = arith.addf %297, %301 : vector<8x128xf32>
    %c2 = arith.constant 2 : index
    %c0_100 = arith.constant 0 : index
    %303 = tpu.strided_load %arg10[%c2, %c0_100] {strides = array<i32: 16, 1>} : memref<128x64xf32, #tpu.memory_space<vmem>>, vector<8x64xf32>
    %c2_101 = arith.constant 2 : index
    %c0_102 = arith.constant 0 : index
    %c0_103 = arith.constant 0 : index
    %304 = vector.load %arg6[%c2_101, %c0_102, %c0_103] : memref<16x64x128xf32, #tpu.memory_space<vmem>>, vector<1x64x128xf32>
    %305 = vector.shape_cast %304 : vector<1x64x128xf32> to vector<64x128xf32>
    %cst_104 = arith.constant dense<0.000000e+00> : vector<8x128xf32>
    %306 = tpu.matmul %303, %305, %cst_104 {dimension_numbers = #tpu.dot_dimension_numbers<[1], [0], [0], [1], [0, 0, 1, 1], [], []>} : vector<8x64xf32>, vector<64x128xf32>, vector<8x128xf32> -> vector<8x128xf32>
    %307 = arith.addf %302, %306 : vector<8x128xf32>
    %c3 = arith.constant 3 : index
    %c0_105 = arith.constant 0 : index
    %308 = tpu.strided_load %arg10[%c3, %c0_105] {strides = array<i32: 16, 1>} : memref<128x64xf32, #tpu.memory_space<vmem>>, vector<8x64xf32>
    %c3_106 = arith.constant 3 : index
    %c0_107 = arith.constant 0 : index
    %c0_108 = arith.constant 0 : index
    %309 = vector.load %arg6[%c3_106, %c0_107, %c0_108] : memref<16x64x128xf32, #tpu.memory_space<vmem>>, vector<1x64x128xf32>
    %310 = vector.shape_cast %309 : vector<1x64x128xf32> to vector<64x128xf32>
    %cst_109 = arith.constant dense<0.000000e+00> : vector<8x128xf32>
    %311 = tpu.matmul %308, %310, %cst_109 {dimension_numbers = #tpu.dot_dimension_numbers<[1], [0], [0], [1], [0, 0, 1, 1], [], []>} : vector<8x64xf32>, vector<64x128xf32>, vector<8x128xf32> -> vector<8x128xf32>
    %312 = arith.addf %307, %311 : vector<8x128xf32>
    %c4 = arith.constant 4 : index
    %c0_110 = arith.constant 0 : index
    %313 = tpu.strided_load %arg10[%c4, %c0_110] {strides = array<i32: 16, 1>} : memref<128x64xf32, #tpu.memory_space<vmem>>, vector<8x64xf32>
    %c4_111 = arith.constant 4 : index
    %c0_112 = arith.constant 0 : index
    %c0_113 = arith.constant 0 : index
    %314 = vector.load %arg6[%c4_111, %c0_112, %c0_113] : memref<16x64x128xf32, #tpu.memory_space<vmem>>, vector<1x64x128xf32>
    %315 = vector.shape_cast %314 : vector<1x64x128xf32> to vector<64x128xf32>
    %cst_114 = arith.constant dense<0.000000e+00> : vector<8x128xf32>
    %316 = tpu.matmul %313, %315, %cst_114 {dimension_numbers = #tpu.dot_dimension_numbers<[1], [0], [0], [1], [0, 0, 1, 1], [], []>} : vector<8x64xf32>, vector<64x128xf32>, vector<8x128xf32> -> vector<8x128xf32>
    %317 = arith.addf %312, %316 : vector<8x128xf32>
    %c5 = arith.constant 5 : index
    %c0_115 = arith.constant 0 : index
    %318 = tpu.strided_load %arg10[%c5, %c0_115] {strides = array<i32: 16, 1>} : memref<128x64xf32, #tpu.memory_space<vmem>>, vector<8x64xf32>
    %c5_116 = arith.constant 5 : index
    %c0_117 = arith.constant 0 : index
    %c0_118 = arith.constant 0 : index
    %319 = vector.load %arg6[%c5_116, %c0_117, %c0_118] : memref<16x64x128xf32, #tpu.memory_space<vmem>>, vector<1x64x128xf32>
    %320 = vector.shape_cast %319 : vector<1x64x128xf32> to vector<64x128xf32>
    %cst_119 = arith.constant dense<0.000000e+00> : vector<8x128xf32>
    %321 = tpu.matmul %318, %320, %cst_119 {dimension_numbers = #tpu.dot_dimension_numbers<[1], [0], [0], [1], [0, 0, 1, 1], [], []>} : vector<8x64xf32>, vector<64x128xf32>, vector<8x128xf32> -> vector<8x128xf32>
    %322 = arith.addf %317, %321 : vector<8x128xf32>
    %c6 = arith.constant 6 : index
    %c0_120 = arith.constant 0 : index
    %323 = tpu.strided_load %arg10[%c6, %c0_120] {strides = array<i32: 16, 1>} : memref<128x64xf32, #tpu.memory_space<vmem>>, vector<8x64xf32>
    %c6_121 = arith.constant 6 : index
    %c0_122 = arith.constant 0 : index
    %c0_123 = arith.constant 0 : index
    %324 = vector.load %arg6[%c6_121, %c0_122, %c0_123] : memref<16x64x128xf32, #tpu.memory_space<vmem>>, vector<1x64x128xf32>
    %325 = vector.shape_cast %324 : vector<1x64x128xf32> to vector<64x128xf32>
    %cst_124 = arith.constant dense<0.000000e+00> : vector<8x128xf32>
    %326 = tpu.matmul %323, %325, %cst_124 {dimension_numbers = #tpu.dot_dimension_numbers<[1], [0], [0], [1], [0, 0, 1, 1], [], []>} : vector<8x64xf32>, vector<64x128xf32>, vector<8x128xf32> -> vector<8x128xf32>
    %327 = arith.addf %322, %326 : vector<8x128xf32>
    %c7 = arith.constant 7 : index
    %c0_125 = arith.constant 0 : index
    %328 = tpu.strided_load %arg10[%c7, %c0_125] {strides = array<i32: 16, 1>} : memref<128x64xf32, #tpu.memory_space<vmem>>, vector<8x64xf32>
    %c7_126 = arith.constant 7 : index
    %c0_127 = arith.constant 0 : index
    %c0_128 = arith.constant 0 : index
    %329 = vector.load %arg6[%c7_126, %c0_127, %c0_128] : memref<16x64x128xf32, #tpu.memory_space<vmem>>, vector<1x64x128xf32>
    %330 = vector.shape_cast %329 : vector<1x64x128xf32> to vector<64x128xf32>
    %cst_129 = arith.constant dense<0.000000e+00> : vector<8x128xf32>
    %331 = tpu.matmul %328, %330, %cst_129 {dimension_numbers = #tpu.dot_dimension_numbers<[1], [0], [0], [1], [0, 0, 1, 1], [], []>} : vector<8x64xf32>, vector<64x128xf32>, vector<8x128xf32> -> vector<8x128xf32>
    %332 = arith.addf %327, %331 : vector<8x128xf32>
    %c8 = arith.constant 8 : index
    %c0_130 = arith.constant 0 : index
    %333 = tpu.strided_load %arg10[%c8, %c0_130] {strides = array<i32: 16, 1>} : memref<128x64xf32, #tpu.memory_space<vmem>>, vector<8x64xf32>
    %c8_131 = arith.constant 8 : index
    %c0_132 = arith.constant 0 : index
    %c0_133 = arith.constant 0 : index
    %334 = vector.load %arg6[%c8_131, %c0_132, %c0_133] : memref<16x64x128xf32, #tpu.memory_space<vmem>>, vector<1x64x128xf32>
    %335 = vector.shape_cast %334 : vector<1x64x128xf32> to vector<64x128xf32>
    %cst_134 = arith.constant dense<0.000000e+00> : vector<8x128xf32>
    %336 = tpu.matmul %333, %335, %cst_134 {dimension_numbers = #tpu.dot_dimension_numbers<[1], [0], [0], [1], [0, 0, 1, 1], [], []>} : vector<8x64xf32>, vector<64x128xf32>, vector<8x128xf32> -> vector<8x128xf32>
    %337 = arith.addf %332, %336 : vector<8x128xf32>
    %c9 = arith.constant 9 : index
    %c0_135 = arith.constant 0 : index
    %338 = tpu.strided_load %arg10[%c9, %c0_135] {strides = array<i32: 16, 1>} : memref<128x64xf32, #tpu.memory_space<vmem>>, vector<8x64xf32>
    %c9_136 = arith.constant 9 : index
    %c0_137 = arith.constant 0 : index
    %c0_138 = arith.constant 0 : index
    %339 = vector.load %arg6[%c9_136, %c0_137, %c0_138] : memref<16x64x128xf32, #tpu.memory_space<vmem>>, vector<1x64x128xf32>
    %340 = vector.shape_cast %339 : vector<1x64x128xf32> to vector<64x128xf32>
    %cst_139 = arith.constant dense<0.000000e+00> : vector<8x128xf32>
    %341 = tpu.matmul %338, %340, %cst_139 {dimension_numbers = #tpu.dot_dimension_numbers<[1], [0], [0], [1], [0, 0, 1, 1], [], []>} : vector<8x64xf32>, vector<64x128xf32>, vector<8x128xf32> -> vector<8x128xf32>
    %342 = arith.addf %337, %341 : vector<8x128xf32>
    %c10 = arith.constant 10 : index
    %c0_140 = arith.constant 0 : index
    %343 = tpu.strided_load %arg10[%c10, %c0_140] {strides = array<i32: 16, 1>} : memref<128x64xf32, #tpu.memory_space<vmem>>, vector<8x64xf32>
    %c10_141 = arith.constant 10 : index
    %c0_142 = arith.constant 0 : index
    %c0_143 = arith.constant 0 : index
    %344 = vector.load %arg6[%c10_141, %c0_142, %c0_143] : memref<16x64x128xf32, #tpu.memory_space<vmem>>, vector<1x64x128xf32>
    %345 = vector.shape_cast %344 : vector<1x64x128xf32> to vector<64x128xf32>
    %cst_144 = arith.constant dense<0.000000e+00> : vector<8x128xf32>
    %346 = tpu.matmul %343, %345, %cst_144 {dimension_numbers = #tpu.dot_dimension_numbers<[1], [0], [0], [1], [0, 0, 1, 1], [], []>} : vector<8x64xf32>, vector<64x128xf32>, vector<8x128xf32> -> vector<8x128xf32>
    %347 = arith.addf %342, %346 : vector<8x128xf32>
    %c0_145 = arith.constant 0 : index
    %c0_146 = arith.constant 0 : index
    %348 = vector.load %arg7[%c0_145, %c0_146] : memref<1x128xf32, #tpu.memory_space<vmem>>, vector<1x128xf32>
    %349 = vector.broadcast %348 : vector<1x128xf32> to vector<8x128xf32>
    %350 = arith.addf %347, %349 : vector<8x128xf32>
    %c0_147 = arith.constant 0 : index
    %c0_148 = arith.constant 0 : index
    %351 = vector.load %arg8[%c0_147, %c0_148] : memref<8x128xf32, #tpu.memory_space<vmem>>, vector<8x128xf32>
    tpu.vector_store %arg8[%c0_147, %c0_148], %350 {strides = array<i32>} : memref<8x128xf32, #tpu.memory_space<vmem>>, vector<8x128xf32>,
    return
  }
}

</mosaic_0001>

<llo_original>
// kernel: diac_model_forward.1
$region0: #{diac_model_forward.1}
  #allocation0 [shape = 'u32[]', space=smem, size = 0x4, offset = 0x4, fixed_abs, tag = 'smem constant byte address 0x4 - core index']
  #allocation1 [shape = 'u32[144,128]{1,0:T(1,128)}', space=vmem, size = 0x12000, scoped, tag = 'internal scratch']
  #allocation2 [shape = 'f32[128,384]{1,0:T(8,128)}', space=vmem, size = 0x30000, scoped, tag = 'scratch operand']
  #allocation3 [shape = 'f32[128,64]{1,0:T(8,128)}', space=vmem, size = 0x10000, scoped, tag = 'scratch operand']
  %s0 = inlined_call_operand.vmem [shape: s32[128,1], index: 0, kind: input, shape index: {}]
  %s1 = inlined_call_operand.vmem [shape: s32[128,1], index: 1, kind: input, shape index: {}]
  %s2 = inlined_call_operand.vmem [shape: f32[20,384], index: 2, kind: input, shape index: {}]
  %s3 = inlined_call_operand.vmem [shape: f32[20,384], index: 3, kind: input, shape index: {}]
  %s4 = inlined_call_operand.hbm [shape: f32[128,384], index: 4, kind: input, shape index: {}]
  %s5 = inlined_call_operand.vmem [shape: f32[1,128], index: 5, kind: input, shape index: {}]
  %s6 = inlined_call_operand.hbm [shape: f32[16,64,128], index: 6, kind: input, shape index: {}]
  %s7 = inlined_call_operand.vmem [shape: f32[1,128], index: 7, kind: input, shape index: {}]
  %s8 = inlined_call_operand.hbm [shape: f32[8,128], index: 8, kind: output, shape index: {}]
  %s9 = sld [smem:[#allocation0]]
  $region50: #{diac_model_forward.1} parent=0
    _
  %s11 = ssub.s32 1, %s9
  %s12 = scalar_select 0, %s11, %s9
  $region1: #{diac_model_forward.1} parent=0
    #allocation4 [shape = 'u8[196608]{0}', space=vmem, size = 0x30000, scoped, tag = 'input window, operand 4, single buffered']
    #allocation5 [shape = 's32[1]{0}', space=sflag, size = 0x4, scoped, tag = 'scoped memory for diac_model_forward.1']
    #allocation6 [shape = 's32[1]{0}', space=sflag, size = 0x4, scoped, tag = 'scoped memory for diac_model_forward.1']
    #allocation7 [shape = 'u8[524288]{0}', space=vmem, size = 0x80000, scoped, tag = 'input window, operand 6, single buffered']
    #allocation8 [shape = 's32[1]{0}', space=sflag, size = 0x4, scoped, tag = 'scoped memory for diac_model_forward.1']
    #allocation9 [shape = 'u8[4096]{0}', space=vmem, size = 0x1000, scoped, tag = 'output window, operand 0, single buffered']
    %13 = vsyncpa [#allocation5], 0
    %14 = vsyncpa [#allocation8], 0
    %15 = vsyncpa [#allocation6], 0
    // Predicated region
    $region2: #{diac_model_forward.1} parent=1 // pred_check
      _
    $region3: #{diac_model_forward.1} parent=1 // pred_check_branch
      %17 = sbr.rel (0) target = $region5
    $region4: #{diac_model_forward.1} parent=1 // pred_region
      _
    $region5: #{diac_model_forward.1} parent=1 // pred_fallthru
      _
    // Predicated region
    $region6: #{diac_model_forward.1} parent=1 // pred_check
      _
    $region7: #{diac_model_forward.1} parent=1 // pred_check_branch
      %19 = sbr.rel (0) target = $region9
    $region8: #{diac_model_forward.1} parent=1 // pred_region
      _
    $region9: #{diac_model_forward.1} parent=1 // pred_fallthru
      _
    // Predicated region
    $region10: #{diac_model_forward.1} parent=1 // pred_check
      _
    $region11: #{diac_model_forward.1} parent=1 // pred_check_branch
      %21 = sbr.rel (0) target = $region13
    $region12: #{diac_model_forward.1} parent=1 // pred_region
      _
    $region13: #{diac_model_forward.1} parent=1 // pred_fallthru
      _
    // Predicated region
    $region14: #{diac_model_forward.1} parent=1 // pred_check
      _
    $region15: #{diac_model_forward.1} parent=1 // pred_check_branch
      %23 = sbr.rel (0) target = $region17
    $region16: #{diac_model_forward.1} parent=1 // pred_region
      _
    $region17: #{diac_model_forward.1} parent=1 // pred_fallthru
      _
    // Predicated region
    $region18: #{diac_model_forward.1} parent=1 // pred_check
      _
    $region19: #{diac_model_forward.1} parent=1 // pred_check_branch
      %25 = sbr.rel (0) target = $region21
    $region20: #{diac_model_forward.1} parent=1 // pred_region
      %s27 = ssub.s32 6144, 6144
      %28 = vsyncadd [#allocation5], %s27
      %s29 = sshll.u32 [#allocation4], 4
      %s30 = int_to_ptr.vmem [resolvable:$true] %s29
      %35 = dma.hbm_to_vmem [thread:$0]  %s4, 6144, %s30, [#allocation5], 384, 384, 24
    $region21: #{diac_model_forward.1} parent=1 // pred_fallthru
      _
    // Predicated region
    $region22: #{diac_model_forward.1} parent=1 // pred_check
      _
    $region23: #{diac_model_forward.1} parent=1 // pred_check_branch
      %37 = sbr.rel (0) target = $region25
    $region24: #{diac_model_forward.1} parent=1 // pred_region
      _
    $region25: #{diac_model_forward.1} parent=1 // pred_fallthru
      _
    // Predicated region
    $region26: #{diac_model_forward.1} parent=1 // pred_check
      _
    $region27: #{diac_model_forward.1} parent=1 // pred_check_branch
      %39 = sbr.rel (0) target = $region29
    $region28: #{diac_model_forward.1} parent=1 // pred_region
      %s41 = ssub.s32 16384, 16384
      %42 = vsyncadd [#allocation8], %s41
      %s43 = sshll.u32 [#allocation7], 4
      %s44 = int_to_ptr.vmem [resolvable:$true] %s43
      %49 = dma.hbm_to_vmem [thread:$0]  %s6, 16384, %s44, [#allocation8], 128, 128, 8
    $region29: #{diac_model_forward.1} parent=1 // pred_fallthru
      _
    // Predicated region
    $region30: #{diac_model_forward.1} parent=1 // pred_check
      _
    $region31: #{diac_model_forward.1} parent=1 // pred_check_branch
      %51 = sbr.rel (0) target = $region33
    $region32: #{diac_model_forward.1} parent=1 // pred_region
      _
    $region33: #{diac_model_forward.1} parent=1 // pred_fallthru
      _
    // Predicated region
    $region34: #{diac_model_forward.1} parent=1 // pred_check
      _
    $region35: #{diac_model_forward.1} parent=1 // pred_check_branch
      %53 = sbr.rel (0) target = $region37
    $region36: #{diac_model_forward.1} parent=1 // pred_region
      %54 = dma.done [#allocation5], 6144
    $region37: #{diac_model_forward.1} parent=1 // pred_fallthru
      _
    // Predicated region
    $region38: #{diac_model_forward.1} parent=1 // pred_check
      _
    $region39: #{diac_model_forward.1} parent=1 // pred_check_branch
      %56 = sbr.rel (0) target = $region41
    $region40: #{diac_model_forward.1} parent=1 // pred_region
      %57 = dma.done [#allocation8], 16384
    $region41: #{diac_model_forward.1} parent=1 // pred_fallthru
      _
    %v58 = vlaneseq
    %v59 = vand.u32 %v58, 127
    %v60 = vld [vmem:[%s0] sm:$0xff]
    %v61 = vld [vmem:[%s0 + $0x8] sm:$0xff]
    %v62 = vld [vmem:[%s0 + $0x10] sm:$0xff]
    %v63 = vld [vmem:[%s0 + $0x18] sm:$0xff]
    %v64 = vld [vmem:[%s0 + $0x20] sm:$0xff]
    %v65 = vld [vmem:[%s0 + $0x28] sm:$0xff]
    %v66 = vld [vmem:[%s0 + $0x30] sm:$0xff]
    %v67 = vld [vmem:[%s0 + $0x38] sm:$0xff]
    %v68 = vld [vmem:[%s0 + $0x40] sm:$0xff]
    %v69 = vld [vmem:[%s0 + $0x48] sm:$0xff]
    %v70 = vld [vmem:[%s0 + $0x50] sm:$0xff]
    %v71 = vld [vmem:[%s0 + $0x58] sm:$0xff]
    %v72 = vld [vmem:[%s0 + $0x60] sm:$0xff]
    %v73 = vld [vmem:[%s0 + $0x68] sm:$0xff]
    %v74 = vld [vmem:[%s0 + $0x70] sm:$0xff]
    %v75 = vld [vmem:[%s0 + $0x78] sm:$0xff]
    %76 = vset.pattern.permute.xlu0 0
    %77 = vperm.xlu0 %76, %v60
    %v78 = vpop.permute.xlu0 %77
    %79 = vset.pattern.permute.xlu0 0
    %80 = vperm.xlu0 %79, %v61
    %v81 = vpop.permute.xlu0 %80
    %82 = vset.pattern.permute.xlu0 0
    %83 = vperm.xlu0 %82, %v62
    %v84 = vpop.permute.xlu0 %83
    %85 = vset.pattern.permute.xlu0 0
    %86 = vperm.xlu0 %85, %v63
    %v87 = vpop.permute.xlu0 %86
    %88 = vset.pattern.permute.xlu0 0
    %89 = vperm.xlu0 %88, %v64
    %v90 = vpop.permute.xlu0 %89
    %91 = vset.pattern.permute.xlu0 0
    %92 = vperm.xlu0 %91, %v65
    %v93 = vpop.permute.xlu0 %92
    %94 = vset.pattern.permute.xlu0 0
    %95 = vperm.xlu0 %94, %v66
    %v96 = vpop.permute.xlu0 %95
    %97 = vset.pattern.permute.xlu0 0
    %98 = vperm.xlu0 %97, %v67
    %v99 = vpop.permute.xlu0 %98
    %100 = vset.pattern.permute.xlu0 0
    %101 = vperm.xlu0 %100, %v68
    %v102 = vpop.permute.xlu0 %101
    %103 = vset.pattern.permute.xlu0 0
    %104 = vperm.xlu0 %103, %v69
    %v105 = vpop.permute.xlu0 %104
    %106 = vset.pattern.permute.xlu0 0
    %107 = vperm.xlu0 %106, %v70
    %v108 = vpop.permute.xlu0 %107
    %109 = vset.pattern.permute.xlu0 0
    %110 = vperm.xlu0 %109, %v71
    %v111 = vpop.permute.xlu0 %110
    %112 = vset.pattern.permute.xlu0 0
    %113 = vperm.xlu0 %112, %v72
    %v114 = vpop.permute.xlu0 %113
    %115 = vset.pattern.permute.xlu0 0
    %116 = vperm.xlu0 %115, %v73
    %v117 = vpop.permute.xlu0 %116
    %118 = vset.pattern.permute.xlu0 0
    %119 = vperm.xlu0 %118, %v74
    %v120 = vpop.permute.xlu0 %119
    %121 = vset.pattern.permute.xlu0 0
    %122 = vperm.xlu0 %121, %v75
    %v123 = vpop.permute.xlu0 %122
    %vm124 = vcmp.eq.s32.totalorder %v59, %v78
    %vm125 = vcmp.eq.s32.totalorder %v59, %v81
    %vm126 = vcmp.eq.s32.totalorder %v59, %v84
    %vm127 = vcmp.eq.s32.totalorder %v59, %v87
    %vm128 = vcmp.eq.s32.totalorder %v59, %v90
    %vm129 = vcmp.eq.s32.totalorder %v59, %v93
    %vm130 = vcmp.eq.s32.totalorder %v59, %v96
    %vm131 = vcmp.eq.s32.totalorder %v59, %v99
    %vm132 = vcmp.eq.s32.totalorder %v59, %v102
    %vm133 = vcmp.eq.s32.totalorder %v59, %v105
    %vm134 = vcmp.eq.s32.totalorder %v59, %v108
    %vm135 = vcmp.eq.s32.totalorder %v59, %v111
    %vm136 = vcmp.eq.s32.totalorder %v59, %v114
    %vm137 = vcmp.eq.s32.totalorder %v59, %v117
    %vm138 = vcmp.eq.s32.totalorder %v59, %v120
    %vm139 = vcmp.eq.s32.totalorder %v59, %v123
    %v140 = vsel %vm124, 1, 0
    %v141 = vsel %vm125, 1, 0
    %v142 = vsel %vm126, 1, 0
    %v143 = vsel %vm127, 1, 0
    %v144 = vsel %vm128, 1, 0
    %v145 = vsel %vm129, 1, 0
    %v146 = vsel %vm130, 1, 0
    %v147 = vsel %vm131, 1, 0
    %v148 = vsel %vm132, 1, 0
    %v149 = vsel %vm133, 1, 0
    %v150 = vsel %vm134, 1, 0
    %v151 = vsel %vm135, 1, 0
    %v152 = vsel %vm136, 1, 0
    %v153 = vsel %vm137, 1, 0
    %v154 = vsel %vm138, 1, 0
    %v155 = vsel %vm139, 1, 0
    %v156 = vcvt.s32.f32 %v140
    %v157 = vcvt.s32.f32 %v141
    %v158 = vcvt.s32.f32 %v142
    %v159 = vcvt.s32.f32 %v143
    %v160 = vcvt.s32.f32 %v144
    %v161 = vcvt.s32.f32 %v145
    %v162 = vcvt.s32.f32 %v146
    %v163 = vcvt.s32.f32 %v147
    %v164 = vcvt.s32.f32 %v148
    %v165 = vcvt.s32.f32 %v149
    %v166 = vcvt.s32.f32 %v150
    %v167 = vcvt.s32.f32 %v151
    %v168 = vcvt.s32.f32 %v152
    %v169 = vcvt.s32.f32 %v153
    %v170 = vcvt.s32.f32 %v154
    %v171 = vcvt.s32.f32 %v155
    %v172 = vld [vmem:[%s1] sm:$0xff]
    %v173 = vld [vmem:[%s1 + $0x8] sm:$0xff]
    %v174 = vld [vmem:[%s1 + $0x10] sm:$0xff]
    %v175 = vld [vmem:[%s1 + $0x18] sm:$0xff]
    %v176 = vld [vmem:[%s1 + $0x20] sm:$0xff]
    %v177 = vld [vmem:[%s1 + $0x28] sm:$0xff]
    %v178 = vld [vmem:[%s1 + $0x30] sm:$0xff]
    %v179 = vld [vmem:[%s1 + $0x38] sm:$0xff]
    %v180 = vld [vmem:[%s1 + $0x40] sm:$0xff]
    %v181 = vld [vmem:[%s1 + $0x48] sm:$0xff]
    %v182 = vld [vmem:[%s1 + $0x50] sm:$0xff]
    %v183 = vld [vmem:[%s1 + $0x58] sm:$0xff]
    %v184 = vld [vmem:[%s1 + $0x60] sm:$0xff]
    %v185 = vld [vmem:[%s1 + $0x68] sm:$0xff]
    %v186 = vld [vmem:[%s1 + $0x70] sm:$0xff]
    %v187 = vld [vmem:[%s1 + $0x78] sm:$0xff]
    %188 = vset.pattern.permute.xlu0 0
    %189 = vperm.xlu0 %188, %v172
    %v190 = vpop.permute.xlu0 %189
    %191 = vset.pattern.permute.xlu0 0
    %192 = vperm.xlu0 %191, %v173
    %v193 = vpop.permute.xlu0 %192
    %194 = vset.pattern.permute.xlu0 0
    %195 = vperm.xlu0 %194, %v174
    %v196 = vpop.permute.xlu0 %195
    %197 = vset.pattern.permute.xlu0 0
    %198 = vperm.xlu0 %197, %v175
    %v199 = vpop.permute.xlu0 %198
    %200 = vset.pattern.permute.xlu0 0
    %201 = vperm.xlu0 %200, %v176
    %v202 = vpop.permute.xlu0 %201
    %203 = vset.pattern.permute.xlu0 0
    %204 = vperm.xlu0 %203, %v177
    %v205 = vpop.permute.xlu0 %204
    %206 = vset.pattern.permute.xlu0 0
    %207 = vperm.xlu0 %206, %v178
    %v208 = vpop.permute.xlu0 %207
    %209 = vset.pattern.permute.xlu0 0
    %210 = vperm.xlu0 %209, %v179
    %v211 = vpop.permute.xlu0 %210
    %212 = vset.pattern.permute.xlu0 0
    %213 = vperm.xlu0 %212, %v180
    %v214 = vpop.permute.xlu0 %213
    %215 = vset.pattern.permute.xlu0 0
    %216 = vperm.xlu0 %215, %v181
    %v217 = vpop.permute.xlu0 %216
    %218 = vset.pattern.permute.xlu0 0
    %219 = vperm.xlu0 %218, %v182
    %v220 = vpop.permute.xlu0 %219
    %221 = vset.pattern.permute.xlu0 0
    %222 = vperm.xlu0 %221, %v183
    %v223 = vpop.permute.xlu0 %222
    %224 = vset.pattern.permute.xlu0 0
    %225 = vperm.xlu0 %224, %v184
    %v226 = vpop.permute.xlu0 %225
    %227 = vset.pattern.permute.xlu0 0
    %228 = vperm.xlu0 %227, %v185
    %v229 = vpop.permute.xlu0 %228
    %230 = vset.pattern.permute.xlu0 0
    %231 = vperm.xlu0 %230, %v186
    %v232 = vpop.permute.xlu0 %231
    %233 = vset.pattern.permute.xlu0 0
    %234 = vperm.xlu0 %233, %v187
    %v235 = vpop.permute.xlu0 %234
    %vm236 = vcmp.eq.s32.totalorder %v59, %v190
    %vm237 = vcmp.eq.s32.totalorder %v59, %v193
    %vm238 = vcmp.eq.s32.totalorder %v59, %v196
    %vm239 = vcmp.eq.s32.totalorder %v59, %v199
    %vm240 = vcmp.eq.s32.totalorder %v59, %v202
    %vm241 = vcmp.eq.s32.totalorder %v59, %v205
    %vm242 = vcmp.eq.s32.totalorder %v59, %v208
    %vm243 = vcmp.eq.s32.totalorder %v59, %v211
    %vm244 = vcmp.eq.s32.totalorder %v59, %v214
    %vm245 = vcmp.eq.s32.totalorder %v59, %v217
    %vm246 = vcmp.eq.s32.totalorder %v59, %v220
    %vm247 = vcmp.eq.s32.totalorder %v59, %v223
    %vm248 = vcmp.eq.s32.totalorder %v59, %v226
    %vm249 = vcmp.eq.s32.totalorder %v59, %v229
    %vm250 = vcmp.eq.s32.totalorder %v59, %v232
    %vm251 = vcmp.eq.s32.totalorder %v59, %v235
    %v252 = vsel %vm236, 1, 0
    %v253 = vsel %vm237, 1, 0
    %v254 = vsel %vm238, 1, 0
    %v255 = vsel %vm239, 1, 0
    %v256 = vsel %vm240, 1, 0
    %v257 = vsel %vm241, 1, 0
    %v258 = vsel %vm242, 1, 0
    %v259 = vsel %vm243, 1, 0
    %v260 = vsel %vm244, 1, 0
    %v261 = vsel %vm245, 1, 0
    %v262 = vsel %vm246, 1, 0
    %v263 = vsel %vm247, 1, 0
    %v264 = vsel %vm248, 1, 0
    %v265 = vsel %vm249, 1, 0
    %v266 = vsel %vm250, 1, 0
    %v267 = vsel %vm251, 1, 0
    %v268 = vcvt.s32.f32 %v252
    %v269 = vcvt.s32.f32 %v253
    %v270 = vcvt.s32.f32 %v254
    %v271 = vcvt.s32.f32 %v255
    %v272 = vcvt.s32.f32 %v256
    %v273 = vcvt.s32.f32 %v257
    %v274 = vcvt.s32.f32 %v258
    %v275 = vcvt.s32.f32 %v259
    %v276 = vcvt.s32.f32 %v260
    %v277 = vcvt.s32.f32 %v261
    %v278 = vcvt.s32.f32 %v262
    %v279 = vcvt.s32.f32 %v263
    %v280 = vcvt.s32.f32 %v264
    %v281 = vcvt.s32.f32 %v265
    %v282 = vcvt.s32.f32 %v266
    %v283 = vcvt.s32.f32 %v267
    %v284 = vld [vmem:[%s2] sm:$0xff]
    %v285 = vld [vmem:[%s2 + $0x8] sm:$0xff]
    %v286 = vld [vmem:[%s2 + $0x10] sm:$0xff]
    %v287 = vld [vmem:[%s2 + $0x18] sm:$0xff]
    %v288 = vld [vmem:[%s2 + $0x20] sm:$0xff]
    %v289 = vld [vmem:[%s2 + $0x28] sm:$0xff]
    %v290 = vld [vmem:[%s2 + $0x30] sm:$0xf]
    %v291 = vld [vmem:[%s2 + $0x38] sm:$0xf]
    %v292 = vld [vmem:[%s2 + $0x40] sm:$0xf]
    %v293 = vld [vmem:[%s3] sm:$0xff]
    %v294 = vld [vmem:[%s3 + $0x8] sm:$0xff]
    %v295 = vld [vmem:[%s3 + $0x10] sm:$0xff]
    %v296 = vld [vmem:[%s3 + $0x18] sm:$0xff]
    %v297 = vld [vmem:[%s3 + $0x20] sm:$0xff]
    %v298 = vld [vmem:[%s3 + $0x28] sm:$0xff]
    %v299 = vld [vmem:[%s3 + $0x30] sm:$0xf]
    %v300 = vld [vmem:[%s3 + $0x38] sm:$0xf]
    %v301 = vld [vmem:[%s3 + $0x40] sm:$0xf]
    %vm302 = vcmask 162816
    %v304 = vsel %vm302, %v268, 0
    %v307 = vsel %vm302, %v269, 0
    %v310 = vsel %vm302, %v270, 0
    %v313 = vsel %vm302, %v271, 0
    %v316 = vsel %vm302, %v272, 0
    %v319 = vsel %vm302, %v273, 0
    %v322 = vsel %vm302, %v274, 0
    %v325 = vsel %vm302, %v275, 0
    %v328 = vsel %vm302, %v276, 0
    %v331 = vsel %vm302, %v277, 0
    %v334 = vsel %vm302, %v278, 0
    %v337 = vsel %vm302, %v279, 0
    %v340 = vsel %vm302, %v280, 0
    %v343 = vsel %vm302, %v281, 0
    %v346 = vsel %vm302, %v282, 0
    %v349 = vsel %vm302, %v283, 0
    %vm351 = vcmask 1043456
    %v353 = vsel %vm351, %v299, 0
    %v356 = vsel %vm351, %v300, 0
    %v359 = vsel %vm351, %v301, 0
    %361 = vmatprep.subr.mxu0 %v294
    %362 = vmatpush1.msra.mxu0 %v293
    %363 = vmatprep.subr.mxu0 %v297
    %364 = vmatpush1.msra.mxu0 %v296
    %365 = vmatprep.subr.mxu0 %v356
    %366 = vmatpush1.msra.mxu0 %v353
    %367 = vmatprep.subr.mxu0 0.0
    %368 = vmatpush1.msra.mxu0 0.0
    %369 = vmatprep.subr.mxu0 0.0
    %370 = vmatpush1.msra.mxu0 0.0
    %371 = vmatprep.subr.mxu0 0.0
    %372 = vmatpush1.msra.mxu0 0.0
    %373 = vmatprep.subr.mxu0 0.0
    %374 = vmatpush1.msra.mxu0 0.0
    %375 = vmatprep.subr.mxu0 0.0
    %376 = vmatpush1.msra.mxu0 0.0
    %377 = vmatprep.subr.mxu0 0.0
    %378 = vmatpush1.msra.mxu0 0.0
    %379 = vmatprep.subr.mxu0 0.0
    %380 = vmatpush1.msra.mxu0 0.0
    %381 = vmatprep.subr.mxu0 0.0
    %382 = vmatpush1.msra.mxu0 0.0
    %383 = vmatprep.subr.mxu0 0.0
    %384 = vmatpush1.msra.mxu0 0.0
    %385 = vmatprep.subr.mxu0 0.0
    %386 = vmatpush1.msra.mxu0 0.0
    %387 = vmatprep.subr.mxu0 0.0
    %388 = vmatpush1.msra.mxu0 0.0
    %389 = vmatprep.subr.mxu0 0.0
    %390 = vmatpush1.msra.mxu0 0.0
    %391 = vmatprep.subr.mxu0 0.0
    %392 = vmatpush1.msra.mxu0 0.0
    %393 = vmatprep.subr.mxu0 0.0
    %394 = vmatpush1.msra.mxu0 0.0
    %395 = vmatprep.subr.mxu0 0.0
    %396 = vmatpush1.msra.mxu0 0.0
    %397 = vmatprep.subr.mxu0 0.0
    %398 = vmatpush1.msra.mxu0 0.0
    %399 = vmatprep.subr.mxu0 0.0
    %400 = vmatpush1.msra.mxu0 0.0
    %401 = vmatprep.subr.mxu0 0.0
    %402 = vmatpush1.msra.mxu0 0.0
    %403 = vmatprep.subr.mxu0 0.0
    %404 = vmatpush1.msra.mxu0 0.0
    %405 = vmatprep.subr.mxu0 0.0
    %406 = vmatpush1.msra.mxu0 0.0
    %407 = vmatprep.subr.mxu0 0.0
    %408 = vmatpush1.msra.mxu0 0.0
    %409 = vmatprep.subr.mxu0 0.0
    %410 = vmatpush1.msra.mxu0 0.0
    %411 = vmatprep.subr.mxu0 0.0
    %412 = vmatpush1.msra.mxu0 0.0
    %413 = vmatprep.subr.mxu0 0.0
    %414 = vmatpush1.msra.mxu0 0.0
    %415 = vmatprep.subr.mxu0 0.0
    %416 = vmatpush1.msra.mxu0 0.0
    %417 = vmatprep.subr.mxu0 0.0
    %418 = vmatpush1.msra.mxu0 0.0
    %419 = vmatprep.subr.mxu0 0.0
    %420 = vmatpush1.msra.mxu0 0.0
    %421 = vmatprep.subr.mxu0 0.0
    %422 = vmatpush1.msra.mxu0 0.0
    %423 = vmatprep.subr.mxu0 0.0
    %424 = vmatpush1.msra.mxu0 0.0
    %425 = vmatprep.mubr.f32.mxu0 0.0
    %426 = vmatmul.mubr.f32.gmra.mrb[0].mxu0 %v304
    %v427 = vpop.f32.mrb[0].mxu0
    %v428 = vadd.f32 0.0, %v427
    %v429 = vpop.f32.mrb[0].mxu0
    %v430 = vadd.f32 0.0, %v429
    %431 = vmatprep.mubr.f32.mxu0 0.0
    %432 = vmatmul.mubr.f32.gmra.mrb[0].mxu0 %v307
    %v433 = vpop.f32.mrb[0].mxu0
    %v434 = vadd.f32 0.0, %v433
    %v435 = vpop.f32.mrb[0].mxu0
    %v436 = vadd.f32 0.0, %v435
    %437 = vmatprep.mubr.f32.mxu0 0.0
    %438 = vmatmul.mubr.f32.gmra.mrb[0].mxu0 %v310
    %v439 = vpop.f32.mrb[0].mxu0
    %v440 = vadd.f32 0.0, %v439
    %v441 = vpop.f32.mrb[0].mxu0
    %v442 = vadd.f32 0.0, %v441
    %443 = vmatprep.mubr.f32.mxu0 0.0
    %444 = vmatmul.mubr.f32.gmra.mrb[0].mxu0 %v313
    %v445 = vpop.f32.mrb[0].mxu0
    %v446 = vadd.f32 0.0, %v445
    %v447 = vpop.f32.mrb[0].mxu0
    %v448 = vadd.f32 0.0, %v447
    %449 = vmatprep.mubr.f32.mxu0 0.0
    %450 = vmatmul.mubr.f32.gmra.mrb[0].mxu0 %v316
    %v451 = vpop.f32.mrb[0].mxu0
    %v452 = vadd.f32 0.0, %v451
    %v453 = vpop.f32.mrb[0].mxu0
    %v454 = vadd.f32 0.0, %v453
    %455 = vmatprep.mubr.f32.mxu0 0.0
    %456 = vmatmul.mubr.f32.gmra.mrb[0].mxu0 %v319
    %v457 = vpop.f32.mrb[0].mxu0
    %v458 = vadd.f32 0.0, %v457
    %v459 = vpop.f32.mrb[0].mxu0
    %v460 = vadd.f32 0.0, %v459
    %461 = vmatprep.mubr.f32.mxu0 0.0
    %462 = vmatmul.mubr.f32.gmra.mrb[0].mxu0 %v322
    %v463 = vpop.f32.mrb[0].mxu0
    %v464 = vadd.f32 0.0, %v463
    %v465 = vpop.f32.mrb[0].mxu0
    %v466 = vadd.f32 0.0, %v465
    %467 = vmatprep.mubr.f32.mxu0 0.0
    %468 = vmatmul.mubr.f32.gmra.mrb[0].mxu0 %v325
    %v469 = vpop.f32.mrb[0].mxu0
    %v470 = vadd.f32 0.0, %v469
    %v471 = vpop.f32.mrb[0].mxu0
    %v472 = vadd.f32 0.0, %v471
    %473 = vmatprep.mubr.f32.mxu0 0.0
    %474 = vmatmul.mubr.f32.gmra.mrb[0].mxu0 %v328
    %v475 = vpop.f32.mrb[0].mxu0
    %v476 = vadd.f32 0.0, %v475
    %v477 = vpop.f32.mrb[0].mxu0
    %v478 = vadd.f32 0.0, %v477
    %479 = vmatprep.mubr.f32.mxu0 0.0
    %480 = vmatmul.mubr.f32.gmra.mrb[0].mxu0 %v331
    %v481 = vpop.f32.mrb[0].mxu0
    %v482 = vadd.f32 0.0, %v481
    %v483 = vpop.f32.mrb[0].mxu0
    %v484 = vadd.f32 0.0, %v483
    %485 = vmatprep.mubr.f32.mxu0 0.0
    %486 = vmatmul.mubr.f32.gmra.mrb[0].mxu0 %v334
    %v487 = vpop.f32.mrb[0].mxu0
    %v488 = vadd.f32 0.0, %v487
    %v489 = vpop.f32.mrb[0].mxu0
    %v490 = vadd.f32 0.0, %v489
    %491 = vmatprep.mubr.f32.mxu0 0.0
    %492 = vmatmul.mubr.f32.gmra.mrb[0].mxu0 %v337
    %v493 = vpop.f32.mrb[0].mxu0
    %v494 = vadd.f32 0.0, %v493
    %v495 = vpop.f32.mrb[0].mxu0
    %v496 = vadd.f32 0.0, %v495
    %497 = vmatprep.mubr.f32.mxu0 0.0
    %498 = vmatmul.mubr.f32.gmra.mrb[0].mxu0 %v340
    %v499 = vpop.f32.mrb[0].mxu0
    %v500 = vadd.f32 0.0, %v499
    %v501 = vpop.f32.mrb[0].mxu0
    %v502 = vadd.f32 0.0, %v501
    %503 = vmatprep.mubr.f32.mxu0 0.0
    %504 = vmatmul.mubr.f32.gmra.mrb[0].mxu0 %v343
    %v505 = vpop.f32.mrb[0].mxu0
    %v506 = vadd.f32 0.0, %v505
    %v507 = vpop.f32.mrb[0].mxu0
    %v508 = vadd.f32 0.0, %v507
    %509 = vmatprep.mubr.f32.mxu0 0.0
    %510 = vmatmul.mubr.f32.gmra.mrb[0].mxu0 %v346
    %v511 = vpop.f32.mrb[0].mxu0
    %v512 = vadd.f32 0.0, %v511
    %v513 = vpop.f32.mrb[0].mxu0
    %v514 = vadd.f32 0.0, %v513
    %515 = vmatprep.mubr.f32.mxu0 0.0
    %516 = vmatmul.mubr.f32.gmra.mrb[0].mxu0 %v349
    %v517 = vpop.f32.mrb[0].mxu0
    %v518 = vadd.f32 0.0, %v517
    %v519 = vpop.f32.mrb[0].mxu0
    %v520 = vadd.f32 0.0, %v519
    %521 = vdwg.mxu0
    %522 = vmatprep.subr.mxu0 0.0
    %523 = vmatpush1.msra.mxu0 %v295
    %524 = vmatprep.subr.mxu0 0.0
    %525 = vmatpush1.msra.mxu0 %v298
    %526 = vmatprep.subr.mxu0 0.0
    %527 = vmatpush1.msra.mxu0 %v359
    %528 = vmatprep.subr.mxu0 0.0
    %529 = vmatpush1.msra.mxu0 0.0
    %530 = vmatprep.subr.mxu0 0.0
    %531 = vmatpush1.msra.mxu0 0.0
    %532 = vmatprep.subr.mxu0 0.0
    %533 = vmatpush1.msra.mxu0 0.0
    %534 = vmatprep.subr.mxu0 0.0
    %535 = vmatpush1.msra.mxu0 0.0
    %536 = vmatprep.subr.mxu0 0.0
    %537 = vmatpush1.msra.mxu0 0.0
    %538 = vmatprep.subr.mxu0 0.0
    %539 = vmatpush1.msra.mxu0 0.0
    %540 = vmatprep.subr.mxu0 0.0
    %541 = vmatpush1.msra.mxu0 0.0
    %542 = vmatprep.subr.mxu0 0.0
    %543 = vmatpush1.msra.mxu0 0.0
    %544 = vmatprep.subr.mxu0 0.0
    %545 = vmatpush1.msra.mxu0 0.0
    %546 = vmatprep.subr.mxu0 0.0
    %547 = vmatpush1.msra.mxu0 0.0
    %548 = vmatprep.subr.mxu0 0.0
    %549 = vmatpush1.msra.mxu0 0.0
    %550 = vmatprep.subr.mxu0 0.0
    %551 = vmatpush1.msra.mxu0 0.0
    %552 = vmatprep.subr.mxu0 0.0
    %553 = vmatpush1.msra.mxu0 0.0
    %554 = vmatprep.subr.mxu0 0.0
    %555 = vmatpush1.msra.mxu0 0.0
    %556 = vmatprep.subr.mxu0 0.0
    %557 = vmatpush1.msra.mxu0 0.0
    %558 = vmatprep.subr.mxu0 0.0
    %559 = vmatpush1.msra.mxu0 0.0
    %560 = vmatprep.subr.mxu0 0.0
    %561 = vmatpush1.msra.mxu0 0.0
    %562 = vmatprep.subr.mxu0 0.0
    %563 = vmatpush1.msra.mxu0 0.0
    %564 = vmatprep.subr.mxu0 0.0
    %565 = vmatpush1.msra.mxu0 0.0
    %566 = vmatprep.subr.mxu0 0.0
    %567 = vmatpush1.msra.mxu0 0.0
    %568 = vmatprep.subr.mxu0 0.0
    %569 = vmatpush1.msra.mxu0 0.0
    %570 = vmatprep.subr.mxu0 0.0
    %571 = vmatpush1.msra.mxu0 0.0
    %572 = vmatprep.subr.mxu0 0.0
    %573 = vmatpush1.msra.mxu0 0.0
    %574 = vmatprep.subr.mxu0 0.0
    %575 = vmatpush1.msra.mxu0 0.0
    %576 = vmatprep.subr.mxu0 0.0
    %577 = vmatpush1.msra.mxu0 0.0
    %578 = vmatprep.subr.mxu0 0.0
    %579 = vmatpush1.msra.mxu0 0.0
    %580 = vmatprep.subr.mxu0 0.0
    %581 = vmatpush1.msra.mxu0 0.0
    %582 = vmatprep.subr.mxu0 0.0
    %583 = vmatpush1.msra.mxu0 0.0
    %584 = vmatprep.subr.mxu0 0.0
    %585 = vmatpush1.msra.mxu0 0.0
    %586 = vmatprep.mubr.f32.mxu0 0.0
    %587 = vmatmul.mubr.f32.gmra.mrb[0].mxu0 %v304
    %v588 = vpop.f32.mrb[0].mxu0
    %v589 = vadd.f32 0.0, %v588
    %v590 = vpop.f32.mrb[0].mxu0
    %591 = vmatprep.mubr.f32.mxu0 0.0
    %592 = vmatmul.mubr.f32.gmra.mrb[0].mxu0 %v307
    %v593 = vpop.f32.mrb[0].mxu0
    %v594 = vadd.f32 0.0, %v593
    %v595 = vpop.f32.mrb[0].mxu0
    %596 = vmatprep.mubr.f32.mxu0 0.0
    %597 = vmatmul.mubr.f32.gmra.mrb[0].mxu0 %v310
    %v598 = vpop.f32.mrb[0].mxu0
    %v599 = vadd.f32 0.0, %v598
    %v600 = vpop.f32.mrb[0].mxu0
    %601 = vmatprep.mubr.f32.mxu0 0.0
    %602 = vmatmul.mubr.f32.gmra.mrb[0].mxu0 %v313
    %v603 = vpop.f32.mrb[0].mxu0
    %v604 = vadd.f32 0.0, %v603
    %v605 = vpop.f32.mrb[0].mxu0
    %606 = vmatprep.mubr.f32.mxu0 0.0
    %607 = vmatmul.mubr.f32.gmra.mrb[0].mxu0 %v316
    %v608 = vpop.f32.mrb[0].mxu0
    %v609 = vadd.f32 0.0, %v608
    %v610 = vpop.f32.mrb[0].mxu0
    %611 = vmatprep.mubr.f32.mxu0 0.0
    %612 = vmatmul.mubr.f32.gmra.mrb[0].mxu0 %v319
    %v613 = vpop.f32.mrb[0].mxu0
    %v614 = vadd.f32 0.0, %v613
    %v615 = vpop.f32.mrb[0].mxu0
    %616 = vmatprep.mubr.f32.mxu0 0.0
    %617 = vmatmul.mubr.f32.gmra.mrb[0].mxu0 %v322
    %v618 = vpop.f32.mrb[0].mxu0
    %v619 = vadd.f32 0.0, %v618
    %v620 = vpop.f32.mrb[0].mxu0
    %621 = vmatprep.mubr.f32.mxu0 0.0
    %622 = vmatmul.mubr.f32.gmra.mrb[0].mxu0 %v325
    %v623 = vpop.f32.mrb[0].mxu0
    %v624 = vadd.f32 0.0, %v623
    %v625 = vpop.f32.mrb[0].mxu0
    %626 = vmatprep.mubr.f32.mxu0 0.0
    %627 = vmatmul.mubr.f32.gmra.mrb[0].mxu0 %v328
    %v628 = vpop.f32.mrb[0].mxu0
    %v629 = vadd.f32 0.0, %v628
    %v630 = vpop.f32.mrb[0].mxu0
    %631 = vmatprep.mubr.f32.mxu0 0.0
    %632 = vmatmul.mubr.f32.gmra.mrb[0].mxu0 %v331
    %v633 = vpop.f32.mrb[0].mxu0
    %v634 = vadd.f32 0.0, %v633
    %v635 = vpop.f32.mrb[0].mxu0
    %636 = vmatprep.mubr.f32.mxu0 0.0
    %637 = vmatmul.mubr.f32.gmra.mrb[0].mxu0 %v334
    %v638 = vpop.f32.mrb[0].mxu0
    %v639 = vadd.f32 0.0, %v638
    %v640 = vpop.f32.mrb[0].mxu0
    %641 = vmatprep.mubr.f32.mxu0 0.0
    %642 = vmatmul.mubr.f32.gmra.mrb[0].mxu0 %v337
    %v643 = vpop.f32.mrb[0].mxu0
    %v644 = vadd.f32 0.0, %v643
    %v645 = vpop.f32.mrb[0].mxu0
    %646 = vmatprep.mubr.f32.mxu0 0.0
    %647 = vmatmul.mubr.f32.gmra.mrb[0].mxu0 %v340
    %v648 = vpop.f32.mrb[0].mxu0
    %v649 = vadd.f32 0.0, %v648
    %v650 = vpop.f32.mrb[0].mxu0
    %651 = vmatprep.mubr.f32.mxu0 0.0
    %652 = vmatmul.mubr.f32.gmra.mrb[0].mxu0 %v343
    %v653 = vpop.f32.mrb[0].mxu0
    %v654 = vadd.f32 0.0, %v653
    %v655 = vpop.f32.mrb[0].mxu0
    %656 = vmatprep.mubr.f32.mxu0 0.0
    %657 = vmatmul.mubr.f32.gmra.mrb[0].mxu0 %v346
    %v658 = vpop.f32.mrb[0].mxu0
    %v659 = vadd.f32 0.0, %v658
    %v660 = vpop.f32.mrb[0].mxu0
    %661 = vmatprep.mubr.f32.mxu0 0.0
    %662 = vmatmul.mubr.f32.gmra.mrb[0].mxu0 %v349
    %v663 = vpop.f32.mrb[0].mxu0
    %v664 = vadd.f32 0.0, %v663
    %v665 = vpop.f32.mrb[0].mxu0
    %666 = vdwg.mxu0
    %v668 = vsel %vm302, %v156, 0
    %v671 = vsel %vm302, %v157, 0
    %v674 = vsel %vm302, %v158, 0
    %v677 = vsel %vm302, %v159, 0
    %v680 = vsel %vm302, %v160, 0
    %v683 = vsel %vm302, %v161, 0
    %v686 = vsel %vm302, %v162, 0
    %v689 = vsel %vm302, %v163, 0
    %v692 = vsel %vm302, %v164, 0
    %v695 = vsel %vm302, %v165, 0
    %v698 = vsel %vm302, %v166, 0
    %v701 = vsel %vm302, %v167, 0
    %v704 = vsel %vm302, %v168, 0
    %v707 = vsel %vm302, %v169, 0
    %v710 = vsel %vm302, %v170, 0
    %v713 = vsel %vm302, %v171, 0
    %v716 = vsel %vm351, %v290, 0
    %v719 = vsel %vm351, %v291, 0
    %v722 = vsel %vm351, %v292, 0
    %724 = vmatprep.subr.mxu0 %v285
    %725 = vmatpush1.msra.mxu0 %v284
    %726 = vmatprep.subr.mxu0 %v288
    %727 = vmatpush1.msra.mxu0 %v287
    %728 = vmatprep.subr.mxu0 %v719
    %729 = vmatpush1.msra.mxu0 %v716
    %730 = vmatprep.subr.mxu0 0.0
    %731 = vmatpush1.msra.mxu0 0.0
    %732 = vmatprep.subr.mxu0 0.0
    %733 = vmatpush1.msra.mxu0 0.0
    %734 = vmatprep.subr.mxu0 0.0
    %735 = vmatpush1.msra.mxu0 0.0
    %736 = vmatprep.subr.mxu0 0.0
    %737 = vmatpush1.msra.mxu0 0.0
    %738 = vmatprep.subr.mxu0 0.0
    %739 = vmatpush1.msra.mxu0 0.0
    %740 = vmatprep.subr.mxu0 0.0
    %741 = vmatpush1.msra.mxu0 0.0
    %742 = vmatprep.subr.mxu0 0.0
    %743 = vmatpush1.msra.mxu0 0.0
    %744 = vmatprep.subr.mxu0 0.0
    %745 = vmatpush1.msra.mxu0 0.0
    %746 = vmatprep.subr.mxu0 0.0
    %747 = vmatpush1.msra.mxu0 0.0
    %748 = vmatprep.subr.mxu0 0.0
    %749 = vmatpush1.msra.mxu0 0.0
    %750 = vmatprep.subr.mxu0 0.0
    %751 = vmatpush1.msra.mxu0 0.0
    %752 = vmatprep.subr.mxu0 0.0
    %753 = vmatpush1.msra.mxu0 0.0
    %754 = vmatprep.subr.mxu0 0.0
    %755 = vmatpush1.msra.mxu0 0.0
    %756 = vmatprep.subr.mxu0 0.0
    %757 = vmatpush1.msra.mxu0 0.0
    %758 = vmatprep.subr.mxu0 0.0
    %759 = vmatpush1.msra.mxu0 0.0
    %760 = vmatprep.subr.mxu0 0.0
    %761 = vmatpush1.msra.mxu0 0.0
    %762 = vmatprep.subr.mxu0 0.0
    %763 = vmatpush1.msra.mxu0 0.0
    %764 = vmatprep.subr.mxu0 0.0
    %765 = vmatpush1.msra.mxu0 0.0
    %766 = vmatprep.subr.mxu0 0.0
    %767 = vmatpush1.msra.mxu0 0.0
    %768 = vmatprep.subr.mxu0 0.0
    %769 = vmatpush1.msra.mxu0 0.0
    %770 = vmatprep.subr.mxu0 0.0
    %771 = vmatpush1.msra.mxu0 0.0
    %772 = vmatprep.subr.mxu0 0.0
    %773 = vmatpush1.msra.mxu0 0.0
    %774 = vmatprep.subr.mxu0 0.0
    %775 = vmatpush1.msra.mxu0 0.0
    %776 = vmatprep.subr.mxu0 0.0
    %777 = vmatpush1.msra.mxu0 0.0
    %778 = vmatprep.subr.mxu0 0.0
    %779 = vmatpush1.msra.mxu0 0.0
    %780 = vmatprep.subr.mxu0 0.0
    %781 = vmatpush1.msra.mxu0 0.0
    %782 = vmatprep.subr.mxu0 0.0
    %783 = vmatpush1.msra.mxu0 0.0
    %784 = vmatprep.subr.mxu0 0.0
    %785 = vmatpush1.msra.mxu0 0.0
    %786 = vmatprep.subr.mxu0 0.0
    %787 = vmatpush1.msra.mxu0 0.0
    %788 = vmatprep.mubr.f32.mxu0 0.0
    %789 = vmatmul.mubr.f32.gmra.mrb[0].mxu0 %v668
    %v790 = vpop.f32.mrb[0].mxu0
    %v791 = vadd.f32 %v428, %v790
    %v792 = vpop.f32.mrb[0].mxu0
    %v793 = vadd.f32 %v430, %v792
    %794 = vmatprep.mubr.f32.mxu0 0.0
    %795 = vmatmul.mubr.f32.gmra.mrb[0].mxu0 %v671
    %v796 = vpop.f32.mrb[0].mxu0
    %v797 = vadd.f32 %v434, %v796
    %v798 = vpop.f32.mrb[0].mxu0
    %v799 = vadd.f32 %v436, %v798
    %800 = vmatprep.mubr.f32.mxu0 0.0
    %801 = vmatmul.mubr.f32.gmra.mrb[0].mxu0 %v674
    %v802 = vpop.f32.mrb[0].mxu0
    %v803 = vadd.f32 %v440, %v802
    %v804 = vpop.f32.mrb[0].mxu0
    %v805 = vadd.f32 %v442, %v804
    %806 = vmatprep.mubr.f32.mxu0 0.0
    %807 = vmatmul.mubr.f32.gmra.mrb[0].mxu0 %v677
    %v808 = vpop.f32.mrb[0].mxu0
    %v809 = vadd.f32 %v446, %v808
    %v810 = vpop.f32.mrb[0].mxu0
    %v811 = vadd.f32 %v448, %v810
    %812 = vmatprep.mubr.f32.mxu0 0.0
    %813 = vmatmul.mubr.f32.gmra.mrb[0].mxu0 %v680
    %v814 = vpop.f32.mrb[0].mxu0
    %v815 = vadd.f32 %v452, %v814
    %v816 = vpop.f32.mrb[0].mxu0
    %v817 = vadd.f32 %v454, %v816
    %818 = vmatprep.mubr.f32.mxu0 0.0
    %819 = vmatmul.mubr.f32.gmra.mrb[0].mxu0 %v683
    %v820 = vpop.f32.mrb[0].mxu0
    %v821 = vadd.f32 %v458, %v820
    %v822 = vpop.f32.mrb[0].mxu0
    %v823 = vadd.f32 %v460, %v822
    %824 = vmatprep.mubr.f32.mxu0 0.0
    %825 = vmatmul.mubr.f32.gmra.mrb[0].mxu0 %v686
    %v826 = vpop.f32.mrb[0].mxu0
    %v827 = vadd.f32 %v464, %v826
    %v828 = vpop.f32.mrb[0].mxu0
    %v829 = vadd.f32 %v466, %v828
    %830 = vmatprep.mubr.f32.mxu0 0.0
    %831 = vmatmul.mubr.f32.gmra.mrb[0].mxu0 %v689
    %v832 = vpop.f32.mrb[0].mxu0
    %v833 = vadd.f32 %v470, %v832
    %v834 = vpop.f32.mrb[0].mxu0
    %v835 = vadd.f32 %v472, %v834
    %836 = vmatprep.mubr.f32.mxu0 0.0
    %837 = vmatmul.mubr.f32.gmra.mrb[0].mxu0 %v692
    %v838 = vpop.f32.mrb[0].mxu0
    %v839 = vadd.f32 %v476, %v838
    %v840 = vpop.f32.mrb[0].mxu0
    %v841 = vadd.f32 %v478, %v840
    %842 = vmatprep.mubr.f32.mxu0 0.0
    %843 = vmatmul.mubr.f32.gmra.mrb[0].mxu0 %v695
    %v844 = vpop.f32.mrb[0].mxu0
    %v845 = vadd.f32 %v482, %v844
    %v846 = vpop.f32.mrb[0].mxu0
    %v847 = vadd.f32 %v484, %v846
    %848 = vmatprep.mubr.f32.mxu0 0.0
    %849 = vmatmul.mubr.f32.gmra.mrb[0].mxu0 %v698
    %v850 = vpop.f32.mrb[0].mxu0
    %v851 = vadd.f32 %v488, %v850
    %v852 = vpop.f32.mrb[0].mxu0
    %v853 = vadd.f32 %v490, %v852
    %854 = vmatprep.mubr.f32.mxu0 0.0
    %855 = vmatmul.mubr.f32.gmra.mrb[0].mxu0 %v701
    %v856 = vpop.f32.mrb[0].mxu0
    %v857 = vadd.f32 %v494, %v856
    %v858 = vpop.f32.mrb[0].mxu0
    %v859 = vadd.f32 %v496, %v858
    %860 = vmatprep.mubr.f32.mxu0 0.0
    %861 = vmatmul.mubr.f32.gmra.mrb[0].mxu0 %v704
    %v862 = vpop.f32.mrb[0].mxu0
    %v863 = vadd.f32 %v500, %v862
    %v864 = vpop.f32.mrb[0].mxu0
    %v865 = vadd.f32 %v502, %v864
    %866 = vmatprep.mubr.f32.mxu0 0.0
    %867 = vmatmul.mubr.f32.gmra.mrb[0].mxu0 %v707
    %v868 = vpop.f32.mrb[0].mxu0
    %v869 = vadd.f32 %v506, %v868
    %v870 = vpop.f32.mrb[0].mxu0
    %v871 = vadd.f32 %v508, %v870
    %872 = vmatprep.mubr.f32.mxu0 0.0
    %873 = vmatmul.mubr.f32.gmra.mrb[0].mxu0 %v710
    %v874 = vpop.f32.mrb[0].mxu0
    %v875 = vadd.f32 %v512, %v874
    %v876 = vpop.f32.mrb[0].mxu0
    %v877 = vadd.f32 %v514, %v876
    %878 = vmatprep.mubr.f32.mxu0 0.0
    %879 = vmatmul.mubr.f32.gmra.mrb[0].mxu0 %v713
    %v880 = vpop.f32.mrb[0].mxu0
    %v881 = vadd.f32 %v518, %v880
    %v882 = vpop.f32.mrb[0].mxu0
    %v883 = vadd.f32 %v520, %v882
    %884 = vdwg.mxu0
    %885 = vmatprep.subr.mxu0 0.0
    %886 = vmatpush1.msra.mxu0 %v286
    %887 = vmatprep.subr.mxu0 0.0
    %888 = vmatpush1.msra.mxu0 %v289
    %889 = vmatprep.subr.mxu0 0.0
    %890 = vmatpush1.msra.mxu0 %v722
    %891 = vmatprep.subr.mxu0 0.0
    %892 = vmatpush1.msra.mxu0 0.0
    %893 = vmatprep.subr.mxu0 0.0
    %894 = vmatpush1.msra.mxu0 0.0
    %895 = vmatprep.subr.mxu0 0.0
    %896 = vmatpush1.msra.mxu0 0.0
    %897 = vmatprep.subr.mxu0 0.0
    %898 = vmatpush1.msra.mxu0 0.0
    %899 = vmatprep.subr.mxu0 0.0
    %900 = vmatpush1.msra.mxu0 0.0
    %901 = vmatprep.subr.mxu0 0.0
    %902 = vmatpush1.msra.mxu0 0.0
    %903 = vmatprep.subr.mxu0 0.0
    %904 = vmatpush1.msra.mxu0 0.0
    %905 = vmatprep.subr.mxu0 0.0
    %906 = vmatpush1.msra.mxu0 0.0
    %907 = vmatprep.subr.mxu0 0.0
    %908 = vmatpush1.msra.mxu0 0.0
    %909 = vmatprep.subr.mxu0 0.0
    %910 = vmatpush1.msra.mxu0 0.0
    %911 = vmatprep.subr.mxu0 0.0
    %912 = vmatpush1.msra.mxu0 0.0
    %913 = vmatprep.subr.mxu0 0.0
    %914 = vmatpush1.msra.mxu0 0.0
    %915 = vmatprep.subr.mxu0 0.0
    %916 = vmatpush1.msra.mxu0 0.0
    %917 = vmatprep.subr.mxu0 0.0
    %918 = vmatpush1.msra.mxu0 0.0
    %919 = vmatprep.subr.mxu0 0.0
    %920 = vmatpush1.msra.mxu0 0.0
    %921 = vmatprep.subr.mxu0 0.0
    %922 = vmatpush1.msra.mxu0 0.0
    %923 = vmatprep.subr.mxu0 0.0
    %924 = vmatpush1.msra.mxu0 0.0
    %925 = vmatprep.subr.mxu0 0.0
    %926 = vmatpush1.msra.mxu0 0.0
    %927 = vmatprep.subr.mxu0 0.0
    %928 = vmatpush1.msra.mxu0 0.0
    %929 = vmatprep.subr.mxu0 0.0
    %930 = vmatpush1.msra.mxu0 0.0
    %931 = vmatprep.subr.mxu0 0.0
    %932 = vmatpush1.msra.mxu0 0.0
    %933 = vmatprep.subr.mxu0 0.0
    %934 = vmatpush1.msra.mxu0 0.0
    %935 = vmatprep.subr.mxu0 0.0
    %936 = vmatpush1.msra.mxu0 0.0
    %937 = vmatprep.subr.mxu0 0.0
    %938 = vmatpush1.msra.mxu0 0.0
    %939 = vmatprep.subr.mxu0 0.0
    %940 = vmatpush1.msra.mxu0 0.0
    %941 = vmatprep.subr.mxu0 0.0
    %942 = vmatpush1.msra.mxu0 0.0
    %943 = vmatprep.subr.mxu0 0.0
    %944 = vmatpush1.msra.mxu0 0.0
    %945 = vmatprep.subr.mxu0 0.0
    %946 = vmatpush1.msra.mxu0 0.0
    %947 = vmatprep.subr.mxu0 0.0
    %948 = vmatpush1.msra.mxu0 0.0
    %949 = vmatprep.mubr.f32.mxu0 0.0
    %950 = vmatmul.mubr.f32.gmra.mrb[0].mxu0 %v668
    %v951 = vpop.f32.mrb[0].mxu0
    %v952 = vadd.f32 %v589, %v951
    %v953 = vpop.f32.mrb[0].mxu0
    %954 = vmatprep.mubr.f32.mxu0 0.0
    %955 = vmatmul.mubr.f32.gmra.mrb[0].mxu0 %v671
    %v956 = vpop.f32.mrb[0].mxu0
    %v957 = vadd.f32 %v594, %v956
    %v958 = vpop.f32.mrb[0].mxu0
    %959 = vmatprep.mubr.f32.mxu0 0.0
    %960 = vmatmul.mubr.f32.gmra.mrb[0].mxu0 %v674
    %v961 = vpop.f32.mrb[0].mxu0
    %v962 = vadd.f32 %v599, %v961
    %v963 = vpop.f32.mrb[0].mxu0
    %964 = vmatprep.mubr.f32.mxu0 0.0
    %965 = vmatmul.mubr.f32.gmra.mrb[0].mxu0 %v677
    %v966 = vpop.f32.mrb[0].mxu0
    %v967 = vadd.f32 %v604, %v966
    %v968 = vpop.f32.mrb[0].mxu0
    %969 = vmatprep.mubr.f32.mxu0 0.0
    %970 = vmatmul.mubr.f32.gmra.mrb[0].mxu0 %v680
    %v971 = vpop.f32.mrb[0].mxu0
    %v972 = vadd.f32 %v609, %v971
    %v973 = vpop.f32.mrb[0].mxu0
    %974 = vmatprep.mubr.f32.mxu0 0.0
    %975 = vmatmul.mubr.f32.gmra.mrb[0].mxu0 %v683
    %v976 = vpop.f32.mrb[0].mxu0
    %v977 = vadd.f32 %v614, %v976
    %v978 = vpop.f32.mrb[0].mxu0
    %979 = vmatprep.mubr.f32.mxu0 0.0
    %980 = vmatmul.mubr.f32.gmra.mrb[0].mxu0 %v686
    %v981 = vpop.f32.mrb[0].mxu0
    %v982 = vadd.f32 %v619, %v981
    %v983 = vpop.f32.mrb[0].mxu0
    %984 = vmatprep.mubr.f32.mxu0 0.0
    %985 = vmatmul.mubr.f32.gmra.mrb[0].mxu0 %v689
    %v986 = vpop.f32.mrb[0].mxu0
    %v987 = vadd.f32 %v624, %v986
    %v988 = vpop.f32.mrb[0].mxu0
    %989 = vmatprep.mubr.f32.mxu0 0.0
    %990 = vmatmul.mubr.f32.gmra.mrb[0].mxu0 %v692
    %v991 = vpop.f32.mrb[0].mxu0
    %v992 = vadd.f32 %v629, %v991
    %v993 = vpop.f32.mrb[0].mxu0
    %994 = vmatprep.mubr.f32.mxu0 0.0
    %995 = vmatmul.mubr.f32.gmra.mrb[0].mxu0 %v695
    %v996 = vpop.f32.mrb[0].mxu0
    %v997 = vadd.f32 %v634, %v996
    %v998 = vpop.f32.mrb[0].mxu0
    %999 = vmatprep.mubr.f32.mxu0 0.0
    %1000 = vmatmul.mubr.f32.gmra.mrb[0].mxu0 %v698
    %v1001 = vpop.f32.mrb[0].mxu0
    %v1002 = vadd.f32 %v639, %v1001
    %v1003 = vpop.f32.mrb[0].mxu0
    %1004 = vmatprep.mubr.f32.mxu0 0.0
    %1005 = vmatmul.mubr.f32.gmra.mrb[0].mxu0 %v701
    %v1006 = vpop.f32.mrb[0].mxu0
    %v1007 = vadd.f32 %v644, %v1006
    %v1008 = vpop.f32.mrb[0].mxu0
    %1009 = vmatprep.mubr.f32.mxu0 0.0
    %1010 = vmatmul.mubr.f32.gmra.mrb[0].mxu0 %v704
    %v1011 = vpop.f32.mrb[0].mxu0
    %v1012 = vadd.f32 %v649, %v1011
    %v1013 = vpop.f32.mrb[0].mxu0
    %1014 = vmatprep.mubr.f32.mxu0 0.0
    %1015 = vmatmul.mubr.f32.gmra.mrb[0].mxu0 %v707
    %v1016 = vpop.f32.mrb[0].mxu0
    %v1017 = vadd.f32 %v654, %v1016
    %v1018 = vpop.f32.mrb[0].mxu0
    %1019 = vmatprep.mubr.f32.mxu0 0.0
    %1020 = vmatmul.mubr.f32.gmra.mrb[0].mxu0 %v710
    %v1021 = vpop.f32.mrb[0].mxu0
    %v1022 = vadd.f32 %v659, %v1021
    %v1023 = vpop.f32.mrb[0].mxu0
    %1024 = vmatprep.mubr.f32.mxu0 0.0
    %1025 = vmatmul.mubr.f32.gmra.mrb[0].mxu0 %v713
    %v1026 = vpop.f32.mrb[0].mxu0
    %v1027 = vadd.f32 %v664, %v1026
    %v1028 = vpop.f32.mrb[0].mxu0
    %1029 = vdwg.mxu0
    %1030 = vst [vmem:[#allocation2] sm:$0xff] %v791
    %1031 = vst [vmem:[#allocation2 + $0x8] sm:$0xff] %v793
    %1032 = vst [vmem:[#allocation2 + $0x10] sm:$0xff] %v952
    %1033 = vst [vmem:[#allocation2 + $0x18] sm:$0xff] %v797
    %1034 = vst [vmem:[#allocation2 + $0x20] sm:$0xff] %v799
    %1035 = vst [vmem:[#allocation2 + $0x28] sm:$0xff] %v957
    %1036 = vst [vmem:[#allocation2 + $0x30] sm:$0xff] %v803
    %1037 = vst [vmem:[#allocation2 + $0x38] sm:$0xff] %v805
    %1038 = vst [vmem:[#allocation2 + $0x40] sm:$0xff] %v962
    %1039 = vst [vmem:[#allocation2 + $0x48] sm:$0xff] %v809
    %1040 = vst [vmem:[#allocation2 + $0x50] sm:$0xff] %v811
    %1041 = vst [vmem:[#allocation2 + $0x58] sm:$0xff] %v967
    %1042 = vst [vmem:[#allocation2 + $0x60] sm:$0xff] %v815
    %1043 = vst [vmem:[#allocation2 + $0x68] sm:$0xff] %v817
    %1044 = vst [vmem:[#allocation2 + $0x70] sm:$0xff] %v972
    %1045 = vst [vmem:[#allocation2 + $0x78] sm:$0xff] %v821
    %1046 = vst [vmem:[#allocation2 + $0x80] sm:$0xff] %v823
    %1047 = vst [vmem:[#allocation2 + $0x88] sm:$0xff] %v977
    %1048 = vst [vmem:[#allocation2 + $0x90] sm:$0xff] %v827
    %1049 = vst [vmem:[#allocation2 + $0x98] sm:$0xff] %v829
    %1050 = vst [vmem:[#allocation2 + $0xa0] sm:$0xff] %v982
    %1051 = vst [vmem:[#allocation2 + $0xa8] sm:$0xff] %v833
    %1052 = vst [vmem:[#allocation2 + $0xb0] sm:$0xff] %v835
    %1053 = vst [vmem:[#allocation2 + $0xb8] sm:$0xff] %v987
    %1054 = vst [vmem:[#allocation2 + $0xc0] sm:$0xff] %v839
    %1055 = vst [vmem:[#allocation2 + $0xc8] sm:$0xff] %v841
    %1056 = vst [vmem:[#allocation2 + $0xd0] sm:$0xff] %v992
    %1057 = vst [vmem:[#allocation2 + $0xd8] sm:$0xff] %v845
    %1058 = vst [vmem:[#allocation2 + $0xe0] sm:$0xff] %v847
    %1059 = vst [vmem:[#allocation2 + $0xe8] sm:$0xff] %v997
    %1060 = vst [vmem:[#allocation2 + $0xf0] sm:$0xff] %v851
    %1061 = vst [vmem:[#allocation2 + $0xf8] sm:$0xff] %v853
    %1062 = vst [vmem:[#allocation2 + $0x100] sm:$0xff] %v1002
    %1063 = vst [vmem:[#allocation2 + $0x108] sm:$0xff] %v857
    %1064 = vst [vmem:[#allocation2 + $0x110] sm:$0xff] %v859
    %1065 = vst [vmem:[#allocation2 + $0x118] sm:$0xff] %v1007
    %1066 = vst [vmem:[#allocation2 + $0x120] sm:$0xff] %v863
    %1067 = vst [vmem:[#allocation2 + $0x128] sm:$0xff] %v865
    %1068 = vst [vmem:[#allocation2 + $0x130] sm:$0xff] %v1012
    %1069 = vst [vmem:[#allocation2 + $0x138] sm:$0xff] %v869
    %1070 = vst [vmem:[#allocation2 + $0x140] sm:$0xff] %v871
    %1071 = vst [vmem:[#allocation2 + $0x148] sm:$0xff] %v1017
    %1072 = vst [vmem:[#allocation2 + $0x150] sm:$0xff] %v875
    %1073 = vst [vmem:[#allocation2 + $0x158] sm:$0xff] %v877
    %1074 = vst [vmem:[#allocation2 + $0x160] sm:$0xff] %v1022
    %1075 = vst [vmem:[#allocation2 + $0x168] sm:$0xff] %v881
    %1076 = vst [vmem:[#allocation2 + $0x170] sm:$0xff] %v883
    %1077 = vst [vmem:[#allocation2 + $0x178] sm:$0xff] %v1027
    %v1078 = vld [vmem:[#allocation4] sm:$0xff]
    %v1079 = vld [vmem:[#allocation4 + $0x8] sm:$0xff]
    %v1080 = vld [vmem:[#allocation4 + $0x10] sm:$0xff]
    %v1081 = vld [vmem:[#allocation4 + $0x18] sm:$0xff]
    %v1082 = vld [vmem:[#allocation4 + $0x20] sm:$0xff]
    %v1083 = vld [vmem:[#allocation4 + $0x28] sm:$0xff]
    %v1084 = vld [vmem:[#allocation4 + $0x30] sm:$0xff]
    %v1085 = vld [vmem:[#allocation4 + $0x38] sm:$0xff]
    %v1086 = vld [vmem:[#allocation4 + $0x40] sm:$0xff]
    %v1087 = vld [vmem:[#allocation4 + $0x48] sm:$0xff]
    %v1088 = vld [vmem:[#allocation4 + $0x50] sm:$0xff]
    %v1089 = vld [vmem:[#allocation4 + $0x58] sm:$0xff]
    %v1090 = vld [vmem:[#allocation4 + $0x60] sm:$0xff]
    %v1091 = vld [vmem:[#allocation4 + $0x68] sm:$0xff]
    %v1092 = vld [vmem:[#allocation4 + $0x70] sm:$0xff]
    %v1093 = vld [vmem:[#allocation4 + $0x78] sm:$0xff]
    %v1094 = vld [vmem:[#allocation4 + $0x80] sm:$0xff]
    %v1095 = vld [vmem:[#allocation4 + $0x88] sm:$0xff]
    %v1096 = vld [vmem:[#allocation4 + $0x90] sm:$0xff]
    %v1097 = vld [vmem:[#allocation4 + $0x98] sm:$0xff]
    %v1098 = vld [vmem:[#allocation4 + $0xa0] sm:$0xff]
    %v1099 = vld [vmem:[#allocation4 + $0xa8] sm:$0xff]
    %v1100 = vld [vmem:[#allocation4 + $0xb0] sm:$0xff]
    %v1101 = vld [vmem:[#allocation4 + $0xb8] sm:$0xff]
    %v1102 = vld [vmem:[#allocation4 + $0xc0] sm:$0xff]
    %v1103 = vld [vmem:[#allocation4 + $0xc8] sm:$0xff]
    %v1104 = vld [vmem:[#allocation4 + $0xd0] sm:$0xff]
    %v1105 = vld [vmem:[#allocation4 + $0xd8] sm:$0xff]
    %v1106 = vld [vmem:[#allocation4 + $0xe0] sm:$0xff]
    %v1107 = vld [vmem:[#allocation4 + $0xe8] sm:$0xff]
    %v1108 = vld [vmem:[#allocation4 + $0xf0] sm:$0xff]
    %v1109 = vld [vmem:[#allocation4 + $0xf8] sm:$0xff]
    %v1110 = vld [vmem:[#allocation4 + $0x100] sm:$0xff]
    %v1111 = vld [vmem:[#allocation4 + $0x108] sm:$0xff]
    %v1112 = vld [vmem:[#allocation4 + $0x110] sm:$0xff]
    %v1113 = vld [vmem:[#allocation4 + $0x118] sm:$0xff]
    %v1114 = vld [vmem:[#allocation4 + $0x120] sm:$0xff]
    %v1115 = vld [vmem:[#allocation4 + $0x128] sm:$0xff]
    %v1116 = vld [vmem:[#allocation4 + $0x130] sm:$0xff]
    %v1117 = vld [vmem:[#allocation4 + $0x138] sm:$0xff]
    %v1118 = vld [vmem:[#allocation4 + $0x140] sm:$0xff]
    %v1119 = vld [vmem:[#allocation4 + $0x148] sm:$0xff]
    %v1120 = vld [vmem:[#allocation4 + $0x150] sm:$0xff]
    %v1121 = vld [vmem:[#allocation4 + $0x158] sm:$0xff]
    %v1122 = vld [vmem:[#allocation4 + $0x160] sm:$0xff]
    %v1123 = vld [vmem:[#allocation4 + $0x168] sm:$0xff]
    %v1124 = vld [vmem:[#allocation4 + $0x170] sm:$0xff]
    %v1125 = vld [vmem:[#allocation4 + $0x178] sm:$0xff]
    %v1126 = vld [vmem:[%s5] sm:$0x1]
    %v1127 = vld [vmem:[#allocation2] sm:$0xff]
    %v1128 = vld [vmem:[#allocation2 + $0x8] sm:$0xff]
    %v1129 = vld [vmem:[#allocation2 + $0x10] sm:$0xff]
    %v1130 = vld [vmem:[#allocation2 + $0x18] sm:$0xff]
    %v1131 = vld [vmem:[#allocation2 + $0x20] sm:$0xff]
    %v1132 = vld [vmem:[#allocation2 + $0x28] sm:$0xff]
    %1133 = vmatprep.subr.mxu0 %v1079
    %1134 = vmatpush1.msra.mxu0 %v1078
    %1135 = vmatprep.subr.mxu0 %v1082
    %1136 = vmatpush1.msra.mxu0 %v1081
    %1137 = vmatprep.subr.mxu0 %v1085
    %1138 = vmatpush1.msra.mxu0 %v1084
    %1139 = vmatprep.subr.mxu0 %v1088
    %1140 = vmatpush1.msra.mxu0 %v1087
    %1141 = vmatprep.subr.mxu0 %v1091
    %1142 = vmatpush1.msra.mxu0 %v1090
    %1143 = vmatprep.subr.mxu0 %v1094
    %1144 = vmatpush1.msra.mxu0 %v1093
    %1145 = vmatprep.subr.mxu0 %v1097
    %1146 = vmatpush1.msra.mxu0 %v1096
    %1147 = vmatprep.subr.mxu0 %v1100
    %1148 = vmatpush1.msra.mxu0 %v1099
    %1149 = vmatprep.subr.mxu0 %v1103
    %1150 = vmatpush1.msra.mxu0 %v1102
    %1151 = vmatprep.subr.mxu0 %v1106
    %1152 = vmatpush1.msra.mxu0 %v1105
    %1153 = vmatprep.subr.mxu0 %v1109
    %1154 = vmatpush1.msra.mxu0 %v1108
    %1155 = vmatprep.subr.mxu0 %v1112
    %1156 = vmatpush1.msra.mxu0 %v1111
    %1157 = vmatprep.subr.mxu0 %v1115
    %1158 = vmatpush1.msra.mxu0 %v1114
    %1159 = vmatprep.subr.mxu0 %v1118
    %1160 = vmatpush1.msra.mxu0 %v1117
    %1161 = vmatprep.subr.mxu0 %v1121
    %1162 = vmatpush1.msra.mxu0 %v1120
    %1163 = vmatprep.subr.mxu0 %v1124
    %1164 = vmatpush1.msra.mxu0 %v1123
    %1165 = vmatprep.subr.mxu0 0.0
    %1166 = vmatpush1.msra.mxu0 0.0
    %1167 = vmatprep.subr.mxu0 0.0
    %1168 = vmatpush1.msra.mxu0 0.0
    %1169 = vmatprep.subr.mxu0 0.0
    %1170 = vmatpush1.msra.mxu0 0.0
    %1171 = vmatprep.subr.mxu0 0.0
    %1172 = vmatpush1.msra.mxu0 0.0
    %1173 = vmatprep.subr.mxu0 0.0
    %1174 = vmatpush1.msra.mxu0 0.0
    %1175 = vmatprep.subr.mxu0 0.0
    %1176 = vmatpush1.msra.mxu0 0.0
    %1177 = vmatprep.subr.mxu0 0.0
    %1178 = vmatpush1.msra.mxu0 0.0
    %1179 = vmatprep.subr.mxu0 0.0
    %1180 = vmatpush1.msra.mxu0 0.0
    %1181 = vmatprep.subr.mxu0 0.0
    %1182 = vmatpush1.msra.mxu0 0.0
    %1183 = vmatprep.subr.mxu0 0.0
    %1184 = vmatpush1.msra.mxu0 0.0
    %1185 = vmatprep.subr.mxu0 0.0
    %1186 = vmatpush1.msra.mxu0 0.0
    %1187 = vmatprep.subr.mxu0 0.0
    %1188 = vmatpush1.msra.mxu0 0.0
    %1189 = vmatprep.subr.mxu0 0.0
    %1190 = vmatpush1.msra.mxu0 0.0
    %1191 = vmatprep.subr.mxu0 0.0
    %1192 = vmatpush1.msra.mxu0 0.0
    %1193 = vmatprep.subr.mxu0 0.0
    %1194 = vmatpush1.msra.mxu0 0.0
    %1195 = vmatprep.subr.mxu0 0.0
    %1196 = vmatpush1.msra.mxu0 0.0
    %1197 = vmatprep.mubr.f32.mxu0 0.0
    %1198 = vmatmul.mubr.f32.gmra.mrb[0].mxu0 0.0
    %v1199 = vpop.f32.mrb[0].mxu0
    %v1200 = vadd.f32 0.0, %v1199
    %v1201 = vpop.f32.mrb[0].mxu0
    %v1202 = vadd.f32 0.0, %v1201
    %1203 = vmatprep.mubr.f32.mxu0 0.0
    %1204 = vmatmul.mubr.f32.gmra.mrb[0].mxu0 0.0
    %v1205 = vpop.f32.mrb[0].mxu0
    %v1206 = vadd.f32 0.0, %v1205
    %v1207 = vpop.f32.mrb[0].mxu0
    %v1208 = vadd.f32 0.0, %v1207
    %1209 = vdwg.mxu0
    %1210 = vmatprep.subr.mxu0 0.0
    %1211 = vmatpush1.msra.mxu0 %v1080
    %1212 = vmatprep.subr.mxu0 0.0
    %1213 = vmatpush1.msra.mxu0 %v1083
    %1214 = vmatprep.subr.mxu0 0.0
    %1215 = vmatpush1.msra.mxu0 %v1086
    %1216 = vmatprep.subr.mxu0 0.0
    %1217 = vmatpush1.msra.mxu0 %v1089
    %1218 = vmatprep.subr.mxu0 0.0
    %1219 = vmatpush1.msra.mxu0 %v1092
    %1220 = vmatprep.subr.mxu0 0.0
    %1221 = vmatpush1.msra.mxu0 %v1095
    %1222 = vmatprep.subr.mxu0 0.0
    %1223 = vmatpush1.msra.mxu0 %v1098
    %1224 = vmatprep.subr.mxu0 0.0
    %1225 = vmatpush1.msra.mxu0 %v1101
    %1226 = vmatprep.subr.mxu0 0.0
    %1227 = vmatpush1.msra.mxu0 %v1104
    %1228 = vmatprep.subr.mxu0 0.0
    %1229 = vmatpush1.msra.mxu0 %v1107
    %1230 = vmatprep.subr.mxu0 0.0
    %1231 = vmatpush1.msra.mxu0 %v1110
    %1232 = vmatprep.subr.mxu0 0.0
    %1233 = vmatpush1.msra.mxu0 %v1113
    %1234 = vmatprep.subr.mxu0 0.0
    %1235 = vmatpush1.msra.mxu0 %v1116
    %1236 = vmatprep.subr.mxu0 0.0
    %1237 = vmatpush1.msra.mxu0 %v1119
    %1238 = vmatprep.subr.mxu0 0.0
    %1239 = vmatpush1.msra.mxu0 %v1122
    %1240 = vmatprep.subr.mxu0 0.0
    %1241 = vmatpush1.msra.mxu0 %v1125
    %1242 = vmatprep.subr.mxu0 0.0
    %1243 = vmatpush1.msra.mxu0 0.0
    %1244 = vmatprep.subr.mxu0 0.0
    %1245 = vmatpush1.msra.mxu0 0.0
    %1246 = vmatprep.subr.mxu0 0.0
    %1247 = vmatpush1.msra.mxu0 0.0
    %1248 = vmatprep.subr.mxu0 0.0
    %1249 = vmatpush1.msra.mxu0 0.0
    %1250 = vmatprep.subr.mxu0 0.0
    %1251 = vmatpush1.msra.mxu0 0.0
    %1252 = vmatprep.subr.mxu0 0.0
    %1253 = vmatpush1.msra.mxu0 0.0
    %1254 = vmatprep.subr.mxu0 0.0
    %1255 = vmatpush1.msra.mxu0 0.0
    %1256 = vmatprep.subr.mxu0 0.0
    %1257 = vmatpush1.msra.mxu0 0.0
    %1258 = vmatprep.subr.mxu0 0.0
    %1259 = vmatpush1.msra.mxu0 0.0
    %1260 = vmatprep.subr.mxu0 0.0
    %1261 = vmatpush1.msra.mxu0 0.0
    %1262 = vmatprep.subr.mxu0 0.0
    %1263 = vmatpush1.msra.mxu0 0.0
    %1264 = vmatprep.subr.mxu0 0.0
    %1265 = vmatpush1.msra.mxu0 0.0
    %1266 = vmatprep.subr.mxu0 0.0
    %1267 = vmatpush1.msra.mxu0 0.0
    %1268 = vmatprep.subr.mxu0 0.0
    %1269 = vmatpush1.msra.mxu0 0.0
    %1270 = vmatprep.subr.mxu0 0.0
    %1271 = vmatpush1.msra.mxu0 0.0
    %1272 = vmatprep.subr.mxu0 0.0
    %1273 = vmatpush1.msra.mxu0 0.0
    %1274 = vmatprep.mubr.f32.mxu0 0.0
    %1275 = vmatmul.mubr.f32.gmra.mrb[0].mxu0 0.0
    %v1276 = vpop.f32.mrb[0].mxu0
    %v1277 = vadd.f32 0.0, %v1276
    %v1278 = vpop.f32.mrb[0].mxu0
    %1279 = vmatprep.mubr.f32.mxu0 0.0
    %1280 = vmatmul.mubr.f32.gmra.mrb[0].mxu0 0.0
    %v1281 = vpop.f32.mrb[0].mxu0
    %v1282 = vadd.f32 0.0, %v1281
    %v1283 = vpop.f32.mrb[0].mxu0
    %1284 = vdwg.mxu0
    %v1285 = vadd.f32 %v1127, %v1200
    %v1286 = vadd.f32 %v1130, %v1206
    %v1287 = vxor.u32 %v1285, 2147483648
    %v1288 = vxor.u32 %v1286, 2147483648
    %v1289 = vmul.f32 %v1287, 1.442695
    %v1290 = vpow.pop %v1289
    %v1291 = vmul.f32 %v1288, 1.442695
    %v1292 = vpow.pop %v1291
    %v1293 = vadd.f32 %v1290, 1.0
    %v1294 = vadd.f32 %v1292, 1.0
    %v1295 = vrcp.pop %v1293
    %v1296 = vmul.f32 1.0, %v1295
    %v1297 = vrcp.pop %v1294
    %v1298 = vmul.f32 1.0, %v1297
    %v1299 = vadd.f32 %v1128, %v1202
    %v1300 = vadd.f32 %v1131, %v1208
    %v1301 = vxor.u32 %v1299, 2147483648
    %v1302 = vxor.u32 %v1300, 2147483648
    %v1303 = vmul.f32 %v1301, 1.442695
    %v1304 = vpow.pop %v1303
    %v1305 = vmul.f32 %v1302, 1.442695
    %v1306 = vpow.pop %v1305
    %v1307 = vadd.f32 %v1304, 1.0
    %v1308 = vadd.f32 %v1306, 1.0
    %v1309 = vrcp.pop %v1307
    %v1310 = vmul.f32 1.0, %v1309
    %v1311 = vrcp.pop %v1308
    %v1312 = vmul.f32 1.0, %v1311
    %v1314 = vlaneseq
    %v1315 = vshrl.u32 %v1314, 7
    %v1316 = vsub.s32 0, %v1315
    %v1317 = vrot.slane %v1126, %v1316
    %v1319 = vadd.f32 %v1277, %v1317
    %v1320 = vadd.f32 %v1282, %v1317
    %v1321 = vmul.f32 %v1296, %v1319
    %v1322 = vmul.f32 %v1298, %v1320
    %v1323 = vadd.f32 %v1129, %v1321
    %v1324 = vadd.f32 %v1132, %v1322
    %v1325 = vtanh.pop %v1323
    %v1326 = vtanh.pop %v1324
    %v1327 = vsub.f32 1.0, %v1310
    %v1328 = vsub.f32 1.0, %v1312
    %v1329 = vmul.f32 %v1327, %v1325
    %v1330 = vmul.f32 %v1328, %v1326
    %v1331 = vmul.f32 %v1310, 0.0
    %v1332 = vmul.f32 %v1312, 0.0
    %v1333 = vadd.f32 %v1329, %v1331
    %v1334 = vadd.f32 %v1330, %v1332
    %vm1335 = vcmask 261120
    %1336 = vst.msk [vmem:[#allocation3] sm:$0xff] %vm1335, %v1333
    %1337 = vst.msk [vmem:[#allocation3 + $0x8] sm:$0xff] %vm1335, %v1334
    %vm1338 = vcmask 523520
    %1339 = vst.msk [vmem:[#allocation3 + $0x70] sm:$0xff] %vm1338, %v1333
    %1340 = vst.msk [vmem:[#allocation3 + $0x78] sm:$0xff] %vm1338, %v1334
    %v1341 = vld [vmem:[#allocation2 + $0x30] sm:$0xff]
    %v1342 = vld [vmem:[#allocation2 + $0x38] sm:$0xff]
    %v1343 = vld [vmem:[#allocation2 + $0x40] sm:$0xff]
    %v1344 = vld [vmem:[#allocation2 + $0x48] sm:$0xff]
    %v1345 = vld [vmem:[#allocation2 + $0x50] sm:$0xff]
    %v1346 = vld [vmem:[#allocation2 + $0x58] sm:$0xff]
    %1347 = vmatprep.subr.mxu0 %v1079
    %1348 = vmatpush1.msra.mxu0 %v1078
    %1349 = vmatprep.subr.mxu0 %v1082
    %1350 = vmatpush1.msra.mxu0 %v1081
    %1351 = vmatprep.subr.mxu0 %v1085
    %1352 = vmatpush1.msra.mxu0 %v1084
    %1353 = vmatprep.subr.mxu0 %v1088
    %1354 = vmatpush1.msra.mxu0 %v1087
    %1355 = vmatprep.subr.mxu0 %v1091
    %1356 = vmatpush1.msra.mxu0 %v1090
    %1357 = vmatprep.subr.mxu0 %v1094
    %1358 = vmatpush1.msra.mxu0 %v1093
    %1359 = vmatprep.subr.mxu0 %v1097
    %1360 = vmatpush1.msra.mxu0 %v1096
    %1361 = vmatprep.subr.mxu0 %v1100
    %1362 = vmatpush1.msra.mxu0 %v1099
    %1363 = vmatprep.subr.mxu0 %v1103
    %1364 = vmatpush1.msra.mxu0 %v1102
    %1365 = vmatprep.subr.mxu0 %v1106
    %1366 = vmatpush1.msra.mxu0 %v1105
    %1367 = vmatprep.subr.mxu0 %v1109
    %1368 = vmatpush1.msra.mxu0 %v1108
    %1369 = vmatprep.subr.mxu0 %v1112
    %1370 = vmatpush1.msra.mxu0 %v1111
    %1371 = vmatprep.subr.mxu0 %v1115
    %1372 = vmatpush1.msra.mxu0 %v1114
    %1373 = vmatprep.subr.mxu0 %v1118
    %1374 = vmatpush1.msra.mxu0 %v1117
    %1375 = vmatprep.subr.mxu0 %v1121
    %1376 = vmatpush1.msra.mxu0 %v1120
    %1377 = vmatprep.subr.mxu0 %v1124
    %1378 = vmatpush1.msra.mxu0 %v1123
    %1379 = vmatprep.subr.mxu0 0.0
    %1380 = vmatpush1.msra.mxu0 0.0
    %1381 = vmatprep.subr.mxu0 0.0
    %1382 = vmatpush1.msra.mxu0 0.0
    %1383 = vmatprep.subr.mxu0 0.0
    %1384 = vmatpush1.msra.mxu0 0.0
    %1385 = vmatprep.subr.mxu0 0.0
    %1386 = vmatpush1.msra.mxu0 0.0
    %1387 = vmatprep.subr.mxu0 0.0
    %1388 = vmatpush1.msra.mxu0 0.0
    %1389 = vmatprep.subr.mxu0 0.0
    %1390 = vmatpush1.msra.mxu0 0.0
    %1391 = vmatprep.subr.mxu0 0.0
    %1392 = vmatpush1.msra.mxu0 0.0
    %1393 = vmatprep.subr.mxu0 0.0
    %1394 = vmatpush1.msra.mxu0 0.0
    %1395 = vmatprep.subr.mxu0 0.0
    %1396 = vmatpush1.msra.mxu0 0.0
    %1397 = vmatprep.subr.mxu0 0.0
    %1398 = vmatpush1.msra.mxu0 0.0
    %1399 = vmatprep.subr.mxu0 0.0
    %1400 = vmatpush1.msra.mxu0 0.0
    %1401 = vmatprep.subr.mxu0 0.0
    %1402 = vmatpush1.msra.mxu0 0.0
    %1403 = vmatprep.subr.mxu0 0.0
    %1404 = vmatpush1.msra.mxu0 0.0
    %1405 = vmatprep.subr.mxu0 0.0
    %1406 = vmatpush1.msra.mxu0 0.0
    %1407 = vmatprep.subr.mxu0 0.0
    %1408 = vmatpush1.msra.mxu0 0.0
    %1409 = vmatprep.subr.mxu0 0.0
    %1410 = vmatpush1.msra.mxu0 0.0
    %1411 = vmatprep.mubr.f32.mxu0 0.0
    %1412 = vmatmul.mubr.f32.gmra.mrb[0].mxu0 %v1333
    %v1413 = vpop.f32.mrb[0].mxu0
    %v1414 = vadd.f32 0.0, %v1413
    %v1415 = vpop.f32.mrb[0].mxu0
    %v1416 = vadd.f32 0.0, %v1415
    %1417 = vmatprep.mubr.f32.mxu0 0.0
    %1418 = vmatmul.mubr.f32.gmra.mrb[0].mxu0 %v1334
    %v1419 = vpop.f32.mrb[0].mxu0
    %v1420 = vadd.f32 0.0, %v1419
    %v1421 = vpop.f32.mrb[0].mxu0
    %v1422 = vadd.f32 0.0, %v1421
    %1423 = vdwg.mxu0
    %1424 = vmatprep.subr.mxu0 0.0
    %1425 = vmatpush1.msra.mxu0 %v1080
    %1426 = vmatprep.subr.mxu0 0.0
    %1427 = vmatpush1.msra.mxu0 %v1083
    %1428 = vmatprep.subr.mxu0 0.0
    %1429 = vmatpush1.msra.mxu0 %v1086
    %1430 = vmatprep.subr.mxu0 0.0
    %1431 = vmatpush1.msra.mxu0 %v1089
    %1432 = vmatprep.subr.mxu0 0.0
    %1433 = vmatpush1.msra.mxu0 %v1092
    %1434 = vmatprep.subr.mxu0 0.0
    %1435 = vmatpush1.msra.mxu0 %v1095
    %1436 = vmatprep.subr.mxu0 0.0
    %1437 = vmatpush1.msra.mxu0 %v1098
    %1438 = vmatprep.subr.mxu0 0.0
    %1439 = vmatpush1.msra.mxu0 %v1101
    %1440 = vmatprep.subr.mxu0 0.0
    %1441 = vmatpush1.msra.mxu0 %v1104
    %1442 = vmatprep.subr.mxu0 0.0
    %1443 = vmatpush1.msra.mxu0 %v1107
    %1444 = vmatprep.subr.mxu0 0.0
    %1445 = vmatpush1.msra.mxu0 %v1110
    %1446 = vmatprep.subr.mxu0 0.0
    %1447 = vmatpush1.msra.mxu0 %v1113
    %1448 = vmatprep.subr.mxu0 0.0
    %1449 = vmatpush1.msra.mxu0 %v1116
    %1450 = vmatprep.subr.mxu0 0.0
    %1451 = vmatpush1.msra.mxu0 %v1119
    %1452 = vmatprep.subr.mxu0 0.0
    %1453 = vmatpush1.msra.mxu0 %v1122
    %1454 = vmatprep.subr.mxu0 0.0
    %1455 = vmatpush1.msra.mxu0 %v1125
    %1456 = vmatprep.subr.mxu0 0.0
    %1457 = vmatpush1.msra.mxu0 0.0
    %1458 = vmatprep.subr.mxu0 0.0
    %1459 = vmatpush1.msra.mxu0 0.0
    %1460 = vmatprep.subr.mxu0 0.0
    %1461 = vmatpush1.msra.mxu0 0.0
    %1462 = vmatprep.subr.mxu0 0.0
    %1463 = vmatpush1.msra.mxu0 0.0
    %1464 = vmatprep.subr.mxu0 0.0
    %1465 = vmatpush1.msra.mxu0 0.0
    %1466 = vmatprep.subr.mxu0 0.0
    %1467 = vmatpush1.msra.mxu0 0.0
    %1468 = vmatprep.subr.mxu0 0.0
    %1469 = vmatpush1.msra.mxu0 0.0
    %1470 = vmatprep.subr.mxu0 0.0
    %1471 = vmatpush1.msra.mxu0 0.0
    %1472 = vmatprep.subr.mxu0 0.0
    %1473 = vmatpush1.msra.mxu0 0.0
    %1474 = vmatprep.subr.mxu0 0.0
    %1475 = vmatpush1.msra.mxu0 0.0
    %1476 = vmatprep.subr.mxu0 0.0
    %1477 = vmatpush1.msra.mxu0 0.0
    %1478 = vmatprep.subr.mxu0 0.0
    %1479 = vmatpush1.msra.mxu0 0.0
    %1480 = vmatprep.subr.mxu0 0.0
    %1481 = vmatpush1.msra.mxu0 0.0
    %1482 = vmatprep.subr.mxu0 0.0
    %1483 = vmatpush1.msra.mxu0 0.0
    %1484 = vmatprep.subr.mxu0 0.0
    %1485 = vmatpush1.msra.mxu0 0.0
    %1486 = vmatprep.subr.mxu0 0.0
    %1487 = vmatpush1.msra.mxu0 0.0
    %1488 = vmatprep.mubr.f32.mxu0 0.0
    %1489 = vmatmul.mubr.f32.gmra.mrb[0].mxu0 %v1333
    %v1490 = vpop.f32.mrb[0].mxu0
    %v1491 = vadd.f32 0.0, %v1490
    %v1492 = vpop.f32.mrb[0].mxu0
    %1493 = vmatprep.mubr.f32.mxu0 0.0
    %1494 = vmatmul.mubr.f32.gmra.mrb[0].mxu0 %v1334
    %v1495 = vpop.f32.mrb[0].mxu0
    %v1496 = vadd.f32 0.0, %v1495
    %v1497 = vpop.f32.mrb[0].mxu0
    %1498 = vdwg.mxu0
    %v1499 = vadd.f32 %v1341, %v1414
    %v1500 = vadd.f32 %v1344, %v1420
    %v1501 = vxor.u32 %v1499, 2147483648
    %v1502 = vxor.u32 %v1500, 2147483648
    %v1503 = vmul.f32 %v1501, 1.442695
    %v1504 = vpow.pop %v1503
    %v1505 = vmul.f32 %v1502, 1.442695
    %v1506 = vpow.pop %v1505
    %v1507 = vadd.f32 %v1504, 1.0
    %v1508 = vadd.f32 %v1506, 1.0
    %v1509 = vrcp.pop %v1507
    %v1510 = vmul.f32 1.0, %v1509
    %v1511 = vrcp.pop %v1508
    %v1512 = vmul.f32 1.0, %v1511
    %v1513 = vadd.f32 %v1342, %v1416
    %v1514 = vadd.f32 %v1345, %v1422
    %v1515 = vxor.u32 %v1513, 2147483648
    %v1516 = vxor.u32 %v1514, 2147483648
    %v1517 = vmul.f32 %v1515, 1.442695
    %v1518 = vpow.pop %v1517
    %v1519 = vmul.f32 %v1516, 1.442695
    %v1520 = vpow.pop %v1519
    %v1521 = vadd.f32 %v1518, 1.0
    %v1522 = vadd.f32 %v1520, 1.0
    %v1523 = vrcp.pop %v1521
    %v1524 = vmul.f32 1.0, %v1523
    %v1525 = vrcp.pop %v1522
    %v1526 = vmul.f32 1.0, %v1525
    %v1527 = vadd.f32 %v1491, %v1317
    %v1528 = vadd.f32 %v1496, %v1317
    %v1529 = vmul.f32 %v1510, %v1527
    %v1530 = vmul.f32 %v1512, %v1528
    %v1531 = vadd.f32 %v1343, %v1529
    %v1532 = vadd.f32 %v1346, %v1530
    %v1533 = vtanh.pop %v1531
    %v1534 = vtanh.pop %v1532
    %v1535 = vsub.f32 1.0, %v1524
    %v1536 = vsub.f32 1.0, %v1526
    %v1537 = vmul.f32 %v1535, %v1533
    %v1538 = vmul.f32 %v1536, %v1534
    %v1539 = vmul.f32 %v1524, %v1333
    %v1540 = vmul.f32 %v1526, %v1334
    %v1541 = vadd.f32 %v1537, %v1539
    %v1542 = vadd.f32 %v1538, %v1540
    %1543 = vst.msk [vmem:[#allocation3 + $0x10] sm:$0xff] %vm1335, %v1541
    %1544 = vst.msk [vmem:[#allocation3 + $0x18] sm:$0xff] %vm1335, %v1542
    %1545 = vst.msk [vmem:[#allocation3 + $0x60] sm:$0xff] %vm1338, %v1541
    %1546 = vst.msk [vmem:[#allocation3 + $0x68] sm:$0xff] %vm1338, %v1542
    %v1547 = vld [vmem:[#allocation2 + $0x60] sm:$0xff]
    %v1548 = vld [vmem:[#allocation2 + $0x68] sm:$0xff]
    %v1549 = vld [vmem:[#allocation2 + $0x70] sm:$0xff]
    %v1550 = vld [vmem:[#allocation2 + $0x78] sm:$0xff]
    %v1551 = vld [vmem:[#allocation2 + $0x80] sm:$0xff]
    %v1552 = vld [vmem:[#allocation2 + $0x88] sm:$0xff]
    %1553 = vmatprep.subr.mxu0 %v1079
    %1554 = vmatpush1.msra.mxu0 %v1078
    %1555 = vmatprep.subr.mxu0 %v1082
    %1556 = vmatpush1.msra.mxu0 %v1081
    %1557 = vmatprep.subr.mxu0 %v1085
    %1558 = vmatpush1.msra.mxu0 %v1084
    %1559 = vmatprep.subr.mxu0 %v1088
    %1560 = vmatpush1.msra.mxu0 %v1087
    %1561 = vmatprep.subr.mxu0 %v1091
    %1562 = vmatpush1.msra.mxu0 %v1090
    %1563 = vmatprep.subr.mxu0 %v1094
    %1564 = vmatpush1.msra.mxu0 %v1093
    %1565 = vmatprep.subr.mxu0 %v1097
    %1566 = vmatpush1.msra.mxu0 %v1096
    %1567 = vmatprep.subr.mxu0 %v1100
    %1568 = vmatpush1.msra.mxu0 %v1099
    %1569 = vmatprep.subr.mxu0 %v1103
    %1570 = vmatpush1.msra.mxu0 %v1102
    %1571 = vmatprep.subr.mxu0 %v1106
    %1572 = vmatpush1.msra.mxu0 %v1105
    %1573 = vmatprep.subr.mxu0 %v1109
    %1574 = vmatpush1.msra.mxu0 %v1108
    %1575 = vmatprep.subr.mxu0 %v1112
    %1576 = vmatpush1.msra.mxu0 %v1111
    %1577 = vmatprep.subr.mxu0 %v1115
    %1578 = vmatpush1.msra.mxu0 %v1114
    %1579 = vmatprep.subr.mxu0 %v1118
    %1580 = vmatpush1.msra.mxu0 %v1117
    %1581 = vmatprep.subr.mxu0 %v1121
    %1582 = vmatpush1.msra.mxu0 %v1120
    %1583 = vmatprep.subr.mxu0 %v1124
    %1584 = vmatpush1.msra.mxu0 %v1123
    %1585 = vmatprep.subr.mxu0 0.0
    %1586 = vmatpush1.msra.mxu0 0.0
    %1587 = vmatprep.subr.mxu0 0.0
    %1588 = vmatpush1.msra.mxu0 0.0
    %1589 = vmatprep.subr.mxu0 0.0
    %1590 = vmatpush1.msra.mxu0 0.0
    %1591 = vmatprep.subr.mxu0 0.0
    %1592 = vmatpush1.msra.mxu0 0.0
    %1593 = vmatprep.subr.mxu0 0.0
    %1594 = vmatpush1.msra.mxu0 0.0
    %1595 = vmatprep.subr.mxu0 0.0
    %1596 = vmatpush1.msra.mxu0 0.0
    %1597 = vmatprep.subr.mxu0 0.0
    %1598 = vmatpush1.msra.mxu0 0.0
    %1599 = vmatprep.subr.mxu0 0.0
    %1600 = vmatpush1.msra.mxu0 0.0
    %1601 = vmatprep.subr.mxu0 0.0
    %1602 = vmatpush1.msra.mxu0 0.0
    %1603 = vmatprep.subr.mxu0 0.0
    %1604 = vmatpush1.msra.mxu0 0.0
    %1605 = vmatprep.subr.mxu0 0.0
    %1606 = vmatpush1.msra.mxu0 0.0
    %1607 = vmatprep.subr.mxu0 0.0
    %1608 = vmatpush1.msra.mxu0 0.0
    %1609 = vmatprep.subr.mxu0 0.0
    %1610 = vmatpush1.msra.mxu0 0.0
    %1611 = vmatprep.subr.mxu0 0.0
    %1612 = vmatpush1.msra.mxu0 0.0
    %1613 = vmatprep.subr.mxu0 0.0
    %1614 = vmatpush1.msra.mxu0 0.0
    %1615 = vmatprep.subr.mxu0 0.0
    %1616 = vmatpush1.msra.mxu0 0.0
    %1617 = vmatprep.mubr.f32.mxu0 0.0
    %1618 = vmatmul.mubr.f32.gmra.mrb[0].mxu0 %v1541
    %v1619 = vpop.f32.mrb[0].mxu0
    %v1620 = vadd.f32 0.0, %v1619
    %v1621 = vpop.f32.mrb[0].mxu0
    %v1622 = vadd.f32 0.0, %v1621
    %1623 = vmatprep.mubr.f32.mxu0 0.0
    %1624 = vmatmul.mubr.f32.gmra.mrb[0].mxu0 %v1542
    %v1625 = vpop.f32.mrb[0].mxu0
    %v1626 = vadd.f32 0.0, %v1625
    %v1627 = vpop.f32.mrb[0].mxu0
    %v1628 = vadd.f32 0.0, %v1627
    %1629 = vdwg.mxu0
    %1630 = vmatprep.subr.mxu0 0.0
    %1631 = vmatpush1.msra.mxu0 %v1080
    %1632 = vmatprep.subr.mxu0 0.0
    %1633 = vmatpush1.msra.mxu0 %v1083
    %1634 = vmatprep.subr.mxu0 0.0
    %1635 = vmatpush1.msra.mxu0 %v1086
    %1636 = vmatprep.subr.mxu0 0.0
    %1637 = vmatpush1.msra.mxu0 %v1089
    %1638 = vmatprep.subr.mxu0 0.0
    %1639 = vmatpush1.msra.mxu0 %v1092
    %1640 = vmatprep.subr.mxu0 0.0
    %1641 = vmatpush1.msra.mxu0 %v1095
    %1642 = vmatprep.subr.mxu0 0.0
    %1643 = vmatpush1.msra.mxu0 %v1098
    %1644 = vmatprep.subr.mxu0 0.0
    %1645 = vmatpush1.msra.mxu0 %v1101
    %1646 = vmatprep.subr.mxu0 0.0
    %1647 = vmatpush1.msra.mxu0 %v1104
    %1648 = vmatprep.subr.mxu0 0.0
    %1649 = vmatpush1.msra.mxu0 %v1107
    %1650 = vmatprep.subr.mxu0 0.0
    %1651 = vmatpush1.msra.mxu0 %v1110
    %1652 = vmatprep.subr.mxu0 0.0
    %1653 = vmatpush1.msra.mxu0 %v1113
    %1654 = vmatprep.subr.mxu0 0.0
    %1655 = vmatpush1.msra.mxu0 %v1116
    %1656 = vmatprep.subr.mxu0 0.0
    %1657 = vmatpush1.msra.mxu0 %v1119
    %1658 = vmatprep.subr.mxu0 0.0
    %1659 = vmatpush1.msra.mxu0 %v1122
    %1660 = vmatprep.subr.mxu0 0.0
    %1661 = vmatpush1.msra.mxu0 %v1125
    %1662 = vmatprep.subr.mxu0 0.0
    %1663 = vmatpush1.msra.mxu0 0.0
    %1664 = vmatprep.subr.mxu0 0.0
    %1665 = vmatpush1.msra.mxu0 0.0
    %1666 = vmatprep.subr.mxu0 0.0
    %1667 = vmatpush1.msra.mxu0 0.0
    %1668 = vmatprep.subr.mxu0 0.0
    %1669 = vmatpush1.msra.mxu0 0.0
    %1670 = vmatprep.subr.mxu0 0.0
    %1671 = vmatpush1.msra.mxu0 0.0
    %1672 = vmatprep.subr.mxu0 0.0
    %1673 = vmatpush1.msra.mxu0 0.0
    %1674 = vmatprep.subr.mxu0 0.0
    %1675 = vmatpush1.msra.mxu0 0.0
    %1676 = vmatprep.subr.mxu0 0.0
    %1677 = vmatpush1.msra.mxu0 0.0
    %1678 = vmatprep.subr.mxu0 0.0
    %1679 = vmatpush1.msra.mxu0 0.0
    %1680 = vmatprep.subr.mxu0 0.0
    %1681 = vmatpush1.msra.mxu0 0.0
    %1682 = vmatprep.subr.mxu0 0.0
    %1683 = vmatpush1.msra.mxu0 0.0
    %1684 = vmatprep.subr.mxu0 0.0
    %1685 = vmatpush1.msra.mxu0 0.0
    %1686 = vmatprep.subr.mxu0 0.0
    %1687 = vmatpush1.msra.mxu0 0.0
    %1688 = vmatprep.subr.mxu0 0.0
    %1689 = vmatpush1.msra.mxu0 0.0
    %1690 = vmatprep.subr.mxu0 0.0
    %1691 = vmatpush1.msra.mxu0 0.0
    %1692 = vmatprep.subr.mxu0 0.0
    %1693 = vmatpush1.msra.mxu0 0.0
    %1694 = vmatprep.mubr.f32.mxu0 0.0
    %1695 = vmatmul.mubr.f32.gmra.mrb[0].mxu0 %v1541
    %v1696 = vpop.f32.mrb[0].mxu0
    %v1697 = vadd.f32 0.0, %v1696
    %v1698 = vpop.f32.mrb[0].mxu0
    %1699 = vmatprep.mubr.f32.mxu0 0.0
    %1700 = vmatmul.mubr.f32.gmra.mrb[0].mxu0 %v1542
    %v1701 = vpop.f32.mrb[0].mxu0
    %v1702 = vadd.f32 0.0, %v1701
    %v1703 = vpop.f32.mrb[0].mxu0
    %1704 = vdwg.mxu0
    %v1705 = vadd.f32 %v1547, %v1620
    %v1706 = vadd.f32 %v1550, %v1626
    %v1707 = vxor.u32 %v1705, 2147483648
    %v1708 = vxor.u32 %v1706, 2147483648
    %v1709 = vmul.f32 %v1707, 1.442695
    %v1710 = vpow.pop %v1709
    %v1711 = vmul.f32 %v1708, 1.442695
    %v1712 = vpow.pop %v1711
    %v1713 = vadd.f32 %v1710, 1.0
    %v1714 = vadd.f32 %v1712, 1.0
    %v1715 = vrcp.pop %v1713
    %v1716 = vmul.f32 1.0, %v1715
    %v1717 = vrcp.pop %v1714
    %v1718 = vmul.f32 1.0, %v1717
    %v1719 = vadd.f32 %v1548, %v1622
    %v1720 = vadd.f32 %v1551, %v1628
    %v1721 = vxor.u32 %v1719, 2147483648
    %v1722 = vxor.u32 %v1720, 2147483648
    %v1723 = vmul.f32 %v1721, 1.442695
    %v1724 = vpow.pop %v1723
    %v1725 = vmul.f32 %v1722, 1.442695
    %v1726 = vpow.pop %v1725
    %v1727 = vadd.f32 %v1724, 1.0
    %v1728 = vadd.f32 %v1726, 1.0
    %v1729 = vrcp.pop %v1727
    %v1730 = vmul.f32 1.0, %v1729
    %v1731 = vrcp.pop %v1728
    %v1732 = vmul.f32 1.0, %v1731
    %v1733 = vadd.f32 %v1697, %v1317
    %v1734 = vadd.f32 %v1702, %v1317
    %v1735 = vmul.f32 %v1716, %v1733
    %v1736 = vmul.f32 %v1718, %v1734
    %v1737 = vadd.f32 %v1549, %v1735
    %v1738 = vadd.f32 %v1552, %v1736
    %v1739 = vtanh.pop %v1737
    %v1740 = vtanh.pop %v1738
    %v1741 = vsub.f32 1.0, %v1730
    %v1742 = vsub.f32 1.0, %v1732
    %v1743 = vmul.f32 %v1741, %v1739
    %v1744 = vmul.f32 %v1742, %v1740
    %v1745 = vmul.f32 %v1730, %v1541
    %v1746 = vmul.f32 %v1732, %v1542
    %v1747 = vadd.f32 %v1743, %v1745
    %v1748 = vadd.f32 %v1744, %v1746
    %1749 = vst.msk [vmem:[#allocation3 + $0x20] sm:$0xff] %vm1335, %v1747
    %1750 = vst.msk [vmem:[#allocation3 + $0x28] sm:$0xff] %vm1335, %v1748
    %1751 = vst.msk [vmem:[#allocation3 + $0x50] sm:$0xff] %vm1338, %v1747
    %1752 = vst.msk [vmem:[#allocation3 + $0x58] sm:$0xff] %vm1338, %v1748
    %v1753 = vld [vmem:[#allocation2 + $0x90] sm:$0xff]
    %v1754 = vld [vmem:[#allocation2 + $0x98] sm:$0xff]
    %v1755 = vld [vmem:[#allocation2 + $0xa0] sm:$0xff]
    %v1756 = vld [vmem:[#allocation2 + $0xa8] sm:$0xff]
    %v1757 = vld [vmem:[#allocation2 + $0xb0] sm:$0xff]
    %v1758 = vld [vmem:[#allocation2 + $0xb8] sm:$0xff]
    %1759 = vmatprep.subr.mxu0 %v1079
    %1760 = vmatpush1.msra.mxu0 %v1078
    %1761 = vmatprep.subr.mxu0 %v1082
    %1762 = vmatpush1.msra.mxu0 %v1081
    %1763 = vmatprep.subr.mxu0 %v1085
    %1764 = vmatpush1.msra.mxu0 %v1084
    %1765 = vmatprep.subr.mxu0 %v1088
    %1766 = vmatpush1.msra.mxu0 %v1087
    %1767 = vmatprep.subr.mxu0 %v1091
    %1768 = vmatpush1.msra.mxu0 %v1090
    %1769 = vmatprep.subr.mxu0 %v1094
    %1770 = vmatpush1.msra.mxu0 %v1093
    %1771 = vmatprep.subr.mxu0 %v1097
    %1772 = vmatpush1.msra.mxu0 %v1096
    %1773 = vmatprep.subr.mxu0 %v1100
    %1774 = vmatpush1.msra.mxu0 %v1099
    %1775 = vmatprep.subr.mxu0 %v1103
    %1776 = vmatpush1.msra.mxu0 %v1102
    %1777 = vmatprep.subr.mxu0 %v1106
    %1778 = vmatpush1.msra.mxu0 %v1105
    %1779 = vmatprep.subr.mxu0 %v1109
    %1780 = vmatpush1.msra.mxu0 %v1108
    %1781 = vmatprep.subr.mxu0 %v1112
    %1782 = vmatpush1.msra.mxu0 %v1111
    %1783 = vmatprep.subr.mxu0 %v1115
    %1784 = vmatpush1.msra.mxu0 %v1114
    %1785 = vmatprep.subr.mxu0 %v1118
    %1786 = vmatpush1.msra.mxu0 %v1117
    %1787 = vmatprep.subr.mxu0 %v1121
    %1788 = vmatpush1.msra.mxu0 %v1120
    %1789 = vmatprep.subr.mxu0 %v1124
    %1790 = vmatpush1.msra.mxu0 %v1123
    %1791 = vmatprep.subr.mxu0 0.0
    %1792 = vmatpush1.msra.mxu0 0.0
    %1793 = vmatprep.subr.mxu0 0.0
    %1794 = vmatpush1.msra.mxu0 0.0
    %1795 = vmatprep.subr.mxu0 0.0
    %1796 = vmatpush1.msra.mxu0 0.0
    %1797 = vmatprep.subr.mxu0 0.0
    %1798 = vmatpush1.msra.mxu0 0.0
    %1799 = vmatprep.subr.mxu0 0.0
    %1800 = vmatpush1.msra.mxu0 0.0
    %1801 = vmatprep.subr.mxu0 0.0
    %1802 = vmatpush1.msra.mxu0 0.0
    %1803 = vmatprep.subr.mxu0 0.0
    %1804 = vmatpush1.msra.mxu0 0.0
    %1805 = vmatprep.subr.mxu0 0.0
    %1806 = vmatpush1.msra.mxu0 0.0
    %1807 = vmatprep.subr.mxu0 0.0
    %1808 = vmatpush1.msra.mxu0 0.0
    %1809 = vmatprep.subr.mxu0 0.0
    %1810 = vmatpush1.msra.mxu0 0.0
    %1811 = vmatprep.subr.mxu0 0.0
    %1812 = vmatpush1.msra.mxu0 0.0
    %1813 = vmatprep.subr.mxu0 0.0
    %1814 = vmatpush1.msra.mxu0 0.0
    %1815 = vmatprep.subr.mxu0 0.0
    %1816 = vmatpush1.msra.mxu0 0.0
    %1817 = vmatprep.subr.mxu0 0.0
    %1818 = vmatpush1.msra.mxu0 0.0
    %1819 = vmatprep.subr.mxu0 0.0
    %1820 = vmatpush1.msra.mxu0 0.0
    %1821 = vmatprep.subr.mxu0 0.0
    %1822 = vmatpush1.msra.mxu0 0.0
    %1823 = vmatprep.mubr.f32.mxu0 0.0
    %1824 = vmatmul.mubr.f32.gmra.mrb[0].mxu0 %v1747
    %v1825 = vpop.f32.mrb[0].mxu0
    %v1826 = vadd.f32 0.0, %v1825
    %v1827 = vpop.f32.mrb[0].mxu0
    %v1828 = vadd.f32 0.0, %v1827
    %1829 = vmatprep.mubr.f32.mxu0 0.0
    %1830 = vmatmul.mubr.f32.gmra.mrb[0].mxu0 %v1748
    %v1831 = vpop.f32.mrb[0].mxu0
    %v1832 = vadd.f32 0.0, %v1831
    %v1833 = vpop.f32.mrb[0].mxu0
    %v1834 = vadd.f32 0.0, %v1833
    %1835 = vdwg.mxu0
    %1836 = vmatprep.subr.mxu0 0.0
    %1837 = vmatpush1.msra.mxu0 %v1080
    %1838 = vmatprep.subr.mxu0 0.0
    %1839 = vmatpush1.msra.mxu0 %v1083
    %1840 = vmatprep.subr.mxu0 0.0
    %1841 = vmatpush1.msra.mxu0 %v1086
    %1842 = vmatprep.subr.mxu0 0.0
    %1843 = vmatpush1.msra.mxu0 %v1089
    %1844 = vmatprep.subr.mxu0 0.0
    %1845 = vmatpush1.msra.mxu0 %v1092
    %1846 = vmatprep.subr.mxu0 0.0
    %1847 = vmatpush1.msra.mxu0 %v1095
    %1848 = vmatprep.subr.mxu0 0.0
    %1849 = vmatpush1.msra.mxu0 %v1098
    %1850 = vmatprep.subr.mxu0 0.0
    %1851 = vmatpush1.msra.mxu0 %v1101
    %1852 = vmatprep.subr.mxu0 0.0
    %1853 = vmatpush1.msra.mxu0 %v1104
    %1854 = vmatprep.subr.mxu0 0.0
    %1855 = vmatpush1.msra.mxu0 %v1107
    %1856 = vmatprep.subr.mxu0 0.0
    %1857 = vmatpush1.msra.mxu0 %v1110
    %1858 = vmatprep.subr.mxu0 0.0
    %1859 = vmatpush1.msra.mxu0 %v1113
    %1860 = vmatprep.subr.mxu0 0.0
    %1861 = vmatpush1.msra.mxu0 %v1116
    %1862 = vmatprep.subr.mxu0 0.0
    %1863 = vmatpush1.msra.mxu0 %v1119
    %1864 = vmatprep.subr.mxu0 0.0
    %1865 = vmatpush1.msra.mxu0 %v1122
    %1866 = vmatprep.subr.mxu0 0.0
    %1867 = vmatpush1.msra.mxu0 %v1125
    %1868 = vmatprep.subr.mxu0 0.0
    %1869 = vmatpush1.msra.mxu0 0.0
    %1870 = vmatprep.subr.mxu0 0.0
    %1871 = vmatpush1.msra.mxu0 0.0
    %1872 = vmatprep.subr.mxu0 0.0
    %1873 = vmatpush1.msra.mxu0 0.0
    %1874 = vmatprep.subr.mxu0 0.0
    %1875 = vmatpush1.msra.mxu0 0.0
    %1876 = vmatprep.subr.mxu0 0.0
    %1877 = vmatpush1.msra.mxu0 0.0
    %1878 = vmatprep.subr.mxu0 0.0
    %1879 = vmatpush1.msra.mxu0 0.0
    %1880 = vmatprep.subr.mxu0 0.0
    %1881 = vmatpush1.msra.mxu0 0.0
    %1882 = vmatprep.subr.mxu0 0.0
    %1883 = vmatpush1.msra.mxu0 0.0
    %1884 = vmatprep.subr.mxu0 0.0
    %1885 = vmatpush1.msra.mxu0 0.0
    %1886 = vmatprep.subr.mxu0 0.0
    %1887 = vmatpush1.msra.mxu0 0.0
    %1888 = vmatprep.subr.mxu0 0.0
    %1889 = vmatpush1.msra.mxu0 0.0
    %1890 = vmatprep.subr.mxu0 0.0
    %1891 = vmatpush1.msra.mxu0 0.0
    %1892 = vmatprep.subr.mxu0 0.0
    %1893 = vmatpush1.msra.mxu0 0.0
    %1894 = vmatprep.subr.mxu0 0.0
    %1895 = vmatpush1.msra.mxu0 0.0
    %1896 = vmatprep.subr.mxu0 0.0
    %1897 = vmatpush1.msra.mxu0 0.0
    %1898 = vmatprep.subr.mxu0 0.0
    %1899 = vmatpush1.msra.mxu0 0.0
    %1900 = vmatprep.mubr.f32.mxu0 0.0
    %1901 = vmatmul.mubr.f32.gmra.mrb[0].mxu0 %v1747
    %v1902 = vpop.f32.mrb[0].mxu0
    %v1903 = vadd.f32 0.0, %v1902
    %v1904 = vpop.f32.mrb[0].mxu0
    %1905 = vmatprep.mubr.f32.mxu0 0.0
    %1906 = vmatmul.mubr.f32.gmra.mrb[0].mxu0 %v1748
    %v1907 = vpop.f32.mrb[0].mxu0
    %v1908 = vadd.f32 0.0, %v1907
    %v1909 = vpop.f32.mrb[0].mxu0
    %1910 = vdwg.mxu0
    %v1911 = vadd.f32 %v1753, %v1826
    %v1912 = vadd.f32 %v1756, %v1832
    %v1913 = vxor.u32 %v1911, 2147483648
    %v1914 = vxor.u32 %v1912, 2147483648
    %v1915 = vmul.f32 %v1913, 1.442695
    %v1916 = vpow.pop %v1915
    %v1917 = vmul.f32 %v1914, 1.442695
    %v1918 = vpow.pop %v1917
    %v1919 = vadd.f32 %v1916, 1.0
    %v1920 = vadd.f32 %v1918, 1.0
    %v1921 = vrcp.pop %v1919
    %v1922 = vmul.f32 1.0, %v1921
    %v1923 = vrcp.pop %v1920
    %v1924 = vmul.f32 1.0, %v1923
    %v1925 = vadd.f32 %v1754, %v1828
    %v1926 = vadd.f32 %v1757, %v1834
    %v1927 = vxor.u32 %v1925, 2147483648
    %v1928 = vxor.u32 %v1926, 2147483648
    %v1929 = vmul.f32 %v1927, 1.442695
    %v1930 = vpow.pop %v1929
    %v1931 = vmul.f32 %v1928, 1.442695
    %v1932 = vpow.pop %v1931
    %v1933 = vadd.f32 %v1930, 1.0
    %v1934 = vadd.f32 %v1932, 1.0
    %v1935 = vrcp.pop %v1933
    %v1936 = vmul.f32 1.0, %v1935
    %v1937 = vrcp.pop %v1934
    %v1938 = vmul.f32 1.0, %v1937
    %v1939 = vadd.f32 %v1903, %v1317
    %v1940 = vadd.f32 %v1908, %v1317
    %v1941 = vmul.f32 %v1922, %v1939
    %v1942 = vmul.f32 %v1924, %v1940
    %v1943 = vadd.f32 %v1755, %v1941
    %v1944 = vadd.f32 %v1758, %v1942
    %v1945 = vtanh.pop %v1943
    %v1946 = vtanh.pop %v1944
    %v1947 = vsub.f32 1.0, %v1936
    %v1948 = vsub.f32 1.0, %v1938
    %v1949 = vmul.f32 %v1947, %v1945
    %v1950 = vmul.f32 %v1948, %v1946
    %v1951 = vmul.f32 %v1936, %v1747
    %v1952 = vmul.f32 %v1938, %v1748
    %v1953 = vadd.f32 %v1949, %v1951
    %v1954 = vadd.f32 %v1950, %v1952
    %1955 = vst.msk [vmem:[#allocation3 + $0x30] sm:$0xff] %vm1335, %v1953
    %1956 = vst.msk [vmem:[#allocation3 + $0x38] sm:$0xff] %vm1335, %v1954
    %1957 = vst.msk [vmem:[#allocation3 + $0x40] sm:$0xff] %vm1338, %v1953
    %1958 = vst.msk [vmem:[#allocation3 + $0x48] sm:$0xff] %vm1338, %v1954
    %v1959 = vld [vmem:[#allocation2 + $0xc0] sm:$0xff]
    %v1960 = vld [vmem:[#allocation2 + $0xc8] sm:$0xff]
    %v1961 = vld [vmem:[#allocation2 + $0xd0] sm:$0xff]
    %v1962 = vld [vmem:[#allocation2 + $0xd8] sm:$0xff]
    %v1963 = vld [vmem:[#allocation2 + $0xe0] sm:$0xff]
    %v1964 = vld [vmem:[#allocation2 + $0xe8] sm:$0xff]
    %1965 = vmatprep.subr.mxu0 %v1079
    %1966 = vmatpush1.msra.mxu0 %v1078
    %1967 = vmatprep.subr.mxu0 %v1082
    %1968 = vmatpush1.msra.mxu0 %v1081
    %1969 = vmatprep.subr.mxu0 %v1085
    %1970 = vmatpush1.msra.mxu0 %v1084
    %1971 = vmatprep.subr.mxu0 %v1088
    %1972 = vmatpush1.msra.mxu0 %v1087
    %1973 = vmatprep.subr.mxu0 %v1091
    %1974 = vmatpush1.msra.mxu0 %v1090
    %1975 = vmatprep.subr.mxu0 %v1094
    %1976 = vmatpush1.msra.mxu0 %v1093
    %1977 = vmatprep.subr.mxu0 %v1097
    %1978 = vmatpush1.msra.mxu0 %v1096
    %1979 = vmatprep.subr.mxu0 %v1100
    %1980 = vmatpush1.msra.mxu0 %v1099
    %1981 = vmatprep.subr.mxu0 %v1103
    %1982 = vmatpush1.msra.mxu0 %v1102
    %1983 = vmatprep.subr.mxu0 %v1106
    %1984 = vmatpush1.msra.mxu0 %v1105
    %1985 = vmatprep.subr.mxu0 %v1109
    %1986 = vmatpush1.msra.mxu0 %v1108
    %1987 = vmatprep.subr.mxu0 %v1112
    %1988 = vmatpush1.msra.mxu0 %v1111
    %1989 = vmatprep.subr.mxu0 %v1115
    %1990 = vmatpush1.msra.mxu0 %v1114
    %1991 = vmatprep.subr.mxu0 %v1118
    %1992 = vmatpush1.msra.mxu0 %v1117
    %1993 = vmatprep.subr.mxu0 %v1121
    %1994 = vmatpush1.msra.mxu0 %v1120
    %1995 = vmatprep.subr.mxu0 %v1124
    %1996 = vmatpush1.msra.mxu0 %v1123
    %1997 = vmatprep.subr.mxu0 0.0
    %1998 = vmatpush1.msra.mxu0 0.0
    %1999 = vmatprep.subr.mxu0 0.0
    %2000 = vmatpush1.msra.mxu0 0.0
    %2001 = vmatprep.subr.mxu0 0.0
    %2002 = vmatpush1.msra.mxu0 0.0
    %2003 = vmatprep.subr.mxu0 0.0
    %2004 = vmatpush1.msra.mxu0 0.0
    %2005 = vmatprep.subr.mxu0 0.0
    %2006 = vmatpush1.msra.mxu0 0.0
    %2007 = vmatprep.subr.mxu0 0.0
    %2008 = vmatpush1.msra.mxu0 0.0
    %2009 = vmatprep.subr.mxu0 0.0
    %2010 = vmatpush1.msra.mxu0 0.0
    %2011 = vmatprep.subr.mxu0 0.0
    %2012 = vmatpush1.msra.mxu0 0.0
    %2013 = vmatprep.subr.mxu0 0.0
    %2014 = vmatpush1.msra.mxu0 0.0
    %2015 = vmatprep.subr.mxu0 0.0
    %2016 = vmatpush1.msra.mxu0 0.0
    %2017 = vmatprep.subr.mxu0 0.0
    %2018 = vmatpush1.msra.mxu0 0.0
    %2019 = vmatprep.subr.mxu0 0.0
    %2020 = vmatpush1.msra.mxu0 0.0
    %2021 = vmatprep.subr.mxu0 0.0
    %2022 = vmatpush1.msra.mxu0 0.0
    %2023 = vmatprep.subr.mxu0 0.0
    %2024 = vmatpush1.msra.mxu0 0.0
    %2025 = vmatprep.subr.mxu0 0.0
    %2026 = vmatpush1.msra.mxu0 0.0
    %2027 = vmatprep.subr.mxu0 0.0
    %2028 = vmatpush1.msra.mxu0 0.0
    %2029 = vmatprep.mubr.f32.mxu0 0.0
    %2030 = vmatmul.mubr.f32.gmra.mrb[0].mxu0 %v1953
    %v2031 = vpop.f32.mrb[0].mxu0
    %v2032 = vadd.f32 0.0, %v2031
    %v2033 = vpop.f32.mrb[0].mxu0
    %v2034 = vadd.f32 0.0, %v2033
    %2035 = vmatprep.mubr.f32.mxu0 0.0
    %2036 = vmatmul.mubr.f32.gmra.mrb[0].mxu0 %v1954
    %v2037 = vpop.f32.mrb[0].mxu0
    %v2038 = vadd.f32 0.0, %v2037
    %v2039 = vpop.f32.mrb[0].mxu0
    %v2040 = vadd.f32 0.0, %v2039
    %2041 = vdwg.mxu0
    %2042 = vmatprep.subr.mxu0 0.0
    %2043 = vmatpush1.msra.mxu0 %v1080
    %2044 = vmatprep.subr.mxu0 0.0
    %2045 = vmatpush1.msra.mxu0 %v1083
    %2046 = vmatprep.subr.mxu0 0.0
    %2047 = vmatpush1.msra.mxu0 %v1086
    %2048 = vmatprep.subr.mxu0 0.0
    %2049 = vmatpush1.msra.mxu0 %v1089
    %2050 = vmatprep.subr.mxu0 0.0
    %2051 = vmatpush1.msra.mxu0 %v1092
    %2052 = vmatprep.subr.mxu0 0.0
    %2053 = vmatpush1.msra.mxu0 %v1095
    %2054 = vmatprep.subr.mxu0 0.0
    %2055 = vmatpush1.msra.mxu0 %v1098
    %2056 = vmatprep.subr.mxu0 0.0
    %2057 = vmatpush1.msra.mxu0 %v1101
    %2058 = vmatprep.subr.mxu0 0.0
    %2059 = vmatpush1.msra.mxu0 %v1104
    %2060 = vmatprep.subr.mxu0 0.0
    %2061 = vmatpush1.msra.mxu0 %v1107
    %2062 = vmatprep.subr.mxu0 0.0
    %2063 = vmatpush1.msra.mxu0 %v1110
    %2064 = vmatprep.subr.mxu0 0.0
    %2065 = vmatpush1.msra.mxu0 %v1113
    %2066 = vmatprep.subr.mxu0 0.0
    %2067 = vmatpush1.msra.mxu0 %v1116
    %2068 = vmatprep.subr.mxu0 0.0
    %2069 = vmatpush1.msra.mxu0 %v1119
    %2070 = vmatprep.subr.mxu0 0.0
    %2071 = vmatpush1.msra.mxu0 %v1122
    %2072 = vmatprep.subr.mxu0 0.0
    %2073 = vmatpush1.msra.mxu0 %v1125
    %2074 = vmatprep.subr.mxu0 0.0
    %2075 = vmatpush1.msra.mxu0 0.0
    %2076 = vmatprep.subr.mxu0 0.0
    %2077 = vmatpush1.msra.mxu0 0.0
    %2078 = vmatprep.subr.mxu0 0.0
    %2079 = vmatpush1.msra.mxu0 0.0
    %2080 = vmatprep.subr.mxu0 0.0
    %2081 = vmatpush1.msra.mxu0 0.0
    %2082 = vmatprep.subr.mxu0 0.0
    %2083 = vmatpush1.msra.mxu0 0.0
    %2084 = vmatprep.subr.mxu0 0.0
    %2085 = vmatpush1.msra.mxu0 0.0
    %2086 = vmatprep.subr.mxu0 0.0
    %2087 = vmatpush1.msra.mxu0 0.0
    %2088 = vmatprep.subr.mxu0 0.0
    %2089 = vmatpush1.msra.mxu0 0.0
    %2090 = vmatprep.subr.mxu0 0.0
    %2091 = vmatpush1.msra.mxu0 0.0
    %2092 = vmatprep.subr.mxu0 0.0
    %2093 = vmatpush1.msra.mxu0 0.0
    %2094 = vmatprep.subr.mxu0 0.0
    %2095 = vmatpush1.msra.mxu0 0.0
    %2096 = vmatprep.subr.mxu0 0.0
    %2097 = vmatpush1.msra.mxu0 0.0
    %2098 = vmatprep.subr.mxu0 0.0
    %2099 = vmatpush1.msra.mxu0 0.0
    %2100 = vmatprep.subr.mxu0 0.0
    %2101 = vmatpush1.msra.mxu0 0.0
    %2102 = vmatprep.subr.mxu0 0.0
    %2103 = vmatpush1.msra.mxu0 0.0
    %2104 = vmatprep.subr.mxu0 0.0
    %2105 = vmatpush1.msra.mxu0 0.0
    %2106 = vmatprep.mubr.f32.mxu0 0.0
    %2107 = vmatmul.mubr.f32.gmra.mrb[0].mxu0 %v1953
    %v2108 = vpop.f32.mrb[0].mxu0
    %v2109 = vadd.f32 0.0, %v2108
    %v2110 = vpop.f32.mrb[0].mxu0
    %2111 = vmatprep.mubr.f32.mxu0 0.0
    %2112 = vmatmul.mubr.f32.gmra.mrb[0].mxu0 %v1954
    %v2113 = vpop.f32.mrb[0].mxu0
    %v2114 = vadd.f32 0.0, %v2113
    %v2115 = vpop.f32.mrb[0].mxu0
    %2116 = vdwg.mxu0
    %v2117 = vadd.f32 %v1959, %v2032
    %v2118 = vadd.f32 %v1962, %v2038
    %v2119 = vxor.u32 %v2117, 2147483648
    %v2120 = vxor.u32 %v2118, 2147483648
    %v2121 = vmul.f32 %v2119, 1.442695
    %v2122 = vpow.pop %v2121
    %v2123 = vmul.f32 %v2120, 1.442695
    %v2124 = vpow.pop %v2123
    %v2125 = vadd.f32 %v2122, 1.0
    %v2126 = vadd.f32 %v2124, 1.0
    %v2127 = vrcp.pop %v2125
    %v2128 = vmul.f32 1.0, %v2127
    %v2129 = vrcp.pop %v2126
    %v2130 = vmul.f32 1.0, %v2129
    %v2131 = vadd.f32 %v1960, %v2034
    %v2132 = vadd.f32 %v1963, %v2040
    %v2133 = vxor.u32 %v2131, 2147483648
    %v2134 = vxor.u32 %v2132, 2147483648
    %v2135 = vmul.f32 %v2133, 1.442695
    %v2136 = vpow.pop %v2135
    %v2137 = vmul.f32 %v2134, 1.442695
    %v2138 = vpow.pop %v2137
    %v2139 = vadd.f32 %v2136, 1.0
    %v2140 = vadd.f32 %v2138, 1.0
    %v2141 = vrcp.pop %v2139
    %v2142 = vmul.f32 1.0, %v2141
    %v2143 = vrcp.pop %v2140
    %v2144 = vmul.f32 1.0, %v2143
    %v2145 = vadd.f32 %v2109, %v1317
    %v2146 = vadd.f32 %v2114, %v1317
    %v2147 = vmul.f32 %v2128, %v2145
    %v2148 = vmul.f32 %v2130, %v2146
    %v2149 = vadd.f32 %v1961, %v2147
    %v2150 = vadd.f32 %v1964, %v2148
    %v2151 = vtanh.pop %v2149
    %v2152 = vtanh.pop %v2150
    %v2153 = vsub.f32 1.0, %v2142
    %v2154 = vsub.f32 1.0, %v2144
    %v2155 = vmul.f32 %v2153, %v2151
    %v2156 = vmul.f32 %v2154, %v2152
    %v2157 = vmul.f32 %v2142, %v1953
    %v2158 = vmul.f32 %v2144, %v1954
    %v2159 = vadd.f32 %v2155, %v2157
    %v2160 = vadd.f32 %v2156, %v2158
    %2161 = vst.msk [vmem:[#allocation3 + $0x40] sm:$0xff] %vm1335, %v2159
    %2162 = vst.msk [vmem:[#allocation3 + $0x48] sm:$0xff] %vm1335, %v2160
    %2163 = vst.msk [vmem:[#allocation3 + $0x30] sm:$0xff] %vm1338, %v2159
    %2164 = vst.msk [vmem:[#allocation3 + $0x38] sm:$0xff] %vm1338, %v2160
    %v2165 = vld [vmem:[#allocation2 + $0xf0] sm:$0xff]
    %v2166 = vld [vmem:[#allocation2 + $0xf8] sm:$0xff]
    %v2167 = vld [vmem:[#allocation2 + $0x100] sm:$0xff]
    %v2168 = vld [vmem:[#allocation2 + $0x108] sm:$0xff]
    %v2169 = vld [vmem:[#allocation2 + $0x110] sm:$0xff]
    %v2170 = vld [vmem:[#allocation2 + $0x118] sm:$0xff]
    %2171 = vmatprep.subr.mxu0 %v1079
    %2172 = vmatpush1.msra.mxu0 %v1078
    %2173 = vmatprep.subr.mxu0 %v1082
    %2174 = vmatpush1.msra.mxu0 %v1081
    %2175 = vmatprep.subr.mxu0 %v1085
    %2176 = vmatpush1.msra.mxu0 %v1084
    %2177 = vmatprep.subr.mxu0 %v1088
    %2178 = vmatpush1.msra.mxu0 %v1087
    %2179 = vmatprep.subr.mxu0 %v1091
    %2180 = vmatpush1.msra.mxu0 %v1090
    %2181 = vmatprep.subr.mxu0 %v1094
    %2182 = vmatpush1.msra.mxu0 %v1093
    %2183 = vmatprep.subr.mxu0 %v1097
    %2184 = vmatpush1.msra.mxu0 %v1096
    %2185 = vmatprep.subr.mxu0 %v1100
    %2186 = vmatpush1.msra.mxu0 %v1099
    %2187 = vmatprep.subr.mxu0 %v1103
    %2188 = vmatpush1.msra.mxu0 %v1102
    %2189 = vmatprep.subr.mxu0 %v1106
    %2190 = vmatpush1.msra.mxu0 %v1105
    %2191 = vmatprep.subr.mxu0 %v1109
    %2192 = vmatpush1.msra.mxu0 %v1108
    %2193 = vmatprep.subr.mxu0 %v1112
    %2194 = vmatpush1.msra.mxu0 %v1111
    %2195 = vmatprep.subr.mxu0 %v1115
    %2196 = vmatpush1.msra.mxu0 %v1114
    %2197 = vmatprep.subr.mxu0 %v1118
    %2198 = vmatpush1.msra.mxu0 %v1117
    %2199 = vmatprep.subr.mxu0 %v1121
    %2200 = vmatpush1.msra.mxu0 %v1120
    %2201 = vmatprep.subr.mxu0 %v1124
    %2202 = vmatpush1.msra.mxu0 %v1123
    %2203 = vmatprep.subr.mxu0 0.0
    %2204 = vmatpush1.msra.mxu0 0.0
    %2205 = vmatprep.subr.mxu0 0.0
    %2206 = vmatpush1.msra.mxu0 0.0
    %2207 = vmatprep.subr.mxu0 0.0
    %2208 = vmatpush1.msra.mxu0 0.0
    %2209 = vmatprep.subr.mxu0 0.0
    %2210 = vmatpush1.msra.mxu0 0.0
    %2211 = vmatprep.subr.mxu0 0.0
    %2212 = vmatpush1.msra.mxu0 0.0
    %2213 = vmatprep.subr.mxu0 0.0
    %2214 = vmatpush1.msra.mxu0 0.0
    %2215 = vmatprep.subr.mxu0 0.0
    %2216 = vmatpush1.msra.mxu0 0.0
    %2217 = vmatprep.subr.mxu0 0.0
    %2218 = vmatpush1.msra.mxu0 0.0
    %2219 = vmatprep.subr.mxu0 0.0
    %2220 = vmatpush1.msra.mxu0 0.0
    %2221 = vmatprep.subr.mxu0 0.0
    %2222 = vmatpush1.msra.mxu0 0.0
    %2223 = vmatprep.subr.mxu0 0.0
    %2224 = vmatpush1.msra.mxu0 0.0
    %2225 = vmatprep.subr.mxu0 0.0
    %2226 = vmatpush1.msra.mxu0 0.0
    %2227 = vmatprep.subr.mxu0 0.0
    %2228 = vmatpush1.msra.mxu0 0.0
    %2229 = vmatprep.subr.mxu0 0.0
    %2230 = vmatpush1.msra.mxu0 0.0
    %2231 = vmatprep.subr.mxu0 0.0
    %2232 = vmatpush1.msra.mxu0 0.0
    %2233 = vmatprep.subr.mxu0 0.0
    %2234 = vmatpush1.msra.mxu0 0.0
    %2235 = vmatprep.mubr.f32.mxu0 0.0
    %2236 = vmatmul.mubr.f32.gmra.mrb[0].mxu0 %v2159
    %v2237 = vpop.f32.mrb[0].mxu0
    %v2238 = vadd.f32 0.0, %v2237
    %v2239 = vpop.f32.mrb[0].mxu0
    %v2240 = vadd.f32 0.0, %v2239
    %2241 = vmatprep.mubr.f32.mxu0 0.0
    %2242 = vmatmul.mubr.f32.gmra.mrb[0].mxu0 %v2160
    %v2243 = vpop.f32.mrb[0].mxu0
    %v2244 = vadd.f32 0.0, %v2243
    %v2245 = vpop.f32.mrb[0].mxu0
    %v2246 = vadd.f32 0.0, %v2245
    %2247 = vdwg.mxu0
    %2248 = vmatprep.subr.mxu0 0.0
    %2249 = vmatpush1.msra.mxu0 %v1080
    %2250 = vmatprep.subr.mxu0 0.0
    %2251 = vmatpush1.msra.mxu0 %v1083
    %2252 = vmatprep.subr.mxu0 0.0
    %2253 = vmatpush1.msra.mxu0 %v1086
    %2254 = vmatprep.subr.mxu0 0.0
    %2255 = vmatpush1.msra.mxu0 %v1089
    %2256 = vmatprep.subr.mxu0 0.0
    %2257 = vmatpush1.msra.mxu0 %v1092
    %2258 = vmatprep.subr.mxu0 0.0
    %2259 = vmatpush1.msra.mxu0 %v1095
    %2260 = vmatprep.subr.mxu0 0.0
    %2261 = vmatpush1.msra.mxu0 %v1098
    %2262 = vmatprep.subr.mxu0 0.0
    %2263 = vmatpush1.msra.mxu0 %v1101
    %2264 = vmatprep.subr.mxu0 0.0
    %2265 = vmatpush1.msra.mxu0 %v1104
    %2266 = vmatprep.subr.mxu0 0.0
    %2267 = vmatpush1.msra.mxu0 %v1107
    %2268 = vmatprep.subr.mxu0 0.0
    %2269 = vmatpush1.msra.mxu0 %v1110
    %2270 = vmatprep.subr.mxu0 0.0
    %2271 = vmatpush1.msra.mxu0 %v1113
    %2272 = vmatprep.subr.mxu0 0.0
    %2273 = vmatpush1.msra.mxu0 %v1116
    %2274 = vmatprep.subr.mxu0 0.0
    %2275 = vmatpush1.msra.mxu0 %v1119
    %2276 = vmatprep.subr.mxu0 0.0
    %2277 = vmatpush1.msra.mxu0 %v1122
    %2278 = vmatprep.subr.mxu0 0.0
    %2279 = vmatpush1.msra.mxu0 %v1125
    %2280 = vmatprep.subr.mxu0 0.0
    %2281 = vmatpush1.msra.mxu0 0.0
    %2282 = vmatprep.subr.mxu0 0.0
    %2283 = vmatpush1.msra.mxu0 0.0
    %2284 = vmatprep.subr.mxu0 0.0
    %2285 = vmatpush1.msra.mxu0 0.0
    %2286 = vmatprep.subr.mxu0 0.0
    %2287 = vmatpush1.msra.mxu0 0.0
    %2288 = vmatprep.subr.mxu0 0.0
    %2289 = vmatpush1.msra.mxu0 0.0
    %2290 = vmatprep.subr.mxu0 0.0
    %2291 = vmatpush1.msra.mxu0 0.0
    %2292 = vmatprep.subr.mxu0 0.0
    %2293 = vmatpush1.msra.mxu0 0.0
    %2294 = vmatprep.subr.mxu0 0.0
    %2295 = vmatpush1.msra.mxu0 0.0
    %2296 = vmatprep.subr.mxu0 0.0
    %2297 = vmatpush1.msra.mxu0 0.0
    %2298 = vmatprep.subr.mxu0 0.0
    %2299 = vmatpush1.msra.mxu0 0.0
    %2300 = vmatprep.subr.mxu0 0.0
    %2301 = vmatpush1.msra.mxu0 0.0
    %2302 = vmatprep.subr.mxu0 0.0
    %2303 = vmatpush1.msra.mxu0 0.0
    %2304 = vmatprep.subr.mxu0 0.0
    %2305 = vmatpush1.msra.mxu0 0.0
    %2306 = vmatprep.subr.mxu0 0.0
    %2307 = vmatpush1.msra.mxu0 0.0
    %2308 = vmatprep.subr.mxu0 0.0
    %2309 = vmatpush1.msra.mxu0 0.0
    %2310 = vmatprep.subr.mxu0 0.0
    %2311 = vmatpush1.msra.mxu0 0.0
    %2312 = vmatprep.mubr.f32.mxu0 0.0
    %2313 = vmatmul.mubr.f32.gmra.mrb[0].mxu0 %v2159
    %v2314 = vpop.f32.mrb[0].mxu0
    %v2315 = vadd.f32 0.0, %v2314
    %v2316 = vpop.f32.mrb[0].mxu0
    %2317 = vmatprep.mubr.f32.mxu0 0.0
    %2318 = vmatmul.mubr.f32.gmra.mrb[0].mxu0 %v2160
    %v2319 = vpop.f32.mrb[0].mxu0
    %v2320 = vadd.f32 0.0, %v2319
    %v2321 = vpop.f32.mrb[0].mxu0
    %2322 = vdwg.mxu0
    %v2323 = vadd.f32 %v2165, %v2238
    %v2324 = vadd.f32 %v2168, %v2244
    %v2325 = vxor.u32 %v2323, 2147483648
    %v2326 = vxor.u32 %v2324, 2147483648
    %v2327 = vmul.f32 %v2325, 1.442695
    %v2328 = vpow.pop %v2327
    %v2329 = vmul.f32 %v2326, 1.442695
    %v2330 = vpow.pop %v2329
    %v2331 = vadd.f32 %v2328, 1.0
    %v2332 = vadd.f32 %v2330, 1.0
    %v2333 = vrcp.pop %v2331
    %v2334 = vmul.f32 1.0, %v2333
    %v2335 = vrcp.pop %v2332
    %v2336 = vmul.f32 1.0, %v2335
    %v2337 = vadd.f32 %v2166, %v2240
    %v2338 = vadd.f32 %v2169, %v2246
    %v2339 = vxor.u32 %v2337, 2147483648
    %v2340 = vxor.u32 %v2338, 2147483648
    %v2341 = vmul.f32 %v2339, 1.442695
    %v2342 = vpow.pop %v2341
    %v2343 = vmul.f32 %v2340, 1.442695
    %v2344 = vpow.pop %v2343
    %v2345 = vadd.f32 %v2342, 1.0
    %v2346 = vadd.f32 %v2344, 1.0
    %v2347 = vrcp.pop %v2345
    %v2348 = vmul.f32 1.0, %v2347
    %v2349 = vrcp.pop %v2346
    %v2350 = vmul.f32 1.0, %v2349
    %v2351 = vadd.f32 %v2315, %v1317
    %v2352 = vadd.f32 %v2320, %v1317
    %v2353 = vmul.f32 %v2334, %v2351
    %v2354 = vmul.f32 %v2336, %v2352
    %v2355 = vadd.f32 %v2167, %v2353
    %v2356 = vadd.f32 %v2170, %v2354
    %v2357 = vtanh.pop %v2355
    %v2358 = vtanh.pop %v2356
    %v2359 = vsub.f32 1.0, %v2348
    %v2360 = vsub.f32 1.0, %v2350
    %v2361 = vmul.f32 %v2359, %v2357
    %v2362 = vmul.f32 %v2360, %v2358
    %v2363 = vmul.f32 %v2348, %v2159
    %v2364 = vmul.f32 %v2350, %v2160
    %v2365 = vadd.f32 %v2361, %v2363
    %v2366 = vadd.f32 %v2362, %v2364
    %2367 = vst.msk [vmem:[#allocation3 + $0x50] sm:$0xff] %vm1335, %v2365
    %2368 = vst.msk [vmem:[#allocation3 + $0x58] sm:$0xff] %vm1335, %v2366
    %2369 = vst.msk [vmem:[#allocation3 + $0x20] sm:$0xff] %vm1338, %v2365
    %2370 = vst.msk [vmem:[#allocation3 + $0x28] sm:$0xff] %vm1338, %v2366
    %v2371 = vld [vmem:[#allocation2 + $0x120] sm:$0xff]
    %v2372 = vld [vmem:[#allocation2 + $0x128] sm:$0xff]
    %v2373 = vld [vmem:[#allocation2 + $0x130] sm:$0xff]
    %v2374 = vld [vmem:[#allocation2 + $0x138] sm:$0xff]
    %v2375 = vld [vmem:[#allocation2 + $0x140] sm:$0xff]
    %v2376 = vld [vmem:[#allocation2 + $0x148] sm:$0xff]
    %2377 = vmatprep.subr.mxu0 %v1079
    %2378 = vmatpush1.msra.mxu0 %v1078
    %2379 = vmatprep.subr.mxu0 %v1082
    %2380 = vmatpush1.msra.mxu0 %v1081
    %2381 = vmatprep.subr.mxu0 %v1085
    %2382 = vmatpush1.msra.mxu0 %v1084
    %2383 = vmatprep.subr.mxu0 %v1088
    %2384 = vmatpush1.msra.mxu0 %v1087
    %2385 = vmatprep.subr.mxu0 %v1091
    %2386 = vmatpush1.msra.mxu0 %v1090
    %2387 = vmatprep.subr.mxu0 %v1094
    %2388 = vmatpush1.msra.mxu0 %v1093
    %2389 = vmatprep.subr.mxu0 %v1097
    %2390 = vmatpush1.msra.mxu0 %v1096
    %2391 = vmatprep.subr.mxu0 %v1100
    %2392 = vmatpush1.msra.mxu0 %v1099
    %2393 = vmatprep.subr.mxu0 %v1103
    %2394 = vmatpush1.msra.mxu0 %v1102
    %2395 = vmatprep.subr.mxu0 %v1106
    %2396 = vmatpush1.msra.mxu0 %v1105
    %2397 = vmatprep.subr.mxu0 %v1109
    %2398 = vmatpush1.msra.mxu0 %v1108
    %2399 = vmatprep.subr.mxu0 %v1112
    %2400 = vmatpush1.msra.mxu0 %v1111
    %2401 = vmatprep.subr.mxu0 %v1115
    %2402 = vmatpush1.msra.mxu0 %v1114
    %2403 = vmatprep.subr.mxu0 %v1118
    %2404 = vmatpush1.msra.mxu0 %v1117
    %2405 = vmatprep.subr.mxu0 %v1121
    %2406 = vmatpush1.msra.mxu0 %v1120
    %2407 = vmatprep.subr.mxu0 %v1124
    %2408 = vmatpush1.msra.mxu0 %v1123
    %2409 = vmatprep.subr.mxu0 0.0
    %2410 = vmatpush1.msra.mxu0 0.0
    %2411 = vmatprep.subr.mxu0 0.0
    %2412 = vmatpush1.msra.mxu0 0.0
    %2413 = vmatprep.subr.mxu0 0.0
    %2414 = vmatpush1.msra.mxu0 0.0
    %2415 = vmatprep.subr.mxu0 0.0
    %2416 = vmatpush1.msra.mxu0 0.0
    %2417 = vmatprep.subr.mxu0 0.0
    %2418 = vmatpush1.msra.mxu0 0.0
    %2419 = vmatprep.subr.mxu0 0.0
    %2420 = vmatpush1.msra.mxu0 0.0
    %2421 = vmatprep.subr.mxu0 0.0
    %2422 = vmatpush1.msra.mxu0 0.0
    %2423 = vmatprep.subr.mxu0 0.0
    %2424 = vmatpush1.msra.mxu0 0.0
    %2425 = vmatprep.subr.mxu0 0.0
    %2426 = vmatpush1.msra.mxu0 0.0
    %2427 = vmatprep.subr.mxu0 0.0
    %2428 = vmatpush1.msra.mxu0 0.0
    %2429 = vmatprep.subr.mxu0 0.0
    %2430 = vmatpush1.msra.mxu0 0.0
    %2431 = vmatprep.subr.mxu0 0.0
    %2432 = vmatpush1.msra.mxu0 0.0
    %2433 = vmatprep.subr.mxu0 0.0
    %2434 = vmatpush1.msra.mxu0 0.0
    %2435 = vmatprep.subr.mxu0 0.0
    %2436 = vmatpush1.msra.mxu0 0.0
    %2437 = vmatprep.subr.mxu0 0.0
    %2438 = vmatpush1.msra.mxu0 0.0
    %2439 = vmatprep.subr.mxu0 0.0
    %2440 = vmatpush1.msra.mxu0 0.0
    %2441 = vmatprep.mubr.f32.mxu0 0.0
    %2442 = vmatmul.mubr.f32.gmra.mrb[0].mxu0 %v2365
    %v2443 = vpop.f32.mrb[0].mxu0
    %v2444 = vadd.f32 0.0, %v2443
    %v2445 = vpop.f32.mrb[0].mxu0
    %v2446 = vadd.f32 0.0, %v2445
    %2447 = vmatprep.mubr.f32.mxu0 0.0
    %2448 = vmatmul.mubr.f32.gmra.mrb[0].mxu0 %v2366
    %v2449 = vpop.f32.mrb[0].mxu0
    %v2450 = vadd.f32 0.0, %v2449
    %v2451 = vpop.f32.mrb[0].mxu0
    %v2452 = vadd.f32 0.0, %v2451
    %2453 = vdwg.mxu0
    %2454 = vmatprep.subr.mxu0 0.0
    %2455 = vmatpush1.msra.mxu0 %v1080
    %2456 = vmatprep.subr.mxu0 0.0
    %2457 = vmatpush1.msra.mxu0 %v1083
    %2458 = vmatprep.subr.mxu0 0.0
    %2459 = vmatpush1.msra.mxu0 %v1086
    %2460 = vmatprep.subr.mxu0 0.0
    %2461 = vmatpush1.msra.mxu0 %v1089
    %2462 = vmatprep.subr.mxu0 0.0
    %2463 = vmatpush1.msra.mxu0 %v1092
    %2464 = vmatprep.subr.mxu0 0.0
    %2465 = vmatpush1.msra.mxu0 %v1095
    %2466 = vmatprep.subr.mxu0 0.0
    %2467 = vmatpush1.msra.mxu0 %v1098
    %2468 = vmatprep.subr.mxu0 0.0
    %2469 = vmatpush1.msra.mxu0 %v1101
    %2470 = vmatprep.subr.mxu0 0.0
    %2471 = vmatpush1.msra.mxu0 %v1104
    %2472 = vmatprep.subr.mxu0 0.0
    %2473 = vmatpush1.msra.mxu0 %v1107
    %2474 = vmatprep.subr.mxu0 0.0
    %2475 = vmatpush1.msra.mxu0 %v1110
    %2476 = vmatprep.subr.mxu0 0.0
    %2477 = vmatpush1.msra.mxu0 %v1113
    %2478 = vmatprep.subr.mxu0 0.0
    %2479 = vmatpush1.msra.mxu0 %v1116
    %2480 = vmatprep.subr.mxu0 0.0
    %2481 = vmatpush1.msra.mxu0 %v1119
    %2482 = vmatprep.subr.mxu0 0.0
    %2483 = vmatpush1.msra.mxu0 %v1122
    %2484 = vmatprep.subr.mxu0 0.0
    %2485 = vmatpush1.msra.mxu0 %v1125
    %2486 = vmatprep.subr.mxu0 0.0
    %2487 = vmatpush1.msra.mxu0 0.0
    %2488 = vmatprep.subr.mxu0 0.0
    %2489 = vmatpush1.msra.mxu0 0.0
    %2490 = vmatprep.subr.mxu0 0.0
    %2491 = vmatpush1.msra.mxu0 0.0
    %2492 = vmatprep.subr.mxu0 0.0
    %2493 = vmatpush1.msra.mxu0 0.0
    %2494 = vmatprep.subr.mxu0 0.0
    %2495 = vmatpush1.msra.mxu0 0.0
    %2496 = vmatprep.subr.mxu0 0.0
    %2497 = vmatpush1.msra.mxu0 0.0
    %2498 = vmatprep.subr.mxu0 0.0
    %2499 = vmatpush1.msra.mxu0 0.0
    %2500 = vmatprep.subr.mxu0 0.0
    %2501 = vmatpush1.msra.mxu0 0.0
    %2502 = vmatprep.subr.mxu0 0.0
    %2503 = vmatpush1.msra.mxu0 0.0
    %2504 = vmatprep.subr.mxu0 0.0
    %2505 = vmatpush1.msra.mxu0 0.0
    %2506 = vmatprep.subr.mxu0 0.0
    %2507 = vmatpush1.msra.mxu0 0.0
    %2508 = vmatprep.subr.mxu0 0.0
    %2509 = vmatpush1.msra.mxu0 0.0
    %2510 = vmatprep.subr.mxu0 0.0
    %2511 = vmatpush1.msra.mxu0 0.0
    %2512 = vmatprep.subr.mxu0 0.0
    %2513 = vmatpush1.msra.mxu0 0.0
    %2514 = vmatprep.subr.mxu0 0.0
    %2515 = vmatpush1.msra.mxu0 0.0
    %2516 = vmatprep.subr.mxu0 0.0
    %2517 = vmatpush1.msra.mxu0 0.0
    %2518 = vmatprep.mubr.f32.mxu0 0.0
    %2519 = vmatmul.mubr.f32.gmra.mrb[0].mxu0 %v2365
    %v2520 = vpop.f32.mrb[0].mxu0
    %v2521 = vadd.f32 0.0, %v2520
    %v2522 = vpop.f32.mrb[0].mxu0
    %2523 = vmatprep.mubr.f32.mxu0 0.0
    %2524 = vmatmul.mubr.f32.gmra.mrb[0].mxu0 %v2366
    %v2525 = vpop.f32.mrb[0].mxu0
    %v2526 = vadd.f32 0.0, %v2525
    %v2527 = vpop.f32.mrb[0].mxu0
    %2528 = vdwg.mxu0
    %v2529 = vadd.f32 %v2371, %v2444
    %v2530 = vadd.f32 %v2374, %v2450
    %v2531 = vxor.u32 %v2529, 2147483648
    %v2532 = vxor.u32 %v2530, 2147483648
    %v2533 = vmul.f32 %v2531, 1.442695
    %v2534 = vpow.pop %v2533
    %v2535 = vmul.f32 %v2532, 1.442695
    %v2536 = vpow.pop %v2535
    %v2537 = vadd.f32 %v2534, 1.0
    %v2538 = vadd.f32 %v2536, 1.0
    %v2539 = vrcp.pop %v2537
    %v2540 = vmul.f32 1.0, %v2539
    %v2541 = vrcp.pop %v2538
    %v2542 = vmul.f32 1.0, %v2541
    %v2543 = vadd.f32 %v2372, %v2446
    %v2544 = vadd.f32 %v2375, %v2452
    %v2545 = vxor.u32 %v2543, 2147483648
    %v2546 = vxor.u32 %v2544, 2147483648
    %v2547 = vmul.f32 %v2545, 1.442695
    %v2548 = vpow.pop %v2547
    %v2549 = vmul.f32 %v2546, 1.442695
    %v2550 = vpow.pop %v2549
    %v2551 = vadd.f32 %v2548, 1.0
    %v2552 = vadd.f32 %v2550, 1.0
    %v2553 = vrcp.pop %v2551
    %v2554 = vmul.f32 1.0, %v2553
    %v2555 = vrcp.pop %v2552
    %v2556 = vmul.f32 1.0, %v2555
    %v2557 = vadd.f32 %v2521, %v1317
    %v2558 = vadd.f32 %v2526, %v1317
    %v2559 = vmul.f32 %v2540, %v2557
    %v2560 = vmul.f32 %v2542, %v2558
    %v2561 = vadd.f32 %v2373, %v2559
    %v2562 = vadd.f32 %v2376, %v2560
    %v2563 = vtanh.pop %v2561
    %v2564 = vtanh.pop %v2562
    %v2565 = vsub.f32 1.0, %v2554
    %v2566 = vsub.f32 1.0, %v2556
    %v2567 = vmul.f32 %v2565, %v2563
    %v2568 = vmul.f32 %v2566, %v2564
    %v2569 = vmul.f32 %v2554, %v2365
    %v2570 = vmul.f32 %v2556, %v2366
    %v2571 = vadd.f32 %v2567, %v2569
    %v2572 = vadd.f32 %v2568, %v2570
    %2573 = vst.msk [vmem:[#allocation3 + $0x60] sm:$0xff] %vm1335, %v2571
    %2574 = vst.msk [vmem:[#allocation3 + $0x68] sm:$0xff] %vm1335, %v2572
    %2575 = vst.msk [vmem:[#allocation3 + $0x10] sm:$0xff] %vm1338, %v2571
    %2576 = vst.msk [vmem:[#allocation3 + $0x18] sm:$0xff] %vm1338, %v2572
    %v2577 = vld [vmem:[#allocation2 + $0x150] sm:$0xff]
    %v2578 = vld [vmem:[#allocation2 + $0x158] sm:$0xff]
    %v2579 = vld [vmem:[#allocation2 + $0x160] sm:$0xff]
    %v2580 = vld [vmem:[#allocation2 + $0x168] sm:$0xff]
    %v2581 = vld [vmem:[#allocation2 + $0x170] sm:$0xff]
    %v2582 = vld [vmem:[#allocation2 + $0x178] sm:$0xff]
    %2583 = vmatprep.subr.mxu0 %v1079
    %2584 = vmatpush1.msra.mxu0 %v1078
    %2585 = vmatprep.subr.mxu0 %v1082
    %2586 = vmatpush1.msra.mxu0 %v1081
    %2587 = vmatprep.subr.mxu0 %v1085
    %2588 = vmatpush1.msra.mxu0 %v1084
    %2589 = vmatprep.subr.mxu0 %v1088
    %2590 = vmatpush1.msra.mxu0 %v1087
    %2591 = vmatprep.subr.mxu0 %v1091
    %2592 = vmatpush1.msra.mxu0 %v1090
    %2593 = vmatprep.subr.mxu0 %v1094
    %2594 = vmatpush1.msra.mxu0 %v1093
    %2595 = vmatprep.subr.mxu0 %v1097
    %2596 = vmatpush1.msra.mxu0 %v1096
    %2597 = vmatprep.subr.mxu0 %v1100
    %2598 = vmatpush1.msra.mxu0 %v1099
    %2599 = vmatprep.subr.mxu0 %v1103
    %2600 = vmatpush1.msra.mxu0 %v1102
    %2601 = vmatprep.subr.mxu0 %v1106
    %2602 = vmatpush1.msra.mxu0 %v1105
    %2603 = vmatprep.subr.mxu0 %v1109
    %2604 = vmatpush1.msra.mxu0 %v1108
    %2605 = vmatprep.subr.mxu0 %v1112
    %2606 = vmatpush1.msra.mxu0 %v1111
    %2607 = vmatprep.subr.mxu0 %v1115
    %2608 = vmatpush1.msra.mxu0 %v1114
    %2609 = vmatprep.subr.mxu0 %v1118
    %2610 = vmatpush1.msra.mxu0 %v1117
    %2611 = vmatprep.subr.mxu0 %v1121
    %2612 = vmatpush1.msra.mxu0 %v1120
    %2613 = vmatprep.subr.mxu0 %v1124
    %2614 = vmatpush1.msra.mxu0 %v1123
    %2615 = vmatprep.subr.mxu0 0.0
    %2616 = vmatpush1.msra.mxu0 0.0
    %2617 = vmatprep.subr.mxu0 0.0
    %2618 = vmatpush1.msra.mxu0 0.0
    %2619 = vmatprep.subr.mxu0 0.0
    %2620 = vmatpush1.msra.mxu0 0.0
    %2621 = vmatprep.subr.mxu0 0.0
    %2622 = vmatpush1.msra.mxu0 0.0
    %2623 = vmatprep.subr.mxu0 0.0
    %2624 = vmatpush1.msra.mxu0 0.0
    %2625 = vmatprep.subr.mxu0 0.0
    %2626 = vmatpush1.msra.mxu0 0.0
    %2627 = vmatprep.subr.mxu0 0.0
    %2628 = vmatpush1.msra.mxu0 0.0
    %2629 = vmatprep.subr.mxu0 0.0
    %2630 = vmatpush1.msra.mxu0 0.0
    %2631 = vmatprep.subr.mxu0 0.0
    %2632 = vmatpush1.msra.mxu0 0.0
    %2633 = vmatprep.subr.mxu0 0.0
    %2634 = vmatpush1.msra.mxu0 0.0
    %2635 = vmatprep.subr.mxu0 0.0
    %2636 = vmatpush1.msra.mxu0 0.0
    %2637 = vmatprep.subr.mxu0 0.0
    %2638 = vmatpush1.msra.mxu0 0.0
    %2639 = vmatprep.subr.mxu0 0.0
    %2640 = vmatpush1.msra.mxu0 0.0
    %2641 = vmatprep.subr.mxu0 0.0
    %2642 = vmatpush1.msra.mxu0 0.0
    %2643 = vmatprep.subr.mxu0 0.0
    %2644 = vmatpush1.msra.mxu0 0.0
    %2645 = vmatprep.subr.mxu0 0.0
    %2646 = vmatpush1.msra.mxu0 0.0
    %2647 = vmatprep.mubr.f32.mxu0 0.0
    %2648 = vmatmul.mubr.f32.gmra.mrb[0].mxu0 %v2571
    %v2649 = vpop.f32.mrb[0].mxu0
    %v2650 = vadd.f32 0.0, %v2649
    %v2651 = vpop.f32.mrb[0].mxu0
    %v2652 = vadd.f32 0.0, %v2651
    %2653 = vmatprep.mubr.f32.mxu0 0.0
    %2654 = vmatmul.mubr.f32.gmra.mrb[0].mxu0 %v2572
    %v2655 = vpop.f32.mrb[0].mxu0
    %v2656 = vadd.f32 0.0, %v2655
    %v2657 = vpop.f32.mrb[0].mxu0
    %v2658 = vadd.f32 0.0, %v2657
    %2659 = vdwg.mxu0
    %2660 = vmatprep.subr.mxu0 0.0
    %2661 = vmatpush1.msra.mxu0 %v1080
    %2662 = vmatprep.subr.mxu0 0.0
    %2663 = vmatpush1.msra.mxu0 %v1083
    %2664 = vmatprep.subr.mxu0 0.0
    %2665 = vmatpush1.msra.mxu0 %v1086
    %2666 = vmatprep.subr.mxu0 0.0
    %2667 = vmatpush1.msra.mxu0 %v1089
    %2668 = vmatprep.subr.mxu0 0.0
    %2669 = vmatpush1.msra.mxu0 %v1092
    %2670 = vmatprep.subr.mxu0 0.0
    %2671 = vmatpush1.msra.mxu0 %v1095
    %2672 = vmatprep.subr.mxu0 0.0
    %2673 = vmatpush1.msra.mxu0 %v1098
    %2674 = vmatprep.subr.mxu0 0.0
    %2675 = vmatpush1.msra.mxu0 %v1101
    %2676 = vmatprep.subr.mxu0 0.0
    %2677 = vmatpush1.msra.mxu0 %v1104
    %2678 = vmatprep.subr.mxu0 0.0
    %2679 = vmatpush1.msra.mxu0 %v1107
    %2680 = vmatprep.subr.mxu0 0.0
    %2681 = vmatpush1.msra.mxu0 %v1110
    %2682 = vmatprep.subr.mxu0 0.0
    %2683 = vmatpush1.msra.mxu0 %v1113
    %2684 = vmatprep.subr.mxu0 0.0
    %2685 = vmatpush1.msra.mxu0 %v1116
    %2686 = vmatprep.subr.mxu0 0.0
    %2687 = vmatpush1.msra.mxu0 %v1119
    %2688 = vmatprep.subr.mxu0 0.0
    %2689 = vmatpush1.msra.mxu0 %v1122
    %2690 = vmatprep.subr.mxu0 0.0
    %2691 = vmatpush1.msra.mxu0 %v1125
    %2692 = vmatprep.subr.mxu0 0.0
    %2693 = vmatpush1.msra.mxu0 0.0
    %2694 = vmatprep.subr.mxu0 0.0
    %2695 = vmatpush1.msra.mxu0 0.0
    %2696 = vmatprep.subr.mxu0 0.0
    %2697 = vmatpush1.msra.mxu0 0.0
    %2698 = vmatprep.subr.mxu0 0.0
    %2699 = vmatpush1.msra.mxu0 0.0
    %2700 = vmatprep.subr.mxu0 0.0
    %2701 = vmatpush1.msra.mxu0 0.0
    %2702 = vmatprep.subr.mxu0 0.0
    %2703 = vmatpush1.msra.mxu0 0.0
    %2704 = vmatprep.subr.mxu0 0.0
    %2705 = vmatpush1.msra.mxu0 0.0
    %2706 = vmatprep.subr.mxu0 0.0
    %2707 = vmatpush1.msra.mxu0 0.0
    %2708 = vmatprep.subr.mxu0 0.0
    %2709 = vmatpush1.msra.mxu0 0.0
    %2710 = vmatprep.subr.mxu0 0.0
    %2711 = vmatpush1.msra.mxu0 0.0
    %2712 = vmatprep.subr.mxu0 0.0
    %2713 = vmatpush1.msra.mxu0 0.0
    %2714 = vmatprep.subr.mxu0 0.0
    %2715 = vmatpush1.msra.mxu0 0.0
    %2716 = vmatprep.subr.mxu0 0.0
    %2717 = vmatpush1.msra.mxu0 0.0
    %2718 = vmatprep.subr.mxu0 0.0
    %2719 = vmatpush1.msra.mxu0 0.0
    %2720 = vmatprep.subr.mxu0 0.0
    %2721 = vmatpush1.msra.mxu0 0.0
    %2722 = vmatprep.subr.mxu0 0.0
    %2723 = vmatpush1.msra.mxu0 0.0
    %2724 = vmatprep.mubr.f32.mxu0 0.0
    %2725 = vmatmul.mubr.f32.gmra.mrb[0].mxu0 %v2571
    %v2726 = vpop.f32.mrb[0].mxu0
    %v2727 = vadd.f32 0.0, %v2726
    %v2728 = vpop.f32.mrb[0].mxu0
    %2729 = vmatprep.mubr.f32.mxu0 0.0
    %2730 = vmatmul.mubr.f32.gmra.mrb[0].mxu0 %v2572
    %v2731 = vpop.f32.mrb[0].mxu0
    %v2732 = vadd.f32 0.0, %v2731
    %v2733 = vpop.f32.mrb[0].mxu0
    %2734 = vdwg.mxu0
    %v2735 = vadd.f32 %v2577, %v2650
    %v2736 = vadd.f32 %v2580, %v2656
    %v2737 = vxor.u32 %v2735, 2147483648
    %v2738 = vxor.u32 %v2736, 2147483648
    %v2739 = vmul.f32 %v2737, 1.442695
    %v2740 = vpow.pop %v2739
    %v2741 = vmul.f32 %v2738, 1.442695
    %v2742 = vpow.pop %v2741
    %v2743 = vadd.f32 %v2740, 1.0
    %v2744 = vadd.f32 %v2742, 1.0
    %v2745 = vrcp.pop %v2743
    %v2746 = vmul.f32 1.0, %v2745
    %v2747 = vrcp.pop %v2744
    %v2748 = vmul.f32 1.0, %v2747
    %v2749 = vadd.f32 %v2578, %v2652
    %v2750 = vadd.f32 %v2581, %v2658
    %v2751 = vxor.u32 %v2749, 2147483648
    %v2752 = vxor.u32 %v2750, 2147483648
    %v2753 = vmul.f32 %v2751, 1.442695
    %v2754 = vpow.pop %v2753
    %v2755 = vmul.f32 %v2752, 1.442695
    %v2756 = vpow.pop %v2755
    %v2757 = vadd.f32 %v2754, 1.0
    %v2758 = vadd.f32 %v2756, 1.0
    %v2759 = vrcp.pop %v2757
    %v2760 = vmul.f32 1.0, %v2759
    %v2761 = vrcp.pop %v2758
    %v2762 = vmul.f32 1.0, %v2761
    %v2763 = vadd.f32 %v2727, %v1317
    %v2764 = vadd.f32 %v2732, %v1317
    %v2765 = vmul.f32 %v2746, %v2763
    %v2766 = vmul.f32 %v2748, %v2764
    %v2767 = vadd.f32 %v2579, %v2765
    %v2768 = vadd.f32 %v2582, %v2766
    %v2769 = vtanh.pop %v2767
    %v2770 = vtanh.pop %v2768
    %v2771 = vsub.f32 1.0, %v2760
    %v2772 = vsub.f32 1.0, %v2762
    %v2773 = vmul.f32 %v2771, %v2769
    %v2774 = vmul.f32 %v2772, %v2770
    %v2775 = vmul.f32 %v2760, %v2571
    %v2776 = vmul.f32 %v2762, %v2572
    %v2777 = vadd.f32 %v2773, %v2775
    %v2778 = vadd.f32 %v2774, %v2776
    %2779 = vst.msk [vmem:[#allocation3 + $0x70] sm:$0xff] %vm1335, %v2777
    %2780 = vst.msk [vmem:[#allocation3 + $0x78] sm:$0xff] %vm1335, %v2778
    %2781 = vst.msk [vmem:[#allocation3] sm:$0xff] %vm1338, %v2777
    %2782 = vst.msk [vmem:[#allocation3 + $0x8] sm:$0xff] %vm1338, %v2778
    %v2783 = vld [vmem:[#allocation3] ss:$16 sm:$0x3]
    %v2784 = vld [vmem:[#allocation3] ss:$16 sm:$0xc]
    %v2785 = vor.u32 %v2783, %v2784
    %v2786 = vld [vmem:[#allocation3] ss:$16 sm:$0x30]
    %v2787 = vor.u32 %v2785, %v2786
    %v2788 = vld [vmem:[#allocation3] ss:$16 sm:$0xc0]
    %v2789 = vor.u32 %v2787, %v2788
    %v2790 = vld [vmem:[#allocation7] sm:$0xff]
    %v2791 = vld [vmem:[#allocation7 + $0x8] sm:$0xff]
    %v2792 = vld [vmem:[#allocation7 + $0x10] sm:$0xff]
    %v2793 = vld [vmem:[#allocation7 + $0x18] sm:$0xff]
    %v2794 = vld [vmem:[#allocation7 + $0x20] sm:$0xff]
    %v2795 = vld [vmem:[#allocation7 + $0x28] sm:$0xff]
    %v2796 = vld [vmem:[#allocation7 + $0x30] sm:$0xff]
    %v2797 = vld [vmem:[#allocation7 + $0x38] sm:$0xff]
    %s2798 = scalar_lea.vmem [#allocation3], 1
    %v2799 = vld [vmem:[%s2798] ss:$16 sm:$0x3]
    %v2800 = vld [vmem:[%s2798] ss:$16 sm:$0xc]
    %v2801 = vor.u32 %v2799, %v2800
    %v2802 = vld [vmem:[%s2798] ss:$16 sm:$0x30]
    %v2803 = vor.u32 %v2801, %v2802
    %v2804 = vld [vmem:[%s2798] ss:$16 sm:$0xc0]
    %v2805 = vor.u32 %v2803, %v2804
    %s2806 = scalar_lea.vmem [#allocation7], 64
    %v2807 = vld [vmem:[%s2806] sm:$0xff]
    %v2808 = vld [vmem:[%s2806 + $0x8] sm:$0xff]
    %v2809 = vld [vmem:[%s2806 + $0x10] sm:$0xff]
    %v2810 = vld [vmem:[%s2806 + $0x18] sm:$0xff]
    %v2811 = vld [vmem:[%s2806 + $0x20] sm:$0xff]
    %v2812 = vld [vmem:[%s2806 + $0x28] sm:$0xff]
    %v2813 = vld [vmem:[%s2806 + $0x30] sm:$0xff]
    %v2814 = vld [vmem:[%s2806 + $0x38] sm:$0xff]
    %vm2815 = vcmask 523264
    %v2817 = vsel %vm2815, %v2805, 0
    %2819 = vmatprep.subr.mxu0 0.0
    %2820 = vmatpush1.msra.mxu0 %v2807
    %2821 = vmatprep.subr.mxu0 0.0
    %2822 = vmatpush1.msra.mxu0 %v2808
    %2823 = vmatprep.subr.mxu0 0.0
    %2824 = vmatpush1.msra.mxu0 %v2809
    %2825 = vmatprep.subr.mxu0 0.0
    %2826 = vmatpush1.msra.mxu0 %v2810
    %2827 = vmatprep.subr.mxu0 0.0
    %2828 = vmatpush1.msra.mxu0 %v2811
    %2829 = vmatprep.subr.mxu0 0.0
    %2830 = vmatpush1.msra.mxu0 %v2812
    %2831 = vmatprep.subr.mxu0 0.0
    %2832 = vmatpush1.msra.mxu0 %v2813
    %2833 = vmatprep.subr.mxu0 0.0
    %2834 = vmatpush1.msra.mxu0 %v2814
    %2835 = vmatprep.subr.mxu0 0.0
    %2836 = vmatpush1.msra.mxu0 0.0
    %2837 = vmatprep.subr.mxu0 0.0
    %2838 = vmatpush1.msra.mxu0 0.0
    %2839 = vmatprep.subr.mxu0 0.0
    %2840 = vmatpush1.msra.mxu0 0.0
    %2841 = vmatprep.subr.mxu0 0.0
    %2842 = vmatpush1.msra.mxu0 0.0
    %2843 = vmatprep.subr.mxu0 0.0
    %2844 = vmatpush1.msra.mxu0 0.0
    %2845 = vmatprep.subr.mxu0 0.0
    %2846 = vmatpush1.msra.mxu0 0.0
    %2847 = vmatprep.subr.mxu0 0.0
    %2848 = vmatpush1.msra.mxu0 0.0
    %2849 = vmatprep.subr.mxu0 0.0
    %2850 = vmatpush1.msra.mxu0 0.0
    %2851 = vmatprep.subr.mxu0 0.0
    %2852 = vmatpush1.msra.mxu0 0.0
    %2853 = vmatprep.subr.mxu0 0.0
    %2854 = vmatpush1.msra.mxu0 0.0
    %2855 = vmatprep.subr.mxu0 0.0
    %2856 = vmatpush1.msra.mxu0 0.0
    %2857 = vmatprep.subr.mxu0 0.0
    %2858 = vmatpush1.msra.mxu0 0.0
    %2859 = vmatprep.subr.mxu0 0.0
    %2860 = vmatpush1.msra.mxu0 0.0
    %2861 = vmatprep.subr.mxu0 0.0
    %2862 = vmatpush1.msra.mxu0 0.0
    %2863 = vmatprep.subr.mxu0 0.0
    %2864 = vmatpush1.msra.mxu0 0.0
    %2865 = vmatprep.subr.mxu0 0.0
    %2866 = vmatpush1.msra.mxu0 0.0
    %2867 = vmatprep.subr.mxu0 0.0
    %2868 = vmatpush1.msra.mxu0 0.0
    %2869 = vmatprep.subr.mxu0 0.0
    %2870 = vmatpush1.msra.mxu0 0.0
    %2871 = vmatprep.subr.mxu0 0.0
    %2872 = vmatpush1.msra.mxu0 0.0
    %2873 = vmatprep.subr.mxu0 0.0
    %2874 = vmatpush1.msra.mxu0 0.0
    %2875 = vmatprep.subr.mxu0 0.0
    %2876 = vmatpush1.msra.mxu0 0.0
    %2877 = vmatprep.subr.mxu0 0.0
    %2878 = vmatpush1.msra.mxu0 0.0
    %2879 = vmatprep.subr.mxu0 0.0
    %2880 = vmatpush1.msra.mxu0 0.0
    %2881 = vmatprep.subr.mxu0 0.0
    %2882 = vmatpush1.msra.mxu0 0.0
    %2883 = vmatprep.mubr.f32.mxu0 0.0
    %2884 = vmatmul.mubr.f32.gmra.mrb[0].mxu0 %v2817
    %v2885 = vpop.f32.mrb[0].mxu0
    %v2886 = vadd.f32 0.0, %v2885
    %v2887 = vpop.f32.mrb[0].mxu0
    %2888 = vdwg.mxu0
    %v2890 = vsel %vm2815, %v2789, 0
    %2892 = vmatprep.subr.mxu0 0.0
    %2893 = vmatpush1.msra.mxu0 %v2790
    %2894 = vmatprep.subr.mxu0 0.0
    %2895 = vmatpush1.msra.mxu0 %v2791
    %2896 = vmatprep.subr.mxu0 0.0
    %2897 = vmatpush1.msra.mxu0 %v2792
    %2898 = vmatprep.subr.mxu0 0.0
    %2899 = vmatpush1.msra.mxu0 %v2793
    %2900 = vmatprep.subr.mxu0 0.0
    %2901 = vmatpush1.msra.mxu0 %v2794
    %2902 = vmatprep.subr.mxu0 0.0
    %2903 = vmatpush1.msra.mxu0 %v2795
    %2904 = vmatprep.subr.mxu0 0.0
    %2905 = vmatpush1.msra.mxu0 %v2796
    %2906 = vmatprep.subr.mxu0 0.0
    %2907 = vmatpush1.msra.mxu0 %v2797
    %2908 = vmatprep.subr.mxu0 0.0
    %2909 = vmatpush1.msra.mxu0 0.0
    %2910 = vmatprep.subr.mxu0 0.0
    %2911 = vmatpush1.msra.mxu0 0.0
    %2912 = vmatprep.subr.mxu0 0.0
    %2913 = vmatpush1.msra.mxu0 0.0
    %2914 = vmatprep.subr.mxu0 0.0
    %2915 = vmatpush1.msra.mxu0 0.0
    %2916 = vmatprep.subr.mxu0 0.0
    %2917 = vmatpush1.msra.mxu0 0.0
    %2918 = vmatprep.subr.mxu0 0.0
    %2919 = vmatpush1.msra.mxu0 0.0
    %2920 = vmatprep.subr.mxu0 0.0
    %2921 = vmatpush1.msra.mxu0 0.0
    %2922 = vmatprep.subr.mxu0 0.0
    %2923 = vmatpush1.msra.mxu0 0.0
    %2924 = vmatprep.subr.mxu0 0.0
    %2925 = vmatpush1.msra.mxu0 0.0
    %2926 = vmatprep.subr.mxu0 0.0
    %2927 = vmatpush1.msra.mxu0 0.0
    %2928 = vmatprep.subr.mxu0 0.0
    %2929 = vmatpush1.msra.mxu0 0.0
    %2930 = vmatprep.subr.mxu0 0.0
    %2931 = vmatpush1.msra.mxu0 0.0
    %2932 = vmatprep.subr.mxu0 0.0
    %2933 = vmatpush1.msra.mxu0 0.0
    %2934 = vmatprep.subr.mxu0 0.0
    %2935 = vmatpush1.msra.mxu0 0.0
    %2936 = vmatprep.subr.mxu0 0.0
    %2937 = vmatpush1.msra.mxu0 0.0
    %2938 = vmatprep.subr.mxu0 0.0
    %2939 = vmatpush1.msra.mxu0 0.0
    %2940 = vmatprep.subr.mxu0 0.0
    %2941 = vmatpush1.msra.mxu0 0.0
    %2942 = vmatprep.subr.mxu0 0.0
    %2943 = vmatpush1.msra.mxu0 0.0
    %2944 = vmatprep.subr.mxu0 0.0
    %2945 = vmatpush1.msra.mxu0 0.0
    %2946 = vmatprep.subr.mxu0 0.0
    %2947 = vmatpush1.msra.mxu0 0.0
    %2948 = vmatprep.subr.mxu0 0.0
    %2949 = vmatpush1.msra.mxu0 0.0
    %2950 = vmatprep.subr.mxu0 0.0
    %2951 = vmatpush1.msra.mxu0 0.0
    %2952 = vmatprep.subr.mxu0 0.0
    %2953 = vmatpush1.msra.mxu0 0.0
    %2954 = vmatprep.subr.mxu0 0.0
    %2955 = vmatpush1.msra.mxu0 0.0
    %2956 = vmatprep.mubr.f32.mxu0 0.0
    %2957 = vmatmul.mubr.f32.gmra.mrb[0].mxu0 %v2890
    %v2958 = vpop.f32.mrb[0].mxu0
    %v2959 = vadd.f32 %v2886, %v2958
    %v2960 = vpop.f32.mrb[0].mxu0
    %2961 = vdwg.mxu0
    %s2962 = scalar_lea.vmem [#allocation3], 2
    %v2963 = vld [vmem:[%s2962] ss:$16 sm:$0x3]
    %v2964 = vld [vmem:[%s2962] ss:$16 sm:$0xc]
    %v2965 = vor.u32 %v2963, %v2964
    %v2966 = vld [vmem:[%s2962] ss:$16 sm:$0x30]
    %v2967 = vor.u32 %v2965, %v2966
    %v2968 = vld [vmem:[%s2962] ss:$16 sm:$0xc0]
    %v2969 = vor.u32 %v2967, %v2968
    %s2970 = scalar_lea.vmem [#allocation7], 128
    %v2971 = vld [vmem:[%s2970] sm:$0xff]
    %v2972 = vld [vmem:[%s2970 + $0x8] sm:$0xff]
    %v2973 = vld [vmem:[%s2970 + $0x10] sm:$0xff]
    %v2974 = vld [vmem:[%s2970 + $0x18] sm:$0xff]
    %v2975 = vld [vmem:[%s2970 + $0x20] sm:$0xff]
    %v2976 = vld [vmem:[%s2970 + $0x28] sm:$0xff]
    %v2977 = vld [vmem:[%s2970 + $0x30] sm:$0xff]
    %v2978 = vld [vmem:[%s2970 + $0x38] sm:$0xff]
    %v2980 = vsel %vm2815, %v2969, 0
    %2982 = vmatprep.subr.mxu0 0.0
    %2983 = vmatpush1.msra.mxu0 %v2971
    %2984 = vmatprep.subr.mxu0 0.0
    %2985 = vmatpush1.msra.mxu0 %v2972
    %2986 = vmatprep.subr.mxu0 0.0
    %2987 = vmatpush1.msra.mxu0 %v2973
    %2988 = vmatprep.subr.mxu0 0.0
    %2989 = vmatpush1.msra.mxu0 %v2974
    %2990 = vmatprep.subr.mxu0 0.0
    %2991 = vmatpush1.msra.mxu0 %v2975
    %2992 = vmatprep.subr.mxu0 0.0
    %2993 = vmatpush1.msra.mxu0 %v2976
    %2994 = vmatprep.subr.mxu0 0.0
    %2995 = vmatpush1.msra.mxu0 %v2977
    %2996 = vmatprep.subr.mxu0 0.0
    %2997 = vmatpush1.msra.mxu0 %v2978
    %2998 = vmatprep.subr.mxu0 0.0
    %2999 = vmatpush1.msra.mxu0 0.0
    %3000 = vmatprep.subr.mxu0 0.0
    %3001 = vmatpush1.msra.mxu0 0.0
    %3002 = vmatprep.subr.mxu0 0.0
    %3003 = vmatpush1.msra.mxu0 0.0
    %3004 = vmatprep.subr.mxu0 0.0
    %3005 = vmatpush1.msra.mxu0 0.0
    %3006 = vmatprep.subr.mxu0 0.0
    %3007 = vmatpush1.msra.mxu0 0.0
    %3008 = vmatprep.subr.mxu0 0.0
    %3009 = vmatpush1.msra.mxu0 0.0
    %3010 = vmatprep.subr.mxu0 0.0
    %3011 = vmatpush1.msra.mxu0 0.0
    %3012 = vmatprep.subr.mxu0 0.0
    %3013 = vmatpush1.msra.mxu0 0.0
    %3014 = vmatprep.subr.mxu0 0.0
    %3015 = vmatpush1.msra.mxu0 0.0
    %3016 = vmatprep.subr.mxu0 0.0
    %3017 = vmatpush1.msra.mxu0 0.0
    %3018 = vmatprep.subr.mxu0 0.0
    %3019 = vmatpush1.msra.mxu0 0.0
    %3020 = vmatprep.subr.mxu0 0.0
    %3021 = vmatpush1.msra.mxu0 0.0
    %3022 = vmatprep.subr.mxu0 0.0
    %3023 = vmatpush1.msra.mxu0 0.0
    %3024 = vmatprep.subr.mxu0 0.0
    %3025 = vmatpush1.msra.mxu0 0.0
    %3026 = vmatprep.subr.mxu0 0.0
    %3027 = vmatpush1.msra.mxu0 0.0
    %3028 = vmatprep.subr.mxu0 0.0
    %3029 = vmatpush1.msra.mxu0 0.0
    %3030 = vmatprep.subr.mxu0 0.0
    %3031 = vmatpush1.msra.mxu0 0.0
    %3032 = vmatprep.subr.mxu0 0.0
    %3033 = vmatpush1.msra.mxu0 0.0
    %3034 = vmatprep.subr.mxu0 0.0
    %3035 = vmatpush1.msra.mxu0 0.0
    %3036 = vmatprep.subr.mxu0 0.0
    %3037 = vmatpush1.msra.mxu0 0.0
    %3038 = vmatprep.subr.mxu0 0.0
    %3039 = vmatpush1.msra.mxu0 0.0
    %3040 = vmatprep.subr.mxu0 0.0
    %3041 = vmatpush1.msra.mxu0 0.0
    %3042 = vmatprep.subr.mxu0 0.0
    %3043 = vmatpush1.msra.mxu0 0.0
    %3044 = vmatprep.subr.mxu0 0.0
    %3045 = vmatpush1.msra.mxu0 0.0
    %3046 = vmatprep.mubr.f32.mxu0 0.0
    %3047 = vmatmul.mubr.f32.gmra.mrb[0].mxu0 %v2980
    %v3048 = vpop.f32.mrb[0].mxu0
    %v3049 = vadd.f32 0.0, %v3048
    %v3050 = vpop.f32.mrb[0].mxu0
    %3051 = vdwg.mxu0
    %v3052 = vadd.f32 %v2959, %v3049
    %s3053 = scalar_lea.vmem [#allocation3], 3
    %v3054 = vld [vmem:[%s3053] ss:$16 sm:$0x3]
    %v3055 = vld [vmem:[%s3053] ss:$16 sm:$0xc]
    %v3056 = vor.u32 %v3054, %v3055
    %v3057 = vld [vmem:[%s3053] ss:$16 sm:$0x30]
    %v3058 = vor.u32 %v3056, %v3057
    %v3059 = vld [vmem:[%s3053] ss:$16 sm:$0xc0]
    %v3060 = vor.u32 %v3058, %v3059
    %s3061 = scalar_lea.vmem [#allocation7], 192
    %v3062 = vld [vmem:[%s3061] sm:$0xff]
    %v3063 = vld [vmem:[%s3061 + $0x8] sm:$0xff]
    %v3064 = vld [vmem:[%s3061 + $0x10] sm:$0xff]
    %v3065 = vld [vmem:[%s3061 + $0x18] sm:$0xff]
    %v3066 = vld [vmem:[%s3061 + $0x20] sm:$0xff]
    %v3067 = vld [vmem:[%s3061 + $0x28] sm:$0xff]
    %v3068 = vld [vmem:[%s3061 + $0x30] sm:$0xff]
    %v3069 = vld [vmem:[%s3061 + $0x38] sm:$0xff]
    %v3071 = vsel %vm2815, %v3060, 0
    %3073 = vmatprep.subr.mxu0 0.0
    %3074 = vmatpush1.msra.mxu0 %v3062
    %3075 = vmatprep.subr.mxu0 0.0
    %3076 = vmatpush1.msra.mxu0 %v3063
    %3077 = vmatprep.subr.mxu0 0.0
    %3078 = vmatpush1.msra.mxu0 %v3064
    %3079 = vmatprep.subr.mxu0 0.0
    %3080 = vmatpush1.msra.mxu0 %v3065
    %3081 = vmatprep.subr.mxu0 0.0
    %3082 = vmatpush1.msra.mxu0 %v3066
    %3083 = vmatprep.subr.mxu0 0.0
    %3084 = vmatpush1.msra.mxu0 %v3067
    %3085 = vmatprep.subr.mxu0 0.0
    %3086 = vmatpush1.msra.mxu0 %v3068
    %3087 = vmatprep.subr.mxu0 0.0
    %3088 = vmatpush1.msra.mxu0 %v3069
    %3089 = vmatprep.subr.mxu0 0.0
    %3090 = vmatpush1.msra.mxu0 0.0
    %3091 = vmatprep.subr.mxu0 0.0
    %3092 = vmatpush1.msra.mxu0 0.0
    %3093 = vmatprep.subr.mxu0 0.0
    %3094 = vmatpush1.msra.mxu0 0.0
    %3095 = vmatprep.subr.mxu0 0.0
    %3096 = vmatpush1.msra.mxu0 0.0
    %3097 = vmatprep.subr.mxu0 0.0
    %3098 = vmatpush1.msra.mxu0 0.0
    %3099 = vmatprep.subr.mxu0 0.0
    %3100 = vmatpush1.msra.mxu0 0.0
    %3101 = vmatprep.subr.mxu0 0.0
    %3102 = vmatpush1.msra.mxu0 0.0
    %3103 = vmatprep.subr.mxu0 0.0
    %3104 = vmatpush1.msra.mxu0 0.0
    %3105 = vmatprep.subr.mxu0 0.0
    %3106 = vmatpush1.msra.mxu0 0.0
    %3107 = vmatprep.subr.mxu0 0.0
    %3108 = vmatpush1.msra.mxu0 0.0
    %3109 = vmatprep.subr.mxu0 0.0
    %3110 = vmatpush1.msra.mxu0 0.0
    %3111 = vmatprep.subr.mxu0 0.0
    %3112 = vmatpush1.msra.mxu0 0.0
    %3113 = vmatprep.subr.mxu0 0.0
    %3114 = vmatpush1.msra.mxu0 0.0
    %3115 = vmatprep.subr.mxu0 0.0
    %3116 = vmatpush1.msra.mxu0 0.0
    %3117 = vmatprep.subr.mxu0 0.0
    %3118 = vmatpush1.msra.mxu0 0.0
    %3119 = vmatprep.subr.mxu0 0.0
    %3120 = vmatpush1.msra.mxu0 0.0
    %3121 = vmatprep.subr.mxu0 0.0
    %3122 = vmatpush1.msra.mxu0 0.0
    %3123 = vmatprep.subr.mxu0 0.0
    %3124 = vmatpush1.msra.mxu0 0.0
    %3125 = vmatprep.subr.mxu0 0.0
    %3126 = vmatpush1.msra.mxu0 0.0
    %3127 = vmatprep.subr.mxu0 0.0
    %3128 = vmatpush1.msra.mxu0 0.0
    %3129 = vmatprep.subr.mxu0 0.0
    %3130 = vmatpush1.msra.mxu0 0.0
    %3131 = vmatprep.subr.mxu0 0.0
    %3132 = vmatpush1.msra.mxu0 0.0
    %3133 = vmatprep.subr.mxu0 0.0
    %3134 = vmatpush1.msra.mxu0 0.0
    %3135 = vmatprep.subr.mxu0 0.0
    %3136 = vmatpush1.msra.mxu0 0.0
    %3137 = vmatprep.mubr.f32.mxu0 0.0
    %3138 = vmatmul.mubr.f32.gmra.mrb[0].mxu0 %v3071
    %v3139 = vpop.f32.mrb[0].mxu0
    %v3140 = vadd.f32 0.0, %v3139
    %v3141 = vpop.f32.mrb[0].mxu0
    %3142 = vdwg.mxu0
    %v3143 = vadd.f32 %v3052, %v3140
    %s3144 = scalar_lea.vmem [#allocation3], 4
    %v3145 = vld [vmem:[%s3144] ss:$16 sm:$0x3]
    %v3146 = vld [vmem:[%s3144] ss:$16 sm:$0xc]
    %v3147 = vor.u32 %v3145, %v3146
    %v3148 = vld [vmem:[%s3144] ss:$16 sm:$0x30]
    %v3149 = vor.u32 %v3147, %v3148
    %v3150 = vld [vmem:[%s3144] ss:$16 sm:$0xc0]
    %v3151 = vor.u32 %v3149, %v3150
    %s3152 = scalar_lea.vmem [#allocation7], 256
    %v3153 = vld [vmem:[%s3152] sm:$0xff]
    %v3154 = vld [vmem:[%s3152 + $0x8] sm:$0xff]
    %v3155 = vld [vmem:[%s3152 + $0x10] sm:$0xff]
    %v3156 = vld [vmem:[%s3152 + $0x18] sm:$0xff]
    %v3157 = vld [vmem:[%s3152 + $0x20] sm:$0xff]
    %v3158 = vld [vmem:[%s3152 + $0x28] sm:$0xff]
    %v3159 = vld [vmem:[%s3152 + $0x30] sm:$0xff]
    %v3160 = vld [vmem:[%s3152 + $0x38] sm:$0xff]
    %v3162 = vsel %vm2815, %v3151, 0
    %3164 = vmatprep.subr.mxu0 0.0
    %3165 = vmatpush1.msra.mxu0 %v3153
    %3166 = vmatprep.subr.mxu0 0.0
    %3167 = vmatpush1.msra.mxu0 %v3154
    %3168 = vmatprep.subr.mxu0 0.0
    %3169 = vmatpush1.msra.mxu0 %v3155
    %3170 = vmatprep.subr.mxu0 0.0
    %3171 = vmatpush1.msra.mxu0 %v3156
    %3172 = vmatprep.subr.mxu0 0.0
    %3173 = vmatpush1.msra.mxu0 %v3157
    %3174 = vmatprep.subr.mxu0 0.0
    %3175 = vmatpush1.msra.mxu0 %v3158
    %3176 = vmatprep.subr.mxu0 0.0
    %3177 = vmatpush1.msra.mxu0 %v3159
    %3178 = vmatprep.subr.mxu0 0.0
    %3179 = vmatpush1.msra.mxu0 %v3160
    %3180 = vmatprep.subr.mxu0 0.0
    %3181 = vmatpush1.msra.mxu0 0.0
    %3182 = vmatprep.subr.mxu0 0.0
    %3183 = vmatpush1.msra.mxu0 0.0
    %3184 = vmatprep.subr.mxu0 0.0
    %3185 = vmatpush1.msra.mxu0 0.0
    %3186 = vmatprep.subr.mxu0 0.0
    %3187 = vmatpush1.msra.mxu0 0.0
    %3188 = vmatprep.subr.mxu0 0.0
    %3189 = vmatpush1.msra.mxu0 0.0
    %3190 = vmatprep.subr.mxu0 0.0
    %3191 = vmatpush1.msra.mxu0 0.0
    %3192 = vmatprep.subr.mxu0 0.0
    %3193 = vmatpush1.msra.mxu0 0.0
    %3194 = vmatprep.subr.mxu0 0.0
    %3195 = vmatpush1.msra.mxu0 0.0
    %3196 = vmatprep.subr.mxu0 0.0
    %3197 = vmatpush1.msra.mxu0 0.0
    %3198 = vmatprep.subr.mxu0 0.0
    %3199 = vmatpush1.msra.mxu0 0.0
    %3200 = vmatprep.subr.mxu0 0.0
    %3201 = vmatpush1.msra.mxu0 0.0
    %3202 = vmatprep.subr.mxu0 0.0
    %3203 = vmatpush1.msra.mxu0 0.0
    %3204 = vmatprep.subr.mxu0 0.0
    %3205 = vmatpush1.msra.mxu0 0.0
    %3206 = vmatprep.subr.mxu0 0.0
    %3207 = vmatpush1.msra.mxu0 0.0
    %3208 = vmatprep.subr.mxu0 0.0
    %3209 = vmatpush1.msra.mxu0 0.0
    %3210 = vmatprep.subr.mxu0 0.0
    %3211 = vmatpush1.msra.mxu0 0.0
    %3212 = vmatprep.subr.mxu0 0.0
    %3213 = vmatpush1.msra.mxu0 0.0
    %3214 = vmatprep.subr.mxu0 0.0
    %3215 = vmatpush1.msra.mxu0 0.0
    %3216 = vmatprep.subr.mxu0 0.0
    %3217 = vmatpush1.msra.mxu0 0.0
    %3218 = vmatprep.subr.mxu0 0.0
    %3219 = vmatpush1.msra.mxu0 0.0
    %3220 = vmatprep.subr.mxu0 0.0
    %3221 = vmatpush1.msra.mxu0 0.0
    %3222 = vmatprep.subr.mxu0 0.0
    %3223 = vmatpush1.msra.mxu0 0.0
    %3224 = vmatprep.subr.mxu0 0.0
    %3225 = vmatpush1.msra.mxu0 0.0
    %3226 = vmatprep.subr.mxu0 0.0
    %3227 = vmatpush1.msra.mxu0 0.0
    %3228 = vmatprep.mubr.f32.mxu0 0.0
    %3229 = vmatmul.mubr.f32.gmra.mrb[0].mxu0 %v3162
    %v3230 = vpop.f32.mrb[0].mxu0
    %v3231 = vadd.f32 0.0, %v3230
    %v3232 = vpop.f32.mrb[0].mxu0
    %3233 = vdwg.mxu0
    %v3234 = vadd.f32 %v3143, %v3231
    %s3235 = scalar_lea.vmem [#allocation3], 5
    %v3236 = vld [vmem:[%s3235] ss:$16 sm:$0x3]
    %v3237 = vld [vmem:[%s3235] ss:$16 sm:$0xc]
    %v3238 = vor.u32 %v3236, %v3237
    %v3239 = vld [vmem:[%s3235] ss:$16 sm:$0x30]
    %v3240 = vor.u32 %v3238, %v3239
    %v3241 = vld [vmem:[%s3235] ss:$16 sm:$0xc0]
    %v3242 = vor.u32 %v3240, %v3241
    %s3243 = scalar_lea.vmem [#allocation7], 320
    %v3244 = vld [vmem:[%s3243] sm:$0xff]
    %v3245 = vld [vmem:[%s3243 + $0x8] sm:$0xff]
    %v3246 = vld [vmem:[%s3243 + $0x10] sm:$0xff]
    %v3247 = vld [vmem:[%s3243 + $0x18] sm:$0xff]
    %v3248 = vld [vmem:[%s3243 + $0x20] sm:$0xff]
    %v3249 = vld [vmem:[%s3243 + $0x28] sm:$0xff]
    %v3250 = vld [vmem:[%s3243 + $0x30] sm:$0xff]
    %v3251 = vld [vmem:[%s3243 + $0x38] sm:$0xff]
    %v3253 = vsel %vm2815, %v3242, 0
    %3255 = vmatprep.subr.mxu0 0.0
    %3256 = vmatpush1.msra.mxu0 %v3244
    %3257 = vmatprep.subr.mxu0 0.0
    %3258 = vmatpush1.msra.mxu0 %v3245
    %3259 = vmatprep.subr.mxu0 0.0
    %3260 = vmatpush1.msra.mxu0 %v3246
    %3261 = vmatprep.subr.mxu0 0.0
    %3262 = vmatpush1.msra.mxu0 %v3247
    %3263 = vmatprep.subr.mxu0 0.0
    %3264 = vmatpush1.msra.mxu0 %v3248
    %3265 = vmatprep.subr.mxu0 0.0
    %3266 = vmatpush1.msra.mxu0 %v3249
    %3267 = vmatprep.subr.mxu0 0.0
    %3268 = vmatpush1.msra.mxu0 %v3250
    %3269 = vmatprep.subr.mxu0 0.0
    %3270 = vmatpush1.msra.mxu0 %v3251
    %3271 = vmatprep.subr.mxu0 0.0
    %3272 = vmatpush1.msra.mxu0 0.0
    %3273 = vmatprep.subr.mxu0 0.0
    %3274 = vmatpush1.msra.mxu0 0.0
    %3275 = vmatprep.subr.mxu0 0.0
    %3276 = vmatpush1.msra.mxu0 0.0
    %3277 = vmatprep.subr.mxu0 0.0
    %3278 = vmatpush1.msra.mxu0 0.0
    %3279 = vmatprep.subr.mxu0 0.0
    %3280 = vmatpush1.msra.mxu0 0.0
    %3281 = vmatprep.subr.mxu0 0.0
    %3282 = vmatpush1.msra.mxu0 0.0
    %3283 = vmatprep.subr.mxu0 0.0
    %3284 = vmatpush1.msra.mxu0 0.0
    %3285 = vmatprep.subr.mxu0 0.0
    %3286 = vmatpush1.msra.mxu0 0.0
    %3287 = vmatprep.subr.mxu0 0.0
    %3288 = vmatpush1.msra.mxu0 0.0
    %3289 = vmatprep.subr.mxu0 0.0
    %3290 = vmatpush1.msra.mxu0 0.0
    %3291 = vmatprep.subr.mxu0 0.0
    %3292 = vmatpush1.msra.mxu0 0.0
    %3293 = vmatprep.subr.mxu0 0.0
    %3294 = vmatpush1.msra.mxu0 0.0
    %3295 = vmatprep.subr.mxu0 0.0
    %3296 = vmatpush1.msra.mxu0 0.0
    %3297 = vmatprep.subr.mxu0 0.0
    %3298 = vmatpush1.msra.mxu0 0.0
    %3299 = vmatprep.subr.mxu0 0.0
    %3300 = vmatpush1.msra.mxu0 0.0
    %3301 = vmatprep.subr.mxu0 0.0
    %3302 = vmatpush1.msra.mxu0 0.0
    %3303 = vmatprep.subr.mxu0 0.0
    %3304 = vmatpush1.msra.mxu0 0.0
    %3305 = vmatprep.subr.mxu0 0.0
    %3306 = vmatpush1.msra.mxu0 0.0
    %3307 = vmatprep.subr.mxu0 0.0
    %3308 = vmatpush1.msra.mxu0 0.0
    %3309 = vmatprep.subr.mxu0 0.0
    %3310 = vmatpush1.msra.mxu0 0.0
    %3311 = vmatprep.subr.mxu0 0.0
    %3312 = vmatpush1.msra.mxu0 0.0
    %3313 = vmatprep.subr.mxu0 0.0
    %3314 = vmatpush1.msra.mxu0 0.0
    %3315 = vmatprep.subr.mxu0 0.0
    %3316 = vmatpush1.msra.mxu0 0.0
    %3317 = vmatprep.subr.mxu0 0.0
    %3318 = vmatpush1.msra.mxu0 0.0
    %3319 = vmatprep.mubr.f32.mxu0 0.0
    %3320 = vmatmul.mubr.f32.gmra.mrb[0].mxu0 %v3253
    %v3321 = vpop.f32.mrb[0].mxu0
    %v3322 = vadd.f32 0.0, %v3321
    %v3323 = vpop.f32.mrb[0].mxu0
    %3324 = vdwg.mxu0
    %v3325 = vadd.f32 %v3234, %v3322
    %s3326 = scalar_lea.vmem [#allocation3], 6
    %v3327 = vld [vmem:[%s3326] ss:$16 sm:$0x3]
    %v3328 = vld [vmem:[%s3326] ss:$16 sm:$0xc]
    %v3329 = vor.u32 %v3327, %v3328
    %v3330 = vld [vmem:[%s3326] ss:$16 sm:$0x30]
    %v3331 = vor.u32 %v3329, %v3330
    %v3332 = vld [vmem:[%s3326] ss:$16 sm:$0xc0]
    %v3333 = vor.u32 %v3331, %v3332
    %s3334 = scalar_lea.vmem [#allocation7], 384
    %v3335 = vld [vmem:[%s3334] sm:$0xff]
    %v3336 = vld [vmem:[%s3334 + $0x8] sm:$0xff]
    %v3337 = vld [vmem:[%s3334 + $0x10] sm:$0xff]
    %v3338 = vld [vmem:[%s3334 + $0x18] sm:$0xff]
    %v3339 = vld [vmem:[%s3334 + $0x20] sm:$0xff]
    %v3340 = vld [vmem:[%s3334 + $0x28] sm:$0xff]
    %v3341 = vld [vmem:[%s3334 + $0x30] sm:$0xff]
    %v3342 = vld [vmem:[%s3334 + $0x38] sm:$0xff]
    %v3344 = vsel %vm2815, %v3333, 0
    %3346 = vmatprep.subr.mxu0 0.0
    %3347 = vmatpush1.msra.mxu0 %v3335
    %3348 = vmatprep.subr.mxu0 0.0
    %3349 = vmatpush1.msra.mxu0 %v3336
    %3350 = vmatprep.subr.mxu0 0.0
    %3351 = vmatpush1.msra.mxu0 %v3337
    %3352 = vmatprep.subr.mxu0 0.0
    %3353 = vmatpush1.msra.mxu0 %v3338
    %3354 = vmatprep.subr.mxu0 0.0
    %3355 = vmatpush1.msra.mxu0 %v3339
    %3356 = vmatprep.subr.mxu0 0.0
    %3357 = vmatpush1.msra.mxu0 %v3340
    %3358 = vmatprep.subr.mxu0 0.0
    %3359 = vmatpush1.msra.mxu0 %v3341
    %3360 = vmatprep.subr.mxu0 0.0
    %3361 = vmatpush1.msra.mxu0 %v3342
    %3362 = vmatprep.subr.mxu0 0.0
    %3363 = vmatpush1.msra.mxu0 0.0
    %3364 = vmatprep.subr.mxu0 0.0
    %3365 = vmatpush1.msra.mxu0 0.0
    %3366 = vmatprep.subr.mxu0 0.0
    %3367 = vmatpush1.msra.mxu0 0.0
    %3368 = vmatprep.subr.mxu0 0.0
    %3369 = vmatpush1.msra.mxu0 0.0
    %3370 = vmatprep.subr.mxu0 0.0
    %3371 = vmatpush1.msra.mxu0 0.0
    %3372 = vmatprep.subr.mxu0 0.0
    %3373 = vmatpush1.msra.mxu0 0.0
    %3374 = vmatprep.subr.mxu0 0.0
    %3375 = vmatpush1.msra.mxu0 0.0
    %3376 = vmatprep.subr.mxu0 0.0
    %3377 = vmatpush1.msra.mxu0 0.0
    %3378 = vmatprep.subr.mxu0 0.0
    %3379 = vmatpush1.msra.mxu0 0.0
    %3380 = vmatprep.subr.mxu0 0.0
    %3381 = vmatpush1.msra.mxu0 0.0
    %3382 = vmatprep.subr.mxu0 0.0
    %3383 = vmatpush1.msra.mxu0 0.0
    %3384 = vmatprep.subr.mxu0 0.0
    %3385 = vmatpush1.msra.mxu0 0.0
    %3386 = vmatprep.subr.mxu0 0.0
    %3387 = vmatpush1.msra.mxu0 0.0
    %3388 = vmatprep.subr.mxu0 0.0
    %3389 = vmatpush1.msra.mxu0 0.0
    %3390 = vmatprep.subr.mxu0 0.0
    %3391 = vmatpush1.msra.mxu0 0.0
    %3392 = vmatprep.subr.mxu0 0.0
    %3393 = vmatpush1.msra.mxu0 0.0
    %3394 = vmatprep.subr.mxu0 0.0
    %3395 = vmatpush1.msra.mxu0 0.0
    %3396 = vmatprep.subr.mxu0 0.0
    %3397 = vmatpush1.msra.mxu0 0.0
    %3398 = vmatprep.subr.mxu0 0.0
    %3399 = vmatpush1.msra.mxu0 0.0
    %3400 = vmatprep.subr.mxu0 0.0
    %3401 = vmatpush1.msra.mxu0 0.0
    %3402 = vmatprep.subr.mxu0 0.0
    %3403 = vmatpush1.msra.mxu0 0.0
    %3404 = vmatprep.subr.mxu0 0.0
    %3405 = vmatpush1.msra.mxu0 0.0
    %3406 = vmatprep.subr.mxu0 0.0
    %3407 = vmatpush1.msra.mxu0 0.0
    %3408 = vmatprep.subr.mxu0 0.0
    %3409 = vmatpush1.msra.mxu0 0.0
    %3410 = vmatprep.mubr.f32.mxu0 0.0
    %3411 = vmatmul.mubr.f32.gmra.mrb[0].mxu0 %v3344
    %v3412 = vpop.f32.mrb[0].mxu0
    %v3413 = vadd.f32 0.0, %v3412
    %v3414 = vpop.f32.mrb[0].mxu0
    %3415 = vdwg.mxu0
    %v3416 = vadd.f32 %v3325, %v3413
    %s3417 = scalar_lea.vmem [#allocation3], 7
    %v3418 = vld [vmem:[%s3417] ss:$16 sm:$0x3]
    %v3419 = vld [vmem:[%s3417] ss:$16 sm:$0xc]
    %v3420 = vor.u32 %v3418, %v3419
    %v3421 = vld [vmem:[%s3417] ss:$16 sm:$0x30]
    %v3422 = vor.u32 %v3420, %v3421
    %v3423 = vld [vmem:[%s3417] ss:$16 sm:$0xc0]
    %v3424 = vor.u32 %v3422, %v3423
    %s3425 = scalar_lea.vmem [#allocation7], 448
    %v3426 = vld [vmem:[%s3425] sm:$0xff]
    %v3427 = vld [vmem:[%s3425 + $0x8] sm:$0xff]
    %v3428 = vld [vmem:[%s3425 + $0x10] sm:$0xff]
    %v3429 = vld [vmem:[%s3425 + $0x18] sm:$0xff]
    %v3430 = vld [vmem:[%s3425 + $0x20] sm:$0xff]
    %v3431 = vld [vmem:[%s3425 + $0x28] sm:$0xff]
    %v3432 = vld [vmem:[%s3425 + $0x30] sm:$0xff]
    %v3433 = vld [vmem:[%s3425 + $0x38] sm:$0xff]
    %v3435 = vsel %vm2815, %v3424, 0
    %3437 = vmatprep.subr.mxu0 0.0
    %3438 = vmatpush1.msra.mxu0 %v3426
    %3439 = vmatprep.subr.mxu0 0.0
    %3440 = vmatpush1.msra.mxu0 %v3427
    %3441 = vmatprep.subr.mxu0 0.0
    %3442 = vmatpush1.msra.mxu0 %v3428
    %3443 = vmatprep.subr.mxu0 0.0
    %3444 = vmatpush1.msra.mxu0 %v3429
    %3445 = vmatprep.subr.mxu0 0.0
    %3446 = vmatpush1.msra.mxu0 %v3430
    %3447 = vmatprep.subr.mxu0 0.0
    %3448 = vmatpush1.msra.mxu0 %v3431
    %3449 = vmatprep.subr.mxu0 0.0
    %3450 = vmatpush1.msra.mxu0 %v3432
    %3451 = vmatprep.subr.mxu0 0.0
    %3452 = vmatpush1.msra.mxu0 %v3433
    %3453 = vmatprep.subr.mxu0 0.0
    %3454 = vmatpush1.msra.mxu0 0.0
    %3455 = vmatprep.subr.mxu0 0.0
    %3456 = vmatpush1.msra.mxu0 0.0
    %3457 = vmatprep.subr.mxu0 0.0
    %3458 = vmatpush1.msra.mxu0 0.0
    %3459 = vmatprep.subr.mxu0 0.0
    %3460 = vmatpush1.msra.mxu0 0.0
    %3461 = vmatprep.subr.mxu0 0.0
    %3462 = vmatpush1.msra.mxu0 0.0
    %3463 = vmatprep.subr.mxu0 0.0
    %3464 = vmatpush1.msra.mxu0 0.0
    %3465 = vmatprep.subr.mxu0 0.0
    %3466 = vmatpush1.msra.mxu0 0.0
    %3467 = vmatprep.subr.mxu0 0.0
    %3468 = vmatpush1.msra.mxu0 0.0
    %3469 = vmatprep.subr.mxu0 0.0
    %3470 = vmatpush1.msra.mxu0 0.0
    %3471 = vmatprep.subr.mxu0 0.0
    %3472 = vmatpush1.msra.mxu0 0.0
    %3473 = vmatprep.subr.mxu0 0.0
    %3474 = vmatpush1.msra.mxu0 0.0
    %3475 = vmatprep.subr.mxu0 0.0
    %3476 = vmatpush1.msra.mxu0 0.0
    %3477 = vmatprep.subr.mxu0 0.0
    %3478 = vmatpush1.msra.mxu0 0.0
    %3479 = vmatprep.subr.mxu0 0.0
    %3480 = vmatpush1.msra.mxu0 0.0
    %3481 = vmatprep.subr.mxu0 0.0
    %3482 = vmatpush1.msra.mxu0 0.0
    %3483 = vmatprep.subr.mxu0 0.0
    %3484 = vmatpush1.msra.mxu0 0.0
    %3485 = vmatprep.subr.mxu0 0.0
    %3486 = vmatpush1.msra.mxu0 0.0
    %3487 = vmatprep.subr.mxu0 0.0
    %3488 = vmatpush1.msra.mxu0 0.0
    %3489 = vmatprep.subr.mxu0 0.0
    %3490 = vmatpush1.msra.mxu0 0.0
    %3491 = vmatprep.subr.mxu0 0.0
    %3492 = vmatpush1.msra.mxu0 0.0
    %3493 = vmatprep.subr.mxu0 0.0
    %3494 = vmatpush1.msra.mxu0 0.0
    %3495 = vmatprep.subr.mxu0 0.0
    %3496 = vmatpush1.msra.mxu0 0.0
    %3497 = vmatprep.subr.mxu0 0.0
    %3498 = vmatpush1.msra.mxu0 0.0
    %3499 = vmatprep.subr.mxu0 0.0
    %3500 = vmatpush1.msra.mxu0 0.0
    %3501 = vmatprep.mubr.f32.mxu0 0.0
    %3502 = vmatmul.mubr.f32.gmra.mrb[0].mxu0 %v3435
    %v3503 = vpop.f32.mrb[0].mxu0
    %v3504 = vadd.f32 0.0, %v3503
    %v3505 = vpop.f32.mrb[0].mxu0
    %3506 = vdwg.mxu0
    %v3507 = vadd.f32 %v3416, %v3504
    %s3508 = scalar_lea.vmem [#allocation3], 8
    %v3509 = vld [vmem:[%s3508] ss:$16 sm:$0x3]
    %v3510 = vld [vmem:[%s3508] ss:$16 sm:$0xc]
    %v3511 = vor.u32 %v3509, %v3510
    %v3512 = vld [vmem:[%s3508] ss:$16 sm:$0x30]
    %v3513 = vor.u32 %v3511, %v3512
    %v3514 = vld [vmem:[%s3508] ss:$16 sm:$0xc0]
    %v3515 = vor.u32 %v3513, %v3514
    %s3516 = scalar_lea.vmem [#allocation7], 512
    %v3517 = vld [vmem:[%s3516] sm:$0xff]
    %v3518 = vld [vmem:[%s3516 + $0x8] sm:$0xff]
    %v3519 = vld [vmem:[%s3516 + $0x10] sm:$0xff]
    %v3520 = vld [vmem:[%s3516 + $0x18] sm:$0xff]
    %v3521 = vld [vmem:[%s3516 + $0x20] sm:$0xff]
    %v3522 = vld [vmem:[%s3516 + $0x28] sm:$0xff]
    %v3523 = vld [vmem:[%s3516 + $0x30] sm:$0xff]
    %v3524 = vld [vmem:[%s3516 + $0x38] sm:$0xff]
    %v3526 = vsel %vm2815, %v3515, 0
    %3528 = vmatprep.subr.mxu0 0.0
    %3529 = vmatpush1.msra.mxu0 %v3517
    %3530 = vmatprep.subr.mxu0 0.0
    %3531 = vmatpush1.msra.mxu0 %v3518
    %3532 = vmatprep.subr.mxu0 0.0
    %3533 = vmatpush1.msra.mxu0 %v3519
    %3534 = vmatprep.subr.mxu0 0.0
    %3535 = vmatpush1.msra.mxu0 %v3520
    %3536 = vmatprep.subr.mxu0 0.0
    %3537 = vmatpush1.msra.mxu0 %v3521
    %3538 = vmatprep.subr.mxu0 0.0
    %3539 = vmatpush1.msra.mxu0 %v3522
    %3540 = vmatprep.subr.mxu0 0.0
    %3541 = vmatpush1.msra.mxu0 %v3523
    %3542 = vmatprep.subr.mxu0 0.0
    %3543 = vmatpush1.msra.mxu0 %v3524
    %3544 = vmatprep.subr.mxu0 0.0
    %3545 = vmatpush1.msra.mxu0 0.0
    %3546 = vmatprep.subr.mxu0 0.0
    %3547 = vmatpush1.msra.mxu0 0.0
    %3548 = vmatprep.subr.mxu0 0.0
    %3549 = vmatpush1.msra.mxu0 0.0
    %3550 = vmatprep.subr.mxu0 0.0
    %3551 = vmatpush1.msra.mxu0 0.0
    %3552 = vmatprep.subr.mxu0 0.0
    %3553 = vmatpush1.msra.mxu0 0.0
    %3554 = vmatprep.subr.mxu0 0.0
    %3555 = vmatpush1.msra.mxu0 0.0
    %3556 = vmatprep.subr.mxu0 0.0
    %3557 = vmatpush1.msra.mxu0 0.0
    %3558 = vmatprep.subr.mxu0 0.0
    %3559 = vmatpush1.msra.mxu0 0.0
    %3560 = vmatprep.subr.mxu0 0.0
    %3561 = vmatpush1.msra.mxu0 0.0
    %3562 = vmatprep.subr.mxu0 0.0
    %3563 = vmatpush1.msra.mxu0 0.0
    %3564 = vmatprep.subr.mxu0 0.0
    %3565 = vmatpush1.msra.mxu0 0.0
    %3566 = vmatprep.subr.mxu0 0.0
    %3567 = vmatpush1.msra.mxu0 0.0
    %3568 = vmatprep.subr.mxu0 0.0
    %3569 = vmatpush1.msra.mxu0 0.0
    %3570 = vmatprep.subr.mxu0 0.0
    %3571 = vmatpush1.msra.mxu0 0.0
    %3572 = vmatprep.subr.mxu0 0.0
    %3573 = vmatpush1.msra.mxu0 0.0
    %3574 = vmatprep.subr.mxu0 0.0
    %3575 = vmatpush1.msra.mxu0 0.0
    %3576 = vmatprep.subr.mxu0 0.0
    %3577 = vmatpush1.msra.mxu0 0.0
    %3578 = vmatprep.subr.mxu0 0.0
    %3579 = vmatpush1.msra.mxu0 0.0
    %3580 = vmatprep.subr.mxu0 0.0
    %3581 = vmatpush1.msra.mxu0 0.0
    %3582 = vmatprep.subr.mxu0 0.0
    %3583 = vmatpush1.msra.mxu0 0.0
    %3584 = vmatprep.subr.mxu0 0.0
    %3585 = vmatpush1.msra.mxu0 0.0
    %3586 = vmatprep.subr.mxu0 0.0
    %3587 = vmatpush1.msra.mxu0 0.0
    %3588 = vmatprep.subr.mxu0 0.0
    %3589 = vmatpush1.msra.mxu0 0.0
    %3590 = vmatprep.subr.mxu0 0.0
    %3591 = vmatpush1.msra.mxu0 0.0
    %3592 = vmatprep.mubr.f32.mxu0 0.0
    %3593 = vmatmul.mubr.f32.gmra.mrb[0].mxu0 %v3526
    %v3594 = vpop.f32.mrb[0].mxu0
    %v3595 = vadd.f32 0.0, %v3594
    %v3596 = vpop.f32.mrb[0].mxu0
    %3597 = vdwg.mxu0
    %v3598 = vadd.f32 %v3507, %v3595
    %s3599 = scalar_lea.vmem [#allocation3], 9
    %v3600 = vld [vmem:[%s3599] ss:$16 sm:$0x3]
    %v3601 = vld [vmem:[%s3599] ss:$16 sm:$0xc]
    %v3602 = vor.u32 %v3600, %v3601
    %v3603 = vld [vmem:[%s3599] ss:$16 sm:$0x30]
    %v3604 = vor.u32 %v3602, %v3603
    %v3605 = vld [vmem:[%s3599] ss:$16 sm:$0xc0]
    %v3606 = vor.u32 %v3604, %v3605
    %s3607 = scalar_lea.vmem [#allocation7], 576
    %v3608 = vld [vmem:[%s3607] sm:$0xff]
    %v3609 = vld [vmem:[%s3607 + $0x8] sm:$0xff]
    %v3610 = vld [vmem:[%s3607 + $0x10] sm:$0xff]
    %v3611 = vld [vmem:[%s3607 + $0x18] sm:$0xff]
    %v3612 = vld [vmem:[%s3607 + $0x20] sm:$0xff]
    %v3613 = vld [vmem:[%s3607 + $0x28] sm:$0xff]
    %v3614 = vld [vmem:[%s3607 + $0x30] sm:$0xff]
    %v3615 = vld [vmem:[%s3607 + $0x38] sm:$0xff]
    %v3617 = vsel %vm2815, %v3606, 0
    %3619 = vmatprep.subr.mxu0 0.0
    %3620 = vmatpush1.msra.mxu0 %v3608
    %3621 = vmatprep.subr.mxu0 0.0
    %3622 = vmatpush1.msra.mxu0 %v3609
    %3623 = vmatprep.subr.mxu0 0.0
    %3624 = vmatpush1.msra.mxu0 %v3610
    %3625 = vmatprep.subr.mxu0 0.0
    %3626 = vmatpush1.msra.mxu0 %v3611
    %3627 = vmatprep.subr.mxu0 0.0
    %3628 = vmatpush1.msra.mxu0 %v3612
    %3629 = vmatprep.subr.mxu0 0.0
    %3630 = vmatpush1.msra.mxu0 %v3613
    %3631 = vmatprep.subr.mxu0 0.0
    %3632 = vmatpush1.msra.mxu0 %v3614
    %3633 = vmatprep.subr.mxu0 0.0
    %3634 = vmatpush1.msra.mxu0 %v3615
    %3635 = vmatprep.subr.mxu0 0.0
    %3636 = vmatpush1.msra.mxu0 0.0
    %3637 = vmatprep.subr.mxu0 0.0
    %3638 = vmatpush1.msra.mxu0 0.0
    %3639 = vmatprep.subr.mxu0 0.0
    %3640 = vmatpush1.msra.mxu0 0.0
    %3641 = vmatprep.subr.mxu0 0.0
    %3642 = vmatpush1.msra.mxu0 0.0
    %3643 = vmatprep.subr.mxu0 0.0
    %3644 = vmatpush1.msra.mxu0 0.0
    %3645 = vmatprep.subr.mxu0 0.0
    %3646 = vmatpush1.msra.mxu0 0.0
    %3647 = vmatprep.subr.mxu0 0.0
    %3648 = vmatpush1.msra.mxu0 0.0
    %3649 = vmatprep.subr.mxu0 0.0
    %3650 = vmatpush1.msra.mxu0 0.0
    %3651 = vmatprep.subr.mxu0 0.0
    %3652 = vmatpush1.msra.mxu0 0.0
    %3653 = vmatprep.subr.mxu0 0.0
    %3654 = vmatpush1.msra.mxu0 0.0
    %3655 = vmatprep.subr.mxu0 0.0
    %3656 = vmatpush1.msra.mxu0 0.0
    %3657 = vmatprep.subr.mxu0 0.0
    %3658 = vmatpush1.msra.mxu0 0.0
    %3659 = vmatprep.subr.mxu0 0.0
    %3660 = vmatpush1.msra.mxu0 0.0
    %3661 = vmatprep.subr.mxu0 0.0
    %3662 = vmatpush1.msra.mxu0 0.0
    %3663 = vmatprep.subr.mxu0 0.0
    %3664 = vmatpush1.msra.mxu0 0.0
    %3665 = vmatprep.subr.mxu0 0.0
    %3666 = vmatpush1.msra.mxu0 0.0
    %3667 = vmatprep.subr.mxu0 0.0
    %3668 = vmatpush1.msra.mxu0 0.0
    %3669 = vmatprep.subr.mxu0 0.0
    %3670 = vmatpush1.msra.mxu0 0.0
    %3671 = vmatprep.subr.mxu0 0.0
    %3672 = vmatpush1.msra.mxu0 0.0
    %3673 = vmatprep.subr.mxu0 0.0
    %3674 = vmatpush1.msra.mxu0 0.0
    %3675 = vmatprep.subr.mxu0 0.0
    %3676 = vmatpush1.msra.mxu0 0.0
    %3677 = vmatprep.subr.mxu0 0.0
    %3678 = vmatpush1.msra.mxu0 0.0
    %3679 = vmatprep.subr.mxu0 0.0
    %3680 = vmatpush1.msra.mxu0 0.0
    %3681 = vmatprep.subr.mxu0 0.0
    %3682 = vmatpush1.msra.mxu0 0.0
    %3683 = vmatprep.mubr.f32.mxu0 0.0
    %3684 = vmatmul.mubr.f32.gmra.mrb[0].mxu0 %v3617
    %v3685 = vpop.f32.mrb[0].mxu0
    %v3686 = vadd.f32 0.0, %v3685
    %v3687 = vpop.f32.mrb[0].mxu0
    %3688 = vdwg.mxu0
    %v3689 = vadd.f32 %v3598, %v3686
    %s3690 = scalar_lea.vmem [#allocation3], 10
    %v3691 = vld [vmem:[%s3690] ss:$16 sm:$0x3]
    %v3692 = vld [vmem:[%s3690] ss:$16 sm:$0xc]
    %v3693 = vor.u32 %v3691, %v3692
    %v3694 = vld [vmem:[%s3690] ss:$16 sm:$0x30]
    %v3695 = vor.u32 %v3693, %v3694
    %v3696 = vld [vmem:[%s3690] ss:$16 sm:$0xc0]
    %v3697 = vor.u32 %v3695, %v3696
    %s3698 = scalar_lea.vmem [#allocation7], 640
    %v3699 = vld [vmem:[%s3698] sm:$0xff]
    %v3700 = vld [vmem:[%s3698 + $0x8] sm:$0xff]
    %v3701 = vld [vmem:[%s3698 + $0x10] sm:$0xff]
    %v3702 = vld [vmem:[%s3698 + $0x18] sm:$0xff]
    %v3703 = vld [vmem:[%s3698 + $0x20] sm:$0xff]
    %v3704 = vld [vmem:[%s3698 + $0x28] sm:$0xff]
    %v3705 = vld [vmem:[%s3698 + $0x30] sm:$0xff]
    %v3706 = vld [vmem:[%s3698 + $0x38] sm:$0xff]
    %v3708 = vsel %vm2815, %v3697, 0
    %3710 = vmatprep.subr.mxu0 0.0
    %3711 = vmatpush1.msra.mxu0 %v3699
    %3712 = vmatprep.subr.mxu0 0.0
    %3713 = vmatpush1.msra.mxu0 %v3700
    %3714 = vmatprep.subr.mxu0 0.0
    %3715 = vmatpush1.msra.mxu0 %v3701
    %3716 = vmatprep.subr.mxu0 0.0
    %3717 = vmatpush1.msra.mxu0 %v3702
    %3718 = vmatprep.subr.mxu0 0.0
    %3719 = vmatpush1.msra.mxu0 %v3703
    %3720 = vmatprep.subr.mxu0 0.0
    %3721 = vmatpush1.msra.mxu0 %v3704
    %3722 = vmatprep.subr.mxu0 0.0
    %3723 = vmatpush1.msra.mxu0 %v3705
    %3724 = vmatprep.subr.mxu0 0.0
    %3725 = vmatpush1.msra.mxu0 %v3706
    %3726 = vmatprep.subr.mxu0 0.0
    %3727 = vmatpush1.msra.mxu0 0.0
    %3728 = vmatprep.subr.mxu0 0.0
    %3729 = vmatpush1.msra.mxu0 0.0
    %3730 = vmatprep.subr.mxu0 0.0
    %3731 = vmatpush1.msra.mxu0 0.0
    %3732 = vmatprep.subr.mxu0 0.0
    %3733 = vmatpush1.msra.mxu0 0.0
    %3734 = vmatprep.subr.mxu0 0.0
    %3735 = vmatpush1.msra.mxu0 0.0
    %3736 = vmatprep.subr.mxu0 0.0
    %3737 = vmatpush1.msra.mxu0 0.0
    %3738 = vmatprep.subr.mxu0 0.0
    %3739 = vmatpush1.msra.mxu0 0.0
    %3740 = vmatprep.subr.mxu0 0.0
    %3741 = vmatpush1.msra.mxu0 0.0
    %3742 = vmatprep.subr.mxu0 0.0
    %3743 = vmatpush1.msra.mxu0 0.0
    %3744 = vmatprep.subr.mxu0 0.0
    %3745 = vmatpush1.msra.mxu0 0.0
    %3746 = vmatprep.subr.mxu0 0.0
    %3747 = vmatpush1.msra.mxu0 0.0
    %3748 = vmatprep.subr.mxu0 0.0
    %3749 = vmatpush1.msra.mxu0 0.0
    %3750 = vmatprep.subr.mxu0 0.0
    %3751 = vmatpush1.msra.mxu0 0.0
    %3752 = vmatprep.subr.mxu0 0.0
    %3753 = vmatpush1.msra.mxu0 0.0
    %3754 = vmatprep.subr.mxu0 0.0
    %3755 = vmatpush1.msra.mxu0 0.0
    %3756 = vmatprep.subr.mxu0 0.0
    %3757 = vmatpush1.msra.mxu0 0.0
    %3758 = vmatprep.subr.mxu0 0.0
    %3759 = vmatpush1.msra.mxu0 0.0
    %3760 = vmatprep.subr.mxu0 0.0
    %3761 = vmatpush1.msra.mxu0 0.0
    %3762 = vmatprep.subr.mxu0 0.0
    %3763 = vmatpush1.msra.mxu0 0.0
    %3764 = vmatprep.subr.mxu0 0.0
    %3765 = vmatpush1.msra.mxu0 0.0
    %3766 = vmatprep.subr.mxu0 0.0
    %3767 = vmatpush1.msra.mxu0 0.0
    %3768 = vmatprep.subr.mxu0 0.0
    %3769 = vmatpush1.msra.mxu0 0.0
    %3770 = vmatprep.subr.mxu0 0.0
    %3771 = vmatpush1.msra.mxu0 0.0
    %3772 = vmatprep.subr.mxu0 0.0
    %3773 = vmatpush1.msra.mxu0 0.0
    %3774 = vmatprep.mubr.f32.mxu0 0.0
    %3775 = vmatmul.mubr.f32.gmra.mrb[0].mxu0 %v3708
    %v3776 = vpop.f32.mrb[0].mxu0
    %v3777 = vadd.f32 0.0, %v3776
    %v3778 = vpop.f32.mrb[0].mxu0
    %3779 = vdwg.mxu0
    %v3780 = vadd.f32 %v3689, %v3777
    %v3781 = vld [vmem:[%s7] sm:$0x1]
    %v3783 = vlaneseq
    %v3784 = vshrl.u32 %v3783, 7
    %v3785 = vsub.s32 0, %v3784
    %v3786 = vrot.slane %v3781, %v3785
    %v3788 = vadd.f32 %v3780, %v3786
    %3789 = vst [vmem:[#allocation9] sm:$0xff] %v3788
    // Predicated region
    $region42: #{diac_model_forward.1} parent=1 // pred_check
      _
    $region43: #{diac_model_forward.1} parent=1 // pred_check_branch
      %3791 = sbr.rel (0) target = $region45
    $region44: #{diac_model_forward.1} parent=1 // pred_region
      %s3793 = ssub.s32 128, 128
      %3794 = vsyncadd [#allocation6], %s3793
      %s3796 = sshll.u32 [#allocation9], 4
      %s3797 = int_to_ptr.vmem [resolvable:$true] %s3796
      %3799 = dma.vmem_to_hbm [thread:$0]  %s3797, 128, %s8, [#allocation6]
    $region45: #{diac_model_forward.1} parent=1 // pred_fallthru
      _
    // Predicated region
    $region46: #{diac_model_forward.1} parent=1 // pred_check
      _
    $region47: #{diac_model_forward.1} parent=1 // pred_check_branch
      %3801 = sbr.rel (0) target = $region49
    $region48: #{diac_model_forward.1} parent=1 // pred_region
      %3802 = dma.done [#allocation6], 128
    $region49: #{diac_model_forward.1} parent=1 // pred_fallthru
      _
    %3803 = vsyncpa [#allocation5], 1
    %3804 = vsyncpa [#allocation8], 1
    %3805 = vsyncpa [#allocation6], 1

</llo_original>
